<compile_context>
chip_gen: v7x
topology: tpu7x:2x2x1
jax: 0.10.0
libtpu: 0.0.40
codegen_flags: <defaults>
</compile_context>

<pallas_src>
import functools
import math

import jax
import jax.numpy as jnp
from jax.experimental import pallas as pl
from jax.experimental.pallas import tpu as pltpu

_VMEM_LIMIT = 32 * 1024 * 1024  # safe on v5e/v6e/v7x (v7x scoped default is 32 of 64 MiB)


# ----------------------------------------------------------------------------
# small helpers (padding to TPU-friendly tile multiples)
# ----------------------------------------------------------------------------
def _round_up(x, m):
    return ((x + m - 1) // m) * m


def _pad2(a, r, c):
    pr, pc = r - a.shape[0], c - a.shape[1]
    if pr == 0 and pc == 0:
        return a
    return jnp.pad(a, ((0, pr), (0, pc)))


def _pad_seq(a, L):  # pad axis 1 of [B, L, D]
    p = L - a.shape[1]
    return a if p == 0 else jnp.pad(a, ((0, 0), (0, p), (0, 0)))


def _pad_last(a, L):  # pad last axis of [B, 1, L]
    p = L - a.shape[-1]
    return a if p == 0 else jnp.pad(a, ((0, 0), (0, 0), (0, p)))


# ----------------------------------------------------------------------------
# Tiled fused linear: out = act(x @ w + b) (+ residual)
# ----------------------------------------------------------------------------
def _linear_kernel(*refs, act, has_res):
    if has_res:
        x_ref, w_ref, b_ref, r_ref, o_ref, acc_ref = refs
    else:
        x_ref, w_ref, b_ref, o_ref, acc_ref = refs
        r_ref = None
    k = pl.program_id(2)

    @pl.when(k == 0)
    def _():
        acc_ref[...] = jnp.zeros_like(acc_ref)

    acc_ref[...] += jnp.dot(x_ref[...].astype(jnp.bfloat16),
                            w_ref[...].astype(jnp.bfloat16),
                            preferred_element_type=jnp.float32)

    @pl.when(k == pl.num_programs(2) - 1)
    def _():
        y = acc_ref[...] + b_ref[...]
        if act == "relu":
            y = jnp.maximum(y, 0.0)
        elif act == "gelu":
            # TODO(synk): HF BERT/BLIP use exact erf GELU; tanh approximation kept for
            #             guaranteed Mosaic lowering (small systematic numeric drift).
            y = jax.nn.gelu(y)
        if has_res:
            y = y + r_ref[...]
        o_ref[...] = y.astype(o_ref.dtype)


def pallas_linear(x, w, b, act="none", residual=None):
    M, K = x.shape
    N = w.shape[1]
    tm = min(256, _round_up(M, 8))
    tk = min(512, _round_up(K, 128))
    tn = min(256, _round_up(N, 128))
    Mp, Kp, Np = _round_up(M, tm), _round_up(K, tk), _round_up(N, tn)

    args = [_pad2(x, Mp, Kp), _pad2(w, Kp, Np), _pad2(b.reshape(1, N), 1, Np)]
    in_specs = [pl.BlockSpec((tm, tk), lambda i, j, k: (i, k)),
                pl.BlockSpec((tk, tn), lambda i, j, k: (k, j)),
                pl.BlockSpec((1, tn), lambda i, j, k: (0, j))]
    if residual is not None:
        args.append(_pad2(residual, Mp, Np))
        in_specs.append(pl.BlockSpec((tm, tn), lambda i, j, k: (i, j)))

    out = pl.pallas_call(
        functools.partial(_linear_kernel, act=act, has_res=residual is not None),
        grid=(Mp // tm, Np // tn, Kp // tk),
        in_specs=in_specs,
        out_specs=pl.BlockSpec((tm, tn), lambda i, j, k: (i, j)),
        out_shape=jax.ShapeDtypeStruct((Mp, Np), jnp.float32),
        scratch_shapes=[pltpu.VMEM((tm, tn), jnp.float32)],
        compiler_params=pltpu.CompilerParams(
            dimension_semantics=("parallel", "parallel", "arbitrary"),
            vmem_limit_bytes=_VMEM_LIMIT),
    )(*args)
    return out[:M, :N] if (Mp != M or Np != N) else out


# ----------------------------------------------------------------------------
# Fused (residual add +) LayerNorm, row-tiled
# ----------------------------------------------------------------------------
def _layernorm_kernel(*refs, eps, has_res):
    if has_res:
        x_ref, r_ref, g_ref, b_ref, o_ref = refs
    else:
        x_ref, g_ref, b_ref, o_ref = refs
        r_ref = None
    x = x_ref[...]
    if has_res:
        x = x + r_ref[...]
    mu = jnp.mean(x, axis=-1, keepdims=True)
    var = jnp.mean(jnp.square(x - mu), axis=-1, keepdims=True)
    inv = jax.lax.rsqrt(var + eps)
    o_ref[...] = ((x - mu) * inv * g_ref[...] + b_ref[...]).astype(o_ref.dtype)


def pallas_layernorm(x, g, b, residual=None, eps=1e-12):
    M, D = x.shape
    tm = min(256, _round_up(M, 8))
    Mp = _round_up(M, tm)

    args = [_pad2(x, Mp, D)]
    in_specs = [pl.BlockSpec((tm, D), lambda i: (i, 0))]
    if residual is not None:
        args.append(_pad2(residual, Mp, D))
        in_specs.append(pl.BlockSpec((tm, D), lambda i: (i, 0)))
    args += [g.reshape(1, D), b.reshape(1, D)]
    in_specs += [pl.BlockSpec((1, D), lambda i: (0, 0)),
                 pl.BlockSpec((1, D), lambda i: (0, 0))]

    out = pl.pallas_call(
        functools.partial(_layernorm_kernel, eps=eps, has_res=residual is not None),
        grid=(Mp // tm,),
        in_specs=in_specs,
        out_specs=pl.BlockSpec((tm, D), lambda i: (i, 0)),
        out_shape=jax.ShapeDtypeStruct((Mp, D), jnp.float32),
        compiler_params=pltpu.CompilerParams(
            dimension_semantics=("parallel",), vmem_limit_bytes=_VMEM_LIMIT),
    )(*args)
    return out[:M] if Mp != M else out


# ----------------------------------------------------------------------------
# Flash-style multi-head attention.  All heads handled per invocation; the
# online-softmax accumulator is a single lane-dense [tq, D] VMEM buffer so the
# epilogue performs ONE full-width store per tile.  Masks built in-kernel.
# ----------------------------------------------------------------------------
def _mha_kernel(q_ref, k_ref, v_ref, km_ref, o_ref, m_scr, l_scr, acc_scr,
                *, n_heads, dh, scale, causal, tq, tk):
    qi = pl.program_id(1)
    ki = pl.program_id(2)

    @pl.when(ki == 0)
    def _():
        m_scr[...] = jnp.full_like(m_scr, -1e30)
        l_scr[...] = jnp.zeros_like(l_scr)
        acc_scr[...] = jnp.zeros_like(acc_scr)

    q = (q_ref[0] * scale).astype(jnp.bfloat16)   # (tq, D)  — 1/sqrt(dh) folded into q
    k = k_ref[0].astype(jnp.bfloat16)             # (tk, D)
    v = v_ref[0].astype(jnp.bfloat16)             # (tk, D)
    bias = (1.0 - km_ref[0]) * (-1e9)             # (1, tk) key-padding mask, f32
    if causal:
        q_idx = qi * tq + jax.lax.broadcasted_iota(jnp.int32, (tq, tk), 0)
        k_idx = ki * tk + jax.lax.broadcasted_iota(jnp.int32, (tq, tk), 1)
        bias = bias + jnp.where(k_idx > q_idx, -1e9, 0.0)

    dims = (((1,), (1,)), ((), ()))               # q . k^T over the head dim
    for h in range(n_heads):
        sl = slice(h * dh, (h + 1) * dh)
        s = jax.lax.dot_general(q[:, sl], k[:, sl], dims,
                                preferred_element_type=jnp.float32)   # (tq, tk) f32
        s = s + bias
        m_prev = m_scr[h]                                              # (tq, 1)
        m_new = jnp.maximum(m_prev, jnp.max(s, axis=-1, keepdims=True))
        alpha = jnp.exp(m_prev - m_new)
        p = jnp.exp(s - m_new)
        l_scr[h] = alpha * l_scr[h] + jnp.sum(p, axis=-1, keepdims=True)
        acc_scr[:, sl] = alpha * acc_scr[:, sl] + jnp.dot(
            p.astype(jnp.bfloat16), v[:, sl], preferred_element_type=jnp.float32)
        m_scr[h] = m_new

    @pl.when(ki == pl.num_programs(2) - 1)
    def _():
        for h in range(n_heads):
            sl = slice(h * dh, (h + 1) * dh)
            acc_scr[:, sl] = acc_scr[:, sl] * pl.reciprocal(l_scr[h], approx=True)
        o_ref[0] = acc_scr[...].astype(o_ref.dtype)   # single lane-dense (tq, D) store


def pallas_mha_attention(q, k, v, key_mask, *, n_heads, causal, scale):
    B, Lq, D = q.shape
    Lk = k.shape[1]
    dh = D // n_heads
    tq = min(256, _round_up(Lq, 8))
    Lqp = _round_up(Lq, tq)
    tk = min(256, _round_up(Lk, 8))
    Lkp = _round_up(Lk, tk)

    qp, kp, vp = _pad_seq(q, Lqp), _pad_seq(k, Lkp), _pad_seq(v, Lkp)
    kmp = _pad_last(key_mask, Lkp)     # padded keys get mask 0 -> -1e9 bias

    out = pl.pallas_call(
        functools.partial(_mha_kernel, n_heads=n_heads, dh=dh, scale=scale,
                          causal=causal, tq=tq, tk=tk),
        grid=(B, Lqp // tq, Lkp // tk),
        in_specs=[pl.BlockSpec((1, tq, D), lambda b, i, j: (b, i, 0)),
                  pl.BlockSpec((1, tk, D), lambda b, i, j: (b, j, 0)),
                  pl.BlockSpec((1, tk, D), lambda b, i, j: (b, j, 0)),
                  pl.BlockSpec((1, 1, tk), lambda b, i, j: (b, 0, j))],
        out_specs=pl.BlockSpec((1, tq, D), lambda b, i, j: (b, i, 0)),
        out_shape=jax.ShapeDtypeStruct((B, Lqp, D), jnp.float32),
        scratch_shapes=[pltpu.VMEM((n_heads, tq, 1), jnp.float32),
                        pltpu.VMEM((n_heads, tq, 1), jnp.float32),
                        pltpu.VMEM((tq, D), jnp.float32)],
        compiler_params=pltpu.CompilerParams(
            dimension_semantics=("parallel", "parallel", "arbitrary"),
            vmem_limit_bytes=_VMEM_LIMIT),
    )(qp, kp, vp, kmp)
    return out[:, :Lq, :] if Lqp != Lq else out


# ----------------------------------------------------------------------------
# Fused "mean over patch tokens + simple heat decoder" head (tiny)
# ----------------------------------------------------------------------------
def _heat_kernel(x_ref, w_ref, b_ref, o_ref):
    x = x_ref[...]                           # [B, Nv, D]
    loc = jnp.mean(x[:, 1:, :], axis=1)      # loc_embed = image_embeds[:, 1:].mean(1)
    y = jnp.dot(loc.astype(jnp.bfloat16), w_ref[...].astype(jnp.bfloat16),
                preferred_element_type=jnp.float32) + b_ref[...]
    o_ref[...] = y.astype(o_ref.dtype)


def pallas_heat_decoder(image_embeds, w, b):
    B, Nv, D = image_embeds.shape
    N = w.shape[1]
    full = lambda shape: pl.BlockSpec(shape, lambda *_: (0,) * len(shape))
    return pl.pallas_call(
        _heat_kernel,
        grid=(1,),
        in_specs=[full((B, Nv, D)), full((D, N)), full((1, N))],
        out_specs=full((B, N)),
        out_shape=jax.ShapeDtypeStruct((B, N), jnp.float32),
        compiler_params=pltpu.CompilerParams(vmem_limit_bytes=_VMEM_LIMIT),
    )(image_embeds, w, b.reshape(1, N))


# ----------------------------------------------------------------------------
# Model glue (built entirely from the Pallas kernels above + reshapes)
# ----------------------------------------------------------------------------
def mha(xq, xkv, key_mask, p, n_heads, *, causal=False, residual=None):
    """xq:[B,Lq,D], xkv:[B,Lk,D], key_mask:[B,1,Lk] (1 keep / 0 mask)."""
    B, Lq, D = xq.shape
    Lk = xkv.shape[1]
    dh = D // n_heads
    if "wqkv" in p:                      # self-attention: fused QKV projection
        qkv = pallas_linear(xq.reshape(B * Lq, D), p["wqkv"], p["bqkv"])
        q = qkv[:, :D].reshape(B, Lq, D)
        k = qkv[:, D:2 * D].reshape(B, Lq, D)
        v = qkv[:, 2 * D:].reshape(B, Lq, D)
    else:                                # cross-attention: fused KV projection
        q = pallas_linear(xq.reshape(B * Lq, D), p["wq"], p["bq"]).reshape(B, Lq, D)
        kv = pallas_linear(xkv.reshape(B * Lk, D), p["wkv"], p["bkv"])
        k = kv[:, :D].reshape(B, Lk, D)
        v = kv[:, D:].reshape(B, Lk, D)
    o = pallas_mha_attention(q, k, v, key_mask, n_heads=n_heads, causal=causal,
                             scale=1.0 / math.sqrt(dh))
    res_flat = residual.reshape(B * Lq, D) if residual is not None else None
    out = pallas_linear(o.reshape(B * Lq, D), p["wo"], p["bo"], residual=res_flat)
    return out.reshape(B, Lq, D)


def text_decoder(input_embs, attn_mask, p, cfg):
    """BertLMHeadModel (mode='text'): causal self-attention decoder (post-LN)."""
    B, L, D = input_embs.shape
    x = input_embs + p["pos_emb"][None, :L, :]
    x = pallas_layernorm(x.reshape(B * L, D), p["emb_ln_g"], p["emb_ln_b"],
                         eps=1e-12).reshape(B, L, D)
    key_mask = attn_mask.astype(jnp.float32).reshape(B, 1, L)
    for lp in p["layers"]:
        a = mha(x, x, key_mask, lp["attn"], cfg["heads"], causal=True)
        x = pallas_layernorm(a.reshape(B * L, D), lp["ln1_g"], lp["ln1_b"],
                             residual=x.reshape(B * L, D), eps=1e-12).reshape(B, L, D)
        h = pallas_linear(x.reshape(B * L, D), lp["w1"], lp["b1"], act="gelu")
        h = pallas_linear(h, lp["w2"], lp["b2"])
        x = pallas_layernorm(h, lp["ln2_g"], lp["ln2_b"],
                             residual=x.reshape(B * L, D), eps=1e-12).reshape(B, L, D)
    return x


def visual_encoder(image, text_hidden, text_mask, p, cfg):
    """ViT (pre-LN) with cross-attention to text hidden states from cfg['cross_start']."""
    B, C, H, W = image.shape
    P, D = cfg["patch"], cfg["D"]
    nph, npw = H // P, W // P
    # NCHW -> [B, num_patches, C*P*P]  (patch-embed conv as a matmul)
    patches = image.reshape(B, C, nph, P, npw, P).transpose(0, 2, 4, 1, 3, 5)
    patches = patches.reshape(B, nph * npw, C * P * P)
    x = pallas_linear(patches.reshape(B * nph * npw, C * P * P),
                      p["patch_w"], p["patch_b"]).reshape(B, nph * npw, D)
    cls = jnp.broadcast_to(p["cls"], (B, 1, D))
    x = jnp.concatenate([cls, x], axis=1)                             # [B, Nv, D]
    Nv = x.shape[1]
    x = x + p["pos_emb"][None, :Nv, :]

    Lt = text_hidden.shape[1]
    img_key_mask = jnp.ones((B, 1, Nv), jnp.float32)
    txt_key_mask = text_mask.astype(jnp.float32).reshape(B, 1, Lt)

    for i, lp in enumerate(p["layers"]):
        h = pallas_layernorm(x.reshape(B * Nv, D), lp["ln1_g"], lp["ln1_b"],
                             eps=1e-6).reshape(B, Nv, D)
        x = mha(h, h, img_key_mask, lp["attn"], cfg["heads"], causal=False, residual=x)
        if i >= cfg["cross_start"]:
            h = pallas_layernorm(x.reshape(B * Nv, D), lp["lnc_g"], lp["lnc_b"],
                                 eps=1e-6).reshape(B, Nv, D)
            x = mha(h, text_hidden, txt_key_mask, lp["cross"], cfg["heads"],
                    causal=False, residual=x)
        h = pallas_layernorm(x.reshape(B * Nv, D), lp["ln2_g"], lp["ln2_b"],
                             eps=1e-6).reshape(B, Nv, D)
        m = pallas_linear(h.reshape(B * Nv, D), lp["w1"], lp["b1"], act="gelu")
        x = pallas_linear(m, lp["w2"], lp["b2"],
                          residual=x.reshape(B * Nv, D)).reshape(B, Nv, D)
    x = pallas_layernorm(x.reshape(B * Nv, D), p["final_ln_g"], p["final_ln_b"],
                         eps=1e-6).reshape(B, Nv, D)
    return x


def blip_decoder_v2_forward(params, image, text, attn_mask, cap_len, cfg):
    # cap_len is unused in the reference forward path (labels=None), kept for signature fidelity.
    del cap_len
    B = image.shape[0]
    D = cfg["D"]
    # input_embeddings(text): embedding lookup (glue; gather stays in XLA)
    input_embs = jnp.take(params["tok_emb"], text, axis=0)                  # [B, L, D]
    # text_decoder(...).hidden_states[-1]
    last_hidden = text_decoder(input_embs, attn_mask, params["text"], cfg)  # [B, L, D]
    # text_proj
    BL = last_hidden.shape[0] * last_hidden.shape[1]
    last_hidden = pallas_linear(last_hidden.reshape(BL, D),
                                params["text_proj_w"],
                                params["text_proj_b"]).reshape(B, -1, D)
    # visual_encoder(image, encoder_hidden_states=last_hidden, encoder_attention_mask=attn_mask)
    image_embeds = visual_encoder(image, last_hidden, attn_mask, params["vit"], cfg)
    # config['heat_decoder'] == 'simple': loc_embed = image_embeds[:,1:].mean(1); heat Linear
    heat_flat = pallas_heat_decoder(image_embeds, params["heat_w"], params["heat_b"])
    heatmap = heat_flat.reshape(B, cfg["heat"], cfg["heat"])
    return heatmap


# ----------------------------------------------------------------------------
# Deterministic parameter init (shapes scaled down; matmul weights stored in bf16)
# ----------------------------------------------------------------------------
def init_params(key, cfg):
    keys = iter(jax.random.split(key, 512))
    bf = jnp.bfloat16

    def nrm(shape, dtype=jnp.float32, s=0.02):
        return (jax.random.normal(next(keys), shape, jnp.float32) * s).astype(dtype)

    D, F = cfg["D"], cfg["ffn"]
    ones = lambda n: jnp.ones((n,), jnp.float32)
    zeros = lambda n: jnp.zeros((n,), jnp.float32)

    def self_attn_p():
        return {"wqkv": nrm((D, 3 * D), bf), "bqkv": zeros(3 * D),
                "wo": nrm((D, D), bf), "bo": zeros(D)}

    def cross_attn_p():
        return {"wq": nrm((D, D), bf), "bq": zeros(D),
                "wkv": nrm((D, 2 * D), bf), "bkv": zeros(2 * D),
                "wo": nrm((D, D), bf), "bo": zeros(D)}

    def ffn_ln_p():
        return {"w1": nrm((D, F), bf), "b1": zeros(F),
                "w2": nrm((F, D), bf), "b2": zeros(D),
                "ln1_g": ones(D), "ln1_b": zeros(D),
                "ln2_g": ones(D), "ln2_b": zeros(D)}

    text = {
        "pos_emb": nrm((cfg["L"], D)),
        "emb_ln_g": ones(D), "emb_ln_b": zeros(D),
        "layers": [dict(attn=self_attn_p(), **ffn_ln_p())
                   for _ in range(cfg["text_layers"])],
    }

    n_patch = (cfg["img"] // cfg["patch"]) ** 2
    vit_layers = []
    for _ in range(cfg["vit_layers"]):
        lp = dict(attn=self_attn_p(), cross=cross_attn_p(), **ffn_ln_p())
        lp["lnc_g"] = ones(D)
        lp["lnc_b"] = zeros(D)
        vit_layers.append(lp)
    vit = {
        "patch_w": nrm((cfg["C"] * cfg["patch"] ** 2, D), bf),
        "patch_b": zeros(D),
        "cls": nrm((1, 1, D)),
        "pos_emb": nrm((n_patch + 1, D)),
        "final_ln_g": ones(D), "final_ln_b": zeros(D),
        "layers": vit_layers,
    }

    return {
        "tok_emb": nrm((cfg["vocab"], D)),
        "text": text,
        "vit": vit,
        "text_proj_w": nrm((D, D), bf),
        "text_proj_b": zeros(D),
        "heat_w": nrm((D, cfg["heat"] * cfg["heat"]), bf),
        "heat_b": zeros(cfg["heat"] * cfg["heat"]),
    }


# ----------------------------------------------------------------------------
# Main
# ----------------------------------------------------------------------------
if __name__ == "__main__":
    cfg = dict(vocab=64, D=32, heads=4, ffn=64, L=8,
               text_layers=2, vit_layers=2, cross_start=1,
               patch=16, img=32, C=3, heat=16)

    key = jax.random.PRNGKey(0)
    kp, ki, kt = jax.random.split(key, 3)
    params = init_params(kp, cfg)

    B = 2
    image = jax.random.normal(ki, (B, cfg["C"], cfg["img"], cfg["img"]), jnp.float32)
    text = jax.random.randint(kt, (B, cfg["L"]), 0, cfg["vocab"], dtype=jnp.int32)
    attn_mask = jnp.array([[1, 1, 1, 1, 1, 1, 1, 1],
                           [1, 1, 1, 1, 1, 1, 0, 0]], dtype=jnp.float32)
    cap_len = jnp.array([8, 6], dtype=jnp.int32)

    fwd = jax.jit(functools.partial(blip_decoder_v2_forward, cfg=cfg))
    heatmap = fwd(params, image, text, attn_mask, cap_len)
    jax.block_until_ready(heatmap)
    assert heatmap.shape == (B, cfg["heat"], cfg["heat"])
    assert heatmap.dtype == jnp.float32
    print("KERNEL_OK")
</pallas_src>

<mosaic_0001>
module attributes {stable_mosaic.version = 11 : i64} {
  func.func @_linear_kernel(%arg0: i32, %arg1: i32, %arg2: i32, %arg3: memref<8x512xf32, #tpu.memory_space<vmem>>, %arg4: memref<512x128xbf16, #tpu.memory_space<vmem>>, %arg5: memref<1x128xf32, #tpu.memory_space<vmem>>, %arg6: memref<8x128xf32, #tpu.memory_space<vmem>>, %arg7: memref<8x128xf32, #tpu.memory_space<vmem>>) attributes {dimension_semantics = [#tpu.dimension_semantics<parallel>, #tpu.dimension_semantics<parallel>, #tpu.dimension_semantics<arbitrary>], iteration_bounds = array<i64: 1, 1, 2>, scalar_prefetch = 0 : i64, scratch_operands = 1 : i64, tpu.core_type = #tpu.core_type<tc>, window_params = [{transform_indices = @transform_0, window_bounds = array<i64: 8, 512>}, {transform_indices = @transform_1, window_bounds = array<i64: 512, 128>}, {transform_indices = @transform_2, window_bounds = array<i64: 1, 128>}, {transform_indices = @transform_3, window_bounds = array<i64: 8, 128>}]} {
    %c0_i32 = arith.constant 0 : i32
    %0 = arith.cmpi eq, %arg2, %c0_i32 : i32
    %1 = arith.extui %0 : i1 to i32
    %c0_i32_0 = arith.constant 0 : i32
    %2 = arith.cmpi ne, %1, %c0_i32_0 : i32
    scf.if %2 {
      %cst_9 = arith.constant 0.000000e+00 : f32
      %13 = vector.broadcast %cst_9 : f32 to vector<8x128xf32>
      %c0_10 = arith.constant 0 : index
      %c0_11 = arith.constant 0 : index
      %14 = vector.load %arg7[%c0_10, %c0_11] : memref<8x128xf32, #tpu.memory_space<vmem>>, vector<8x128xf32>
      tpu.vector_store %arg7[%c0_10, %c0_11], %13 {strides = array<i32>} : memref<8x128xf32, #tpu.memory_space<vmem>>, vector<8x128xf32>,
    } else {
    }
    %c0 = arith.constant 0 : index
    %c0_1 = arith.constant 0 : index
    %3 = vector.load %arg7[%c0, %c0_1] : memref<8x128xf32, #tpu.memory_space<vmem>>, vector<8x128xf32>
    %c0_2 = arith.constant 0 : index
    %c0_3 = arith.constant 0 : index
    %4 = vector.load %arg3[%c0_2, %c0_3] : memref<8x512xf32, #tpu.memory_space<vmem>>, vector<8x512xf32>
    %5 = arith.truncf %4 : vector<8x512xf32> to vector<8x512xbf16>
    %c0_4 = arith.constant 0 : index
    %c0_5 = arith.constant 0 : index
    %6 = vector.load %arg4[%c0_4, %c0_5] : memref<512x128xbf16, #tpu.memory_space<vmem>>, vector<512x128xbf16>
    %cst = arith.constant dense<0.000000e+00> : vector<8x128xf32>
    %7 = tpu.matmul %5, %6, %cst {dimension_numbers = #tpu.dot_dimension_numbers<[1], [0], [0], [1], [0, 0, 1, 1], [], []>} : vector<8x512xbf16>, vector<512x128xbf16>, vector<8x128xf32> -> vector<8x128xf32>
    %8 = arith.addf %3, %7 : vector<8x128xf32>
    %c0_6 = arith.constant 0 : index
    %c0_7 = arith.constant 0 : index
    %9 = vector.load %arg7[%c0_6, %c0_7] : memref<8x128xf32, #tpu.memory_space<vmem>>, vector<8x128xf32>
    tpu.vector_store %arg7[%c0_6, %c0_7], %8 {strides = array<i32>} : memref<8x128xf32, #tpu.memory_space<vmem>>, vector<8x128xf32>,
    %c1_i32 = arith.constant 1 : i32
    %10 = arith.cmpi eq, %arg2, %c1_i32 : i32
    %11 = arith.extui %10 : i1 to i32
    %c0_i32_8 = arith.constant 0 : i32
    %12 = arith.cmpi ne, %11, %c0_i32_8 : i32
    scf.if %12 {
      %c0_9 = arith.constant 0 : index
      %c0_10 = arith.constant 0 : index
      %13 = vector.load %arg7[%c0_9, %c0_10] : memref<8x128xf32, #tpu.memory_space<vmem>>, vector<8x128xf32>
      %c0_11 = arith.constant 0 : index
      %c0_12 = arith.constant 0 : index
      %14 = vector.load %arg5[%c0_11, %c0_12] : memref<1x128xf32, #tpu.memory_space<vmem>>, vector<1x128xf32>
      %15 = vector.broadcast %14 : vector<1x128xf32> to vector<8x128xf32>
      %16 = arith.addf %13, %15 : vector<8x128xf32>
      %c0_13 = arith.constant 0 : index
      %c0_14 = arith.constant 0 : index
      %17 = vector.load %arg6[%c0_13, %c0_14] : memref<8x128xf32, #tpu.memory_space<vmem>>, vector<8x128xf32>
      tpu.vector_store %arg6[%c0_13, %c0_14], %16 {strides = array<i32>} : memref<8x128xf32, #tpu.memory_space<vmem>>, vector<8x128xf32>,
    } else {
    }
    return
  }
  func.func @transform_0(%arg0: i32, %arg1: i32, %arg2: i32) -> (i32, i32) {
    %c0_i32 = arith.constant 0 : i32
    return %arg0, %arg2 : i32, i32
  }
  func.func @transform_1(%arg0: i32, %arg1: i32, %arg2: i32) -> (i32, i32) {
    %c0_i32 = arith.constant 0 : i32
    return %arg2, %arg1 : i32, i32
  }
  func.func @transform_2(%arg0: i32, %arg1: i32, %arg2: i32) -> (i32, i32) {
    %c0_i32 = arith.constant 0 : i32
    %c0_i32_0 = arith.constant 0 : i32
    return %c0_i32, %arg1 : i32, i32
  }
  func.func @transform_3(%arg0: i32, %arg1: i32, %arg2: i32) -> (i32, i32) {
    %c0_i32 = arith.constant 0 : i32
    return %arg0, %arg1 : i32, i32
  }
}

module attributes {stable_mosaic.version = 11 : i64} {
  func.func @_layernorm_kernel(%arg0: i32, %arg1: memref<16x32xf32, #tpu.memory_space<vmem>>, %arg2: memref<1x32xf32, #tpu.memory_space<vmem>>, %arg3: memref<1x32xf32, #tpu.memory_space<vmem>>, %arg4: memref<16x32xf32, #tpu.memory_space<vmem>>) attributes {dimension_semantics = [#tpu.dimension_semantics<parallel>], iteration_bounds = array<i64: 1>, scalar_prefetch = 0 : i64, scratch_operands = 0 : i64, tpu.core_type = #tpu.core_type<tc>, window_params = [{transform_indices = @transform_0, window_bounds = array<i64: 16, 32>}, {pipeline_mode = #tpu.pipeline_mode<synchronous>, transform_indices = @transform_1, window_bounds = array<i64: 1, 32>}, {pipeline_mode = #tpu.pipeline_mode<synchronous>, transform_indices = @transform_2, window_bounds = array<i64: 1, 32>}, {transform_indices = @transform_3, window_bounds = array<i64: 16, 32>}]} {
    %c0 = arith.constant 0 : index
    %c0_0 = arith.constant 0 : index
    %0 = vector.load %arg1[%c0, %c0_0] : memref<16x32xf32, #tpu.memory_space<vmem>>, vector<16x32xf32>
    %cst = arith.constant dense<0.000000e+00> : vector<16xf32>
    %1 = vector.multi_reduction <add>, %0, %cst [1] : vector<16x32xf32> to vector<16xf32>
    %2 = vector.shape_cast %1 : vector<16xf32> to vector<16x1xf32>
    %cst_1 = arith.constant 3.200000e+01 : f32
    %3 = vector.broadcast %cst_1 : f32 to vector<16x1xf32>
    %4 = arith.divf %2, %3 : vector<16x1xf32>
    %5 = vector.broadcast %4 : vector<16x1xf32> to vector<16x32xf32>
    %6 = arith.subf %0, %5 : vector<16x32xf32>
    %7 = arith.mulf %6, %6 : vector<16x32xf32>
    %cst_2 = arith.constant dense<0.000000e+00> : vector<16xf32>
    %8 = vector.multi_reduction <add>, %7, %cst_2 [1] : vector<16x32xf32> to vector<16xf32>
    %9 = vector.shape_cast %8 : vector<16xf32> to vector<16x1xf32>
    %cst_3 = arith.constant 3.200000e+01 : f32
    %10 = vector.broadcast %cst_3 : f32 to vector<16x1xf32>
    %11 = arith.divf %9, %10 : vector<16x1xf32>
    %cst_4 = arith.constant 9.99999997E-7 : f32
    %12 = vector.broadcast %cst_4 : f32 to vector<16x1xf32>
    %13 = arith.addf %11, %12 : vector<16x1xf32>
    %14 = math.rsqrt %13 : vector<16x1xf32>
    %15 = vector.broadcast %4 : vector<16x1xf32> to vector<16x32xf32>
    %16 = arith.subf %0, %15 : vector<16x32xf32>
    %17 = vector.broadcast %14 : vector<16x1xf32> to vector<16x32xf32>
    %18 = arith.mulf %16, %17 : vector<16x32xf32>
    %c0_5 = arith.constant 0 : index
    %c0_6 = arith.constant 0 : index
    %19 = vector.load %arg2[%c0_5, %c0_6] : memref<1x32xf32, #tpu.memory_space<vmem>>, vector<1x32xf32>
    %20 = vector.broadcast %19 : vector<1x32xf32> to vector<16x32xf32>
    %21 = arith.mulf %18, %20 : vector<16x32xf32>
    %c0_7 = arith.constant 0 : index
    %c0_8 = arith.constant 0 : index
    %22 = vector.load %arg3[%c0_7, %c0_8] : memref<1x32xf32, #tpu.memory_space<vmem>>, vector<1x32xf32>
    %23 = vector.broadcast %22 : vector<1x32xf32> to vector<16x32xf32>
    %24 = arith.addf %21, %23 : vector<16x32xf32>
    %c0_9 = arith.constant 0 : index
    %c0_10 = arith.constant 0 : index
    %25 = vector.load %arg4[%c0_9, %c0_10] : memref<16x32xf32, #tpu.memory_space<vmem>>, vector<16x32xf32>
    tpu.vector_store %arg4[%c0_9, %c0_10], %24 {strides = array<i32>} : memref<16x32xf32, #tpu.memory_space<vmem>>, vector<16x32xf32>,
    return
  }
  func.func @transform_0(%arg0: i32) -> (i32, i32) {
    %c0_i32 = arith.constant 0 : i32
    %c0_i32_0 = arith.constant 0 : i32
    return %arg0, %c0_i32 : i32, i32
  }
  func.func @transform_1(%arg0: i32) -> (i32, i32) {
    %c0_i32 = arith.constant 0 : i32
    %c0_i32_0 = arith.constant 0 : i32
    %c0_i32_1 = arith.constant 0 : i32
    return %c0_i32, %c0_i32_0 : i32, i32
  }
  func.func @transform_2(%arg0: i32) -> (i32, i32) {
    %c0_i32 = arith.constant 0 : i32
    %c0_i32_0 = arith.constant 0 : i32
    %c0_i32_1 = arith.constant 0 : i32
    return %c0_i32, %c0_i32_0 : i32, i32
  }
  func.func @transform_3(%arg0: i32) -> (i32, i32) {
    %c0_i32 = arith.constant 0 : i32
    %c0_i32_0 = arith.constant 0 : i32
    return %arg0, %c0_i32 : i32, i32
  }
}

module attributes {stable_mosaic.version = 11 : i64} {
  func.func @_linear_kernel(%arg0: i32, %arg1: i32, %arg2: i32, %arg3: memref<16x128xf32, #tpu.memory_space<vmem>>, %arg4: memref<128x128xbf16, #tpu.memory_space<vmem>>, %arg5: memref<1x128xf32, #tpu.memory_space<vmem>>, %arg6: memref<16x128xf32, #tpu.memory_space<vmem>>, %arg7: memref<16x128xf32, #tpu.memory_space<vmem>>) attributes {dimension_semantics = [#tpu.dimension_semantics<parallel>, #tpu.dimension_semantics<parallel>, #tpu.dimension_semantics<arbitrary>], iteration_bounds = array<i64: 1, 1, 1>, scalar_prefetch = 0 : i64, scratch_operands = 1 : i64, tpu.core_type = #tpu.core_type<tc>, window_params = [{transform_indices = @transform_0, window_bounds = array<i64: 16, 128>}, {transform_indices = @transform_1, window_bounds = array<i64: 128, 128>}, {transform_indices = @transform_2, window_bounds = array<i64: 1, 128>}, {transform_indices = @transform_3, window_bounds = array<i64: 16, 128>}]} {
    %c0_i32 = arith.constant 0 : i32
    %0 = arith.cmpi eq, %arg2, %c0_i32 : i32
    %1 = arith.extui %0 : i1 to i32
    %c0_i32_0 = arith.constant 0 : i32
    %2 = arith.cmpi ne, %1, %c0_i32_0 : i32
    scf.if %2 {
      %cst_10 = arith.constant 0.000000e+00 : f32
      %13 = vector.broadcast %cst_10 : f32 to vector<16x128xf32>
      %c0_11 = arith.constant 0 : index
      %c0_12 = arith.constant 0 : index
      %14 = vector.load %arg7[%c0_11, %c0_12] : memref<16x128xf32, #tpu.memory_space<vmem>>, vector<16x128xf32>
      tpu.vector_store %arg7[%c0_11, %c0_12], %13 {strides = array<i32>} : memref<16x128xf32, #tpu.memory_space<vmem>>, vector<16x128xf32>,
    } else {
    }
    %c0 = arith.constant 0 : index
    %c0_1 = arith.constant 0 : index
    %3 = vector.load %arg7[%c0, %c0_1] : memref<16x128xf32, #tpu.memory_space<vmem>>, vector<16x128xf32>
    %c0_2 = arith.constant 0 : index
    %c0_3 = arith.constant 0 : index
    %4 = vector.load %arg3[%c0_2, %c0_3] : memref<16x128xf32, #tpu.memory_space<vmem>>, vector<16x128xf32>
    %5 = arith.truncf %4 : vector<16x128xf32> to vector<16x128xbf16>
    %c0_4 = arith.constant 0 : index
    %c0_5 = arith.constant 0 : index
    %6 = vector.load %arg4[%c0_4, %c0_5] : memref<128x128xbf16, #tpu.memory_space<vmem>>, vector<128x128xbf16>
    %cst = arith.constant dense<0.000000e+00> : vector<16x128xf32>
    %7 = tpu.matmul %5, %6, %cst {dimension_numbers = #tpu.dot_dimension_numbers<[1], [0], [0], [1], [0, 0, 1, 1], [], []>} : vector<16x128xbf16>, vector<128x128xbf16>, vector<16x128xf32> -> vector<16x128xf32>
    %8 = arith.addf %3, %7 : vector<16x128xf32>
    %c0_6 = arith.constant 0 : index
    %c0_7 = arith.constant 0 : index
    %9 = vector.load %arg7[%c0_6, %c0_7] : memref<16x128xf32, #tpu.memory_space<vmem>>, vector<16x128xf32>
    tpu.vector_store %arg7[%c0_6, %c0_7], %8 {strides = array<i32>} : memref<16x128xf32, #tpu.memory_space<vmem>>, vector<16x128xf32>,
    %c0_i32_8 = arith.constant 0 : i32
    %10 = arith.cmpi eq, %arg2, %c0_i32_8 : i32
    %11 = arith.extui %10 : i1 to i32
    %c0_i32_9 = arith.constant 0 : i32
    %12 = arith.cmpi ne, %11, %c0_i32_9 : i32
    scf.if %12 {
      %c0_10 = arith.constant 0 : index
      %c0_11 = arith.constant 0 : index
      %13 = vector.load %arg7[%c0_10, %c0_11] : memref<16x128xf32, #tpu.memory_space<vmem>>, vector<16x128xf32>
      %c0_12 = arith.constant 0 : index
      %c0_13 = arith.constant 0 : index
      %14 = vector.load %arg5[%c0_12, %c0_13] : memref<1x128xf32, #tpu.memory_space<vmem>>, vector<1x128xf32>
      %15 = vector.broadcast %14 : vector<1x128xf32> to vector<16x128xf32>
      %16 = arith.addf %13, %15 : vector<16x128xf32>
      %c0_14 = arith.constant 0 : index
      %c0_15 = arith.constant 0 : index
      %17 = vector.load %arg6[%c0_14, %c0_15] : memref<16x128xf32, #tpu.memory_space<vmem>>, vector<16x128xf32>
      tpu.vector_store %arg6[%c0_14, %c0_15], %16 {strides = array<i32>} : memref<16x128xf32, #tpu.memory_space<vmem>>, vector<16x128xf32>,
    } else {
    }
    return
  }
  func.func @transform_0(%arg0: i32, %arg1: i32, %arg2: i32) -> (i32, i32) {
    %c0_i32 = arith.constant 0 : i32
    return %arg0, %arg2 : i32, i32
  }
  func.func @transform_1(%arg0: i32, %arg1: i32, %arg2: i32) -> (i32, i32) {
    %c0_i32 = arith.constant 0 : i32
    return %arg2, %arg1 : i32, i32
  }
  func.func @transform_2(%arg0: i32, %arg1: i32, %arg2: i32) -> (i32, i32) {
    %c0_i32 = arith.constant 0 : i32
    %c0_i32_0 = arith.constant 0 : i32
    return %c0_i32, %arg1 : i32, i32
  }
  func.func @transform_3(%arg0: i32, %arg1: i32, %arg2: i32) -> (i32, i32) {
    %c0_i32 = arith.constant 0 : i32
    return %arg0, %arg1 : i32, i32
  }
}

module attributes {stable_mosaic.version = 11 : i64} {
  func.func @_mha_kernel(%arg0: i32, %arg1: i32, %arg2: i32, %arg3: memref<1x8x32xf32, #tpu.memory_space<vmem>>, %arg4: memref<1x8x32xf32, #tpu.memory_space<vmem>>, %arg5: memref<1x8x32xf32, #tpu.memory_space<vmem>>, %arg6: memref<1x1x8xf32, #tpu.memory_space<vmem>>, %arg7: memref<1x8x32xf32, #tpu.memory_space<vmem>>, %arg8: memref<4x8x1xf32, #tpu.memory_space<vmem>>, %arg9: memref<4x8x1xf32, #tpu.memory_space<vmem>>, %arg10: memref<8x32xf32, #tpu.memory_space<vmem>>) attributes {dimension_semantics = [#tpu.dimension_semantics<parallel>, #tpu.dimension_semantics<parallel>, #tpu.dimension_semantics<arbitrary>], iteration_bounds = array<i64: 2, 1, 1>, scalar_prefetch = 0 : i64, scratch_operands = 3 : i64, tpu.core_type = #tpu.core_type<tc>, window_params = [{transform_indices = @transform_0, window_bounds = array<i64: 1, 8, 32>}, {transform_indices = @transform_1, window_bounds = array<i64: 1, 8, 32>}, {transform_indices = @transform_2, window_bounds = array<i64: 1, 8, 32>}, {transform_indices = @transform_3, window_bounds = array<i64: 1, 1, 8>}, {transform_indices = @transform_4, window_bounds = array<i64: 1, 8, 32>}]} {
    %c0_i32 = arith.constant 0 : i32
    %0 = arith.cmpi eq, %arg2, %c0_i32 : i32
    %1 = arith.extui %0 : i1 to i32
    %c0_i32_0 = arith.constant 0 : i32
    %2 = arith.cmpi ne, %1, %c0_i32_0 : i32
    scf.if %2 {
      %cst_90 = arith.constant -1.000000e+30 : f32
      %163 = vector.broadcast %cst_90 : f32 to vector<4x8x1xf32>
      %c0_91 = arith.constant 0 : index
      %c0_92 = arith.constant 0 : index
      %c0_93 = arith.constant 0 : index
      %164 = vector.load %arg8[%c0_91, %c0_92, %c0_93] : memref<4x8x1xf32, #tpu.memory_space<vmem>>, vector<4x8x1xf32>
      tpu.vector_store %arg8[%c0_91, %c0_92, %c0_93], %163 {strides = array<i32>} : memref<4x8x1xf32, #tpu.memory_space<vmem>>, vector<4x8x1xf32>,
      %cst_94 = arith.constant 0.000000e+00 : f32
      %165 = vector.broadcast %cst_94 : f32 to vector<4x8x1xf32>
      %c0_95 = arith.constant 0 : index
      %c0_96 = arith.constant 0 : index
      %c0_97 = arith.constant 0 : index
      %166 = vector.load %arg9[%c0_95, %c0_96, %c0_97] : memref<4x8x1xf32, #tpu.memory_space<vmem>>, vector<4x8x1xf32>
      tpu.vector_store %arg9[%c0_95, %c0_96, %c0_97], %165 {strides = array<i32>} : memref<4x8x1xf32, #tpu.memory_space<vmem>>, vector<4x8x1xf32>,
      %cst_98 = arith.constant 0.000000e+00 : f32
      %167 = vector.broadcast %cst_98 : f32 to vector<8x32xf32>
      %c0_99 = arith.constant 0 : index
      %c0_100 = arith.constant 0 : index
      %168 = vector.load %arg10[%c0_99, %c0_100] : memref<8x32xf32, #tpu.memory_space<vmem>>, vector<8x32xf32>
      tpu.vector_store %arg10[%c0_99, %c0_100], %167 {strides = array<i32>} : memref<8x32xf32, #tpu.memory_space<vmem>>, vector<8x32xf32>,
    } else {
    }
    %c0 = arith.constant 0 : index
    %c0_1 = arith.constant 0 : index
    %c0_2 = arith.constant 0 : index
    %3 = vector.load %arg3[%c0, %c0_1, %c0_2] : memref<1x8x32xf32, #tpu.memory_space<vmem>>, vector<1x8x32xf32>
    %4 = vector.shape_cast %3 : vector<1x8x32xf32> to vector<8x32xf32>
    %cst = arith.constant 0.353553385 : f32
    %5 = vector.broadcast %cst : f32 to vector<8x32xf32>
    %6 = arith.mulf %4, %5 : vector<8x32xf32>
    %7 = arith.truncf %6 : vector<8x32xf32> to vector<8x32xbf16>
    %c0_3 = arith.constant 0 : index
    %c0_4 = arith.constant 0 : index
    %c0_5 = arith.constant 0 : index
    %8 = vector.load %arg4[%c0_3, %c0_4, %c0_5] : memref<1x8x32xf32, #tpu.memory_space<vmem>>, vector<1x8x32xf32>
    %9 = vector.shape_cast %8 : vector<1x8x32xf32> to vector<8x32xf32>
    %10 = arith.truncf %9 : vector<8x32xf32> to vector<8x32xbf16>
    %c0_6 = arith.constant 0 : index
    %c0_7 = arith.constant 0 : index
    %c0_8 = arith.constant 0 : index
    %11 = vector.load %arg5[%c0_6, %c0_7, %c0_8] : memref<1x8x32xf32, #tpu.memory_space<vmem>>, vector<1x8x32xf32>
    %12 = vector.shape_cast %11 : vector<1x8x32xf32> to vector<8x32xf32>
    %13 = arith.truncf %12 : vector<8x32xf32> to vector<8x32xbf16>
    %c0_9 = arith.constant 0 : index
    %c0_10 = arith.constant 0 : index
    %c0_11 = arith.constant 0 : index
    %14 = vector.load %arg6[%c0_9, %c0_10, %c0_11] : memref<1x1x8xf32, #tpu.memory_space<vmem>>, vector<1x1x8xf32>
    %15 = vector.shape_cast %14 : vector<1x1x8xf32> to vector<1x8xf32>
    %cst_12 = arith.constant 1.000000e+00 : f32
    %16 = vector.broadcast %cst_12 : f32 to vector<1x8xf32>
    %17 = arith.subf %16, %15 : vector<1x8xf32>
    %cst_13 = arith.constant -1.000000e+09 : f32
    %18 = vector.broadcast %cst_13 : f32 to vector<1x8xf32>
    %19 = arith.mulf %17, %18 : vector<1x8xf32>
    %20 = vector.extract_strided_slice %7 {offsets = [0, 0], sizes = [8, 8], strides = [1, 1]} : vector<8x32xbf16> to vector<8x8xbf16>
    %21 = vector.extract_strided_slice %10 {offsets = [0, 0], sizes = [8, 8], strides = [1, 1]} : vector<8x32xbf16> to vector<8x8xbf16>
    %cst_14 = arith.constant dense<0.000000e+00> : vector<8x8xf32>
    %22 = tpu.matmul %20, %21, %cst_14 {dimension_numbers = #tpu.dot_dimension_numbers<[1], [1], [0], [0], [0, 0, 1, 0], [], []>} : vector<8x8xbf16>, vector<8x8xbf16>, vector<8x8xf32> -> vector<8x8xf32>
    %23 = vector.broadcast %19 : vector<1x8xf32> to vector<8x8xf32>
    %24 = arith.addf %22, %23 : vector<8x8xf32>
    %c0_15 = arith.constant 0 : index
    %c0_16 = arith.constant 0 : index
    %c0_17 = arith.constant 0 : index
    %25 = vector.load %arg8[%c0_15, %c0_16, %c0_17] : memref<4x8x1xf32, #tpu.memory_space<vmem>>, vector<1x8x1xf32>
    %26 = vector.shape_cast %25 : vector<1x8x1xf32> to vector<8x1xf32>
    %cst_18 = arith.constant dense<0xFF800000> : vector<8xf32>
    %27 = vector.multi_reduction <maximumf>, %24, %cst_18 [1] : vector<8x8xf32> to vector<8xf32>
    %28 = vector.shape_cast %27 : vector<8xf32> to vector<8x1xf32>
    %29 = arith.maximumf %26, %28 : vector<8x1xf32>
    %30 = arith.subf %26, %29 : vector<8x1xf32>
    %31 = math.exp %30 : vector<8x1xf32>
    %32 = vector.broadcast %29 : vector<8x1xf32> to vector<8x8xf32>
    %33 = arith.subf %24, %32 : vector<8x8xf32>
    %34 = math.exp %33 : vector<8x8xf32>
    %c0_19 = arith.constant 0 : index
    %c0_20 = arith.constant 0 : index
    %c0_21 = arith.constant 0 : index
    %35 = vector.load %arg9[%c0_19, %c0_20, %c0_21] : memref<4x8x1xf32, #tpu.memory_space<vmem>>, vector<1x8x1xf32>
    %36 = vector.shape_cast %35 : vector<1x8x1xf32> to vector<8x1xf32>
    %37 = arith.mulf %31, %36 : vector<8x1xf32>
    %cst_22 = arith.constant dense<0.000000e+00> : vector<8xf32>
    %38 = vector.multi_reduction <add>, %34, %cst_22 [1] : vector<8x8xf32> to vector<8xf32>
    %39 = vector.shape_cast %38 : vector<8xf32> to vector<8x1xf32>
    %40 = arith.addf %37, %39 : vector<8x1xf32>
    %c0_23 = arith.constant 0 : index
    %c0_24 = arith.constant 0 : index
    %c0_25 = arith.constant 0 : index
    %41 = vector.load %arg9[%c0_23, %c0_24, %c0_25] : memref<4x8x1xf32, #tpu.memory_space<vmem>>, vector<1x8x1xf32>
    %42 = vector.shape_cast %41 : vector<1x8x1xf32> to vector<8x1xf32>
    %43 = vector.shape_cast %40 : vector<8x1xf32> to vector<1x8x1xf32>
    tpu.vector_store %arg9[%c0_23, %c0_24, %c0_25], %43 {strides = array<i32>} : memref<4x8x1xf32, #tpu.memory_space<vmem>>, vector<1x8x1xf32>,
    %c0_26 = arith.constant 0 : index
    %c0_27 = arith.constant 0 : index
    %44 = vector.load %arg10[%c0_26, %c0_27] : memref<8x32xf32, #tpu.memory_space<vmem>>, vector<8x8xf32>
    %45 = vector.broadcast %31 : vector<8x1xf32> to vector<8x8xf32>
    %46 = arith.mulf %45, %44 : vector<8x8xf32>
    %47 = arith.truncf %34 : vector<8x8xf32> to vector<8x8xbf16>
    %48 = vector.extract_strided_slice %13 {offsets = [0, 0], sizes = [8, 8], strides = [1, 1]} : vector<8x32xbf16> to vector<8x8xbf16>
    %cst_28 = arith.constant dense<0.000000e+00> : vector<8x8xf32>
    %49 = tpu.matmul %47, %48, %cst_28 {dimension_numbers = #tpu.dot_dimension_numbers<[1], [0], [0], [1], [0, 0, 1, 1], [], []>} : vector<8x8xbf16>, vector<8x8xbf16>, vector<8x8xf32> -> vector<8x8xf32>
    %50 = arith.addf %46, %49 : vector<8x8xf32>
    %c0_29 = arith.constant 0 : index
    %c0_30 = arith.constant 0 : index
    %51 = vector.load %arg10[%c0_29, %c0_30] : memref<8x32xf32, #tpu.memory_space<vmem>>, vector<8x8xf32>
    tpu.vector_store %arg10[%c0_29, %c0_30], %50 {strides = array<i32>} : memref<8x32xf32, #tpu.memory_space<vmem>>, vector<8x8xf32>,
    %c0_31 = arith.constant 0 : index
    %c0_32 = arith.constant 0 : index
    %c0_33 = arith.constant 0 : index
    %52 = vector.load %arg8[%c0_31, %c0_32, %c0_33] : memref<4x8x1xf32, #tpu.memory_space<vmem>>, vector<1x8x1xf32>
    %53 = vector.shape_cast %52 : vector<1x8x1xf32> to vector<8x1xf32>
    %54 = vector.shape_cast %29 : vector<8x1xf32> to vector<1x8x1xf32>
    tpu.vector_store %arg8[%c0_31, %c0_32, %c0_33], %54 {strides = array<i32>} : memref<4x8x1xf32, #tpu.memory_space<vmem>>, vector<1x8x1xf32>,
    %55 = vector.extract_strided_slice %7 {offsets = [0, 8], sizes = [8, 8], strides = [1, 1]} : vector<8x32xbf16> to vector<8x8xbf16>
    %56 = vector.extract_strided_slice %10 {offsets = [0, 8], sizes = [8, 8], strides = [1, 1]} : vector<8x32xbf16> to vector<8x8xbf16>
    %cst_34 = arith.constant dense<0.000000e+00> : vector<8x8xf32>
    %57 = tpu.matmul %55, %56, %cst_34 {dimension_numbers = #tpu.dot_dimension_numbers<[1], [1], [0], [0], [0, 0, 1, 0], [], []>} : vector<8x8xbf16>, vector<8x8xbf16>, vector<8x8xf32> -> vector<8x8xf32>
    %58 = vector.broadcast %19 : vector<1x8xf32> to vector<8x8xf32>
    %59 = arith.addf %57, %58 : vector<8x8xf32>
    %c1 = arith.constant 1 : index
    %c0_35 = arith.constant 0 : index
    %c0_36 = arith.constant 0 : index
    %60 = vector.load %arg8[%c1, %c0_35, %c0_36] : memref<4x8x1xf32, #tpu.memory_space<vmem>>, vector<1x8x1xf32>
    %61 = vector.shape_cast %60 : vector<1x8x1xf32> to vector<8x1xf32>
    %cst_37 = arith.constant dense<0xFF800000> : vector<8xf32>
    %62 = vector.multi_reduction <maximumf>, %59, %cst_37 [1] : vector<8x8xf32> to vector<8xf32>
    %63 = vector.shape_cast %62 : vector<8xf32> to vector<8x1xf32>
    %64 = arith.maximumf %61, %63 : vector<8x1xf32>
    %65 = arith.subf %61, %64 : vector<8x1xf32>
    %66 = math.exp %65 : vector<8x1xf32>
    %67 = vector.broadcast %64 : vector<8x1xf32> to vector<8x8xf32>
    %68 = arith.subf %59, %67 : vector<8x8xf32>
    %69 = math.exp %68 : vector<8x8xf32>
    %c1_38 = arith.constant 1 : index
    %c0_39 = arith.constant 0 : index
    %c0_40 = arith.constant 0 : index
    %70 = vector.load %arg9[%c1_38, %c0_39, %c0_40] : memref<4x8x1xf32, #tpu.memory_space<vmem>>, vector<1x8x1xf32>
    %71 = vector.shape_cast %70 : vector<1x8x1xf32> to vector<8x1xf32>
    %72 = arith.mulf %66, %71 : vector<8x1xf32>
    %cst_41 = arith.constant dense<0.000000e+00> : vector<8xf32>
    %73 = vector.multi_reduction <add>, %69, %cst_41 [1] : vector<8x8xf32> to vector<8xf32>
    %74 = vector.shape_cast %73 : vector<8xf32> to vector<8x1xf32>
    %75 = arith.addf %72, %74 : vector<8x1xf32>
    %c1_42 = arith.constant 1 : index
    %c0_43 = arith.constant 0 : index
    %c0_44 = arith.constant 0 : index
    %76 = vector.load %arg9[%c1_42, %c0_43, %c0_44] : memref<4x8x1xf32, #tpu.memory_space<vmem>>, vector<1x8x1xf32>
    %77 = vector.shape_cast %76 : vector<1x8x1xf32> to vector<8x1xf32>
    %78 = vector.shape_cast %75 : vector<8x1xf32> to vector<1x8x1xf32>
    tpu.vector_store %arg9[%c1_42, %c0_43, %c0_44], %78 {strides = array<i32>} : memref<4x8x1xf32, #tpu.memory_space<vmem>>, vector<1x8x1xf32>,
    %c0_45 = arith.constant 0 : index
    %c8 = arith.constant 8 : index
    %79 = vector.load %arg10[%c0_45, %c8] : memref<8x32xf32, #tpu.memory_space<vmem>>, vector<8x8xf32>
    %80 = vector.broadcast %66 : vector<8x1xf32> to vector<8x8xf32>
    %81 = arith.mulf %80, %79 : vector<8x8xf32>
    %82 = arith.truncf %69 : vector<8x8xf32> to vector<8x8xbf16>
    %83 = vector.extract_strided_slice %13 {offsets = [0, 8], sizes = [8, 8], strides = [1, 1]} : vector<8x32xbf16> to vector<8x8xbf16>
    %cst_46 = arith.constant dense<0.000000e+00> : vector<8x8xf32>
    %84 = tpu.matmul %82, %83, %cst_46 {dimension_numbers = #tpu.dot_dimension_numbers<[1], [0], [0], [1], [0, 0, 1, 1], [], []>} : vector<8x8xbf16>, vector<8x8xbf16>, vector<8x8xf32> -> vector<8x8xf32>
    %85 = arith.addf %81, %84 : vector<8x8xf32>
    %c0_47 = arith.constant 0 : index
    %c8_48 = arith.constant 8 : index
    %86 = vector.load %arg10[%c0_47, %c8_48] : memref<8x32xf32, #tpu.memory_space<vmem>>, vector<8x8xf32>
    tpu.vector_store %arg10[%c0_47, %c8_48], %85 {strides = array<i32>} : memref<8x32xf32, #tpu.memory_space<vmem>>, vector<8x8xf32>,
    %c1_49 = arith.constant 1 : index
    %c0_50 = arith.constant 0 : index
    %c0_51 = arith.constant 0 : index
    %87 = vector.load %arg8[%c1_49, %c0_50, %c0_51] : memref<4x8x1xf32, #tpu.memory_space<vmem>>, vector<1x8x1xf32>
    %88 = vector.shape_cast %87 : vector<1x8x1xf32> to vector<8x1xf32>
    %89 = vector.shape_cast %64 : vector<8x1xf32> to vector<1x8x1xf32>
    tpu.vector_store %arg8[%c1_49, %c0_50, %c0_51], %89 {strides = array<i32>} : memref<4x8x1xf32, #tpu.memory_space<vmem>>, vector<1x8x1xf32>,
    %90 = vector.extract_strided_slice %7 {offsets = [0, 16], sizes = [8, 8], strides = [1, 1]} : vector<8x32xbf16> to vector<8x8xbf16>
    %91 = vector.extract_strided_slice %10 {offsets = [0, 16], sizes = [8, 8], strides = [1, 1]} : vector<8x32xbf16> to vector<8x8xbf16>
    %cst_52 = arith.constant dense<0.000000e+00> : vector<8x8xf32>
    %92 = tpu.matmul %90, %91, %cst_52 {dimension_numbers = #tpu.dot_dimension_numbers<[1], [1], [0], [0], [0, 0, 1, 0], [], []>} : vector<8x8xbf16>, vector<8x8xbf16>, vector<8x8xf32> -> vector<8x8xf32>
    %93 = vector.broadcast %19 : vector<1x8xf32> to vector<8x8xf32>
    %94 = arith.addf %92, %93 : vector<8x8xf32>
    %c2 = arith.constant 2 : index
    %c0_53 = arith.constant 0 : index
    %c0_54 = arith.constant 0 : index
    %95 = vector.load %arg8[%c2, %c0_53, %c0_54] : memref<4x8x1xf32, #tpu.memory_space<vmem>>, vector<1x8x1xf32>
    %96 = vector.shape_cast %95 : vector<1x8x1xf32> to vector<8x1xf32>
    %cst_55 = arith.constant dense<0xFF800000> : vector<8xf32>
    %97 = vector.multi_reduction <maximumf>, %94, %cst_55 [1] : vector<8x8xf32> to vector<8xf32>
    %98 = vector.shape_cast %97 : vector<8xf32> to vector<8x1xf32>
    %99 = arith.maximumf %96, %98 : vector<8x1xf32>
    %100 = arith.subf %96, %99 : vector<8x1xf32>
    %101 = math.exp %100 : vector<8x1xf32>
    %102 = vector.broadcast %99 : vector<8x1xf32> to vector<8x8xf32>
    %103 = arith.subf %94, %102 : vector<8x8xf32>
    %104 = math.exp %103 : vector<8x8xf32>
    %c2_56 = arith.constant 2 : index
    %c0_57 = arith.constant 0 : index
    %c0_58 = arith.constant 0 : index
    %105 = vector.load %arg9[%c2_56, %c0_57, %c0_58] : memref<4x8x1xf32, #tpu.memory_space<vmem>>, vector<1x8x1xf32>
    %106 = vector.shape_cast %105 : vector<1x8x1xf32> to vector<8x1xf32>
    %107 = arith.mulf %101, %106 : vector<8x1xf32>
    %cst_59 = arith.constant dense<0.000000e+00> : vector<8xf32>
    %108 = vector.multi_reduction <add>, %104, %cst_59 [1] : vector<8x8xf32> to vector<8xf32>
    %109 = vector.shape_cast %108 : vector<8xf32> to vector<8x1xf32>
    %110 = arith.addf %107, %109 : vector<8x1xf32>
    %c2_60 = arith.constant 2 : index
    %c0_61 = arith.constant 0 : index
    %c0_62 = arith.constant 0 : index
    %111 = vector.load %arg9[%c2_60, %c0_61, %c0_62] : memref<4x8x1xf32, #tpu.memory_space<vmem>>, vector<1x8x1xf32>
    %112 = vector.shape_cast %111 : vector<1x8x1xf32> to vector<8x1xf32>
    %113 = vector.shape_cast %110 : vector<8x1xf32> to vector<1x8x1xf32>
    tpu.vector_store %arg9[%c2_60, %c0_61, %c0_62], %113 {strides = array<i32>} : memref<4x8x1xf32, #tpu.memory_space<vmem>>, vector<1x8x1xf32>,
    %c0_63 = arith.constant 0 : index
    %c16 = arith.constant 16 : index
    %114 = vector.load %arg10[%c0_63, %c16] : memref<8x32xf32, #tpu.memory_space<vmem>>, vector<8x8xf32>
    %115 = vector.broadcast %101 : vector<8x1xf32> to vector<8x8xf32>
    %116 = arith.mulf %115, %114 : vector<8x8xf32>
    %117 = arith.truncf %104 : vector<8x8xf32> to vector<8x8xbf16>
    %118 = vector.extract_strided_slice %13 {offsets = [0, 16], sizes = [8, 8], strides = [1, 1]} : vector<8x32xbf16> to vector<8x8xbf16>
    %cst_64 = arith.constant dense<0.000000e+00> : vector<8x8xf32>
    %119 = tpu.matmul %117, %118, %cst_64 {dimension_numbers = #tpu.dot_dimension_numbers<[1], [0], [0], [1], [0, 0, 1, 1], [], []>} : vector<8x8xbf16>, vector<8x8xbf16>, vector<8x8xf32> -> vector<8x8xf32>
    %120 = arith.addf %116, %119 : vector<8x8xf32>
    %c0_65 = arith.constant 0 : index
    %c16_66 = arith.constant 16 : index
    %121 = vector.load %arg10[%c0_65, %c16_66] : memref<8x32xf32, #tpu.memory_space<vmem>>, vector<8x8xf32>
    tpu.vector_store %arg10[%c0_65, %c16_66], %120 {strides = array<i32>} : memref<8x32xf32, #tpu.memory_space<vmem>>, vector<8x8xf32>,
    %c2_67 = arith.constant 2 : index
    %c0_68 = arith.constant 0 : index
    %c0_69 = arith.constant 0 : index
    %122 = vector.load %arg8[%c2_67, %c0_68, %c0_69] : memref<4x8x1xf32, #tpu.memory_space<vmem>>, vector<1x8x1xf32>
    %123 = vector.shape_cast %122 : vector<1x8x1xf32> to vector<8x1xf32>
    %124 = vector.shape_cast %99 : vector<8x1xf32> to vector<1x8x1xf32>
    tpu.vector_store %arg8[%c2_67, %c0_68, %c0_69], %124 {strides = array<i32>} : memref<4x8x1xf32, #tpu.memory_space<vmem>>, vector<1x8x1xf32>,
    %125 = vector.extract_strided_slice %7 {offsets = [0, 24], sizes = [8, 8], strides = [1, 1]} : vector<8x32xbf16> to vector<8x8xbf16>
    %126 = vector.extract_strided_slice %10 {offsets = [0, 24], sizes = [8, 8], strides = [1, 1]} : vector<8x32xbf16> to vector<8x8xbf16>
    %cst_70 = arith.constant dense<0.000000e+00> : vector<8x8xf32>
    %127 = tpu.matmul %125, %126, %cst_70 {dimension_numbers = #tpu.dot_dimension_numbers<[1], [1], [0], [0], [0, 0, 1, 0], [], []>} : vector<8x8xbf16>, vector<8x8xbf16>, vector<8x8xf32> -> vector<8x8xf32>
    %128 = vector.broadcast %19 : vector<1x8xf32> to vector<8x8xf32>
    %129 = arith.addf %127, %128 : vector<8x8xf32>
    %c3 = arith.constant 3 : index
    %c0_71 = arith.constant 0 : index
    %c0_72 = arith.constant 0 : index
    %130 = vector.load %arg8[%c3, %c0_71, %c0_72] : memref<4x8x1xf32, #tpu.memory_space<vmem>>, vector<1x8x1xf32>
    %131 = vector.shape_cast %130 : vector<1x8x1xf32> to vector<8x1xf32>
    %cst_73 = arith.constant dense<0xFF800000> : vector<8xf32>
    %132 = vector.multi_reduction <maximumf>, %129, %cst_73 [1] : vector<8x8xf32> to vector<8xf32>
    %133 = vector.shape_cast %132 : vector<8xf32> to vector<8x1xf32>
    %134 = arith.maximumf %131, %133 : vector<8x1xf32>
    %135 = arith.subf %131, %134 : vector<8x1xf32>
    %136 = math.exp %135 : vector<8x1xf32>
    %137 = vector.broadcast %134 : vector<8x1xf32> to vector<8x8xf32>
    %138 = arith.subf %129, %137 : vector<8x8xf32>
    %139 = math.exp %138 : vector<8x8xf32>
    %c3_74 = arith.constant 3 : index
    %c0_75 = arith.constant 0 : index
    %c0_76 = arith.constant 0 : index
    %140 = vector.load %arg9[%c3_74, %c0_75, %c0_76] : memref<4x8x1xf32, #tpu.memory_space<vmem>>, vector<1x8x1xf32>
    %141 = vector.shape_cast %140 : vector<1x8x1xf32> to vector<8x1xf32>
    %142 = arith.mulf %136, %141 : vector<8x1xf32>
    %cst_77 = arith.constant dense<0.000000e+00> : vector<8xf32>
    %143 = vector.multi_reduction <add>, %139, %cst_77 [1] : vector<8x8xf32> to vector<8xf32>
    %144 = vector.shape_cast %143 : vector<8xf32> to vector<8x1xf32>
    %145 = arith.addf %142, %144 : vector<8x1xf32>
    %c3_78 = arith.constant 3 : index
    %c0_79 = arith.constant 0 : index
    %c0_80 = arith.constant 0 : index
    %146 = vector.load %arg9[%c3_78, %c0_79, %c0_80] : memref<4x8x1xf32, #tpu.memory_space<vmem>>, vector<1x8x1xf32>
    %147 = vector.shape_cast %146 : vector<1x8x1xf32> to vector<8x1xf32>
    %148 = vector.shape_cast %145 : vector<8x1xf32> to vector<1x8x1xf32>
    tpu.vector_store %arg9[%c3_78, %c0_79, %c0_80], %148 {strides = array<i32>} : memref<4x8x1xf32, #tpu.memory_space<vmem>>, vector<1x8x1xf32>,
    %c0_81 = arith.constant 0 : index
    %c24 = arith.constant 24 : index
    %149 = vector.load %arg10[%c0_81, %c24] : memref<8x32xf32, #tpu.memory_space<vmem>>, vector<8x8xf32>
    %150 = vector.broadcast %136 : vector<8x1xf32> to vector<8x8xf32>
    %151 = arith.mulf %150, %149 : vector<8x8xf32>
    %152 = arith.truncf %139 : vector<8x8xf32> to vector<8x8xbf16>
    %153 = vector.extract_strided_slice %13 {offsets = [0, 24], sizes = [8, 8], strides = [1, 1]} : vector<8x32xbf16> to vector<8x8xbf16>
    %cst_82 = arith.constant dense<0.000000e+00> : vector<8x8xf32>
    %154 = tpu.matmul %152, %153, %cst_82 {dimension_numbers = #tpu.dot_dimension_numbers<[1], [0], [0], [1], [0, 0, 1, 1], [], []>} : vector<8x8xbf16>, vector<8x8xbf16>, vector<8x8xf32> -> vector<8x8xf32>
    %155 = arith.addf %151, %154 : vector<8x8xf32>
    %c0_83 = arith.constant 0 : index
    %c24_84 = arith.constant 24 : index
    %156 = vector.load %arg10[%c0_83, %c24_84] : memref<8x32xf32, #tpu.memory_space<vmem>>, vector<8x8xf32>
    tpu.vector_store %arg10[%c0_83, %c24_84], %155 {strides = array<i32>} : memref<8x32xf32, #tpu.memory_space<vmem>>, vector<8x8xf32>,
    %c3_85 = arith.constant 3 : index
    %c0_86 = arith.constant 0 : index
    %c0_87 = arith.constant 0 : index
    %157 = vector.load %arg8[%c3_85, %c0_86, %c0_87] : memref<4x8x1xf32, #tpu.memory_space<vmem>>, vector<1x8x1xf32>
    %158 = vector.shape_cast %157 : vector<1x8x1xf32> to vector<8x1xf32>
    %159 = vector.shape_cast %134 : vector<8x1xf32> to vector<1x8x1xf32>
    tpu.vector_store %arg8[%c3_85, %c0_86, %c0_87], %159 {strides = array<i32>} : memref<4x8x1xf32, #tpu.memory_space<vmem>>, vector<1x8x1xf32>,
    %c0_i32_88 = arith.constant 0 : i32
    %160 = arith.cmpi eq, %arg2, %c0_i32_88 : i32
    %161 = arith.extui %160 : i1 to i32
    %c0_i32_89 = arith.constant 0 : i32
    %162 = arith.cmpi ne, %161, %c0_i32_89 : i32
    scf.if %162 {
      %c0_90 = arith.constant 0 : index
      %c0_91 = arith.constant 0 : index
      %163 = vector.load %arg10[%c0_90, %c0_91] : memref<8x32xf32, #tpu.memory_space<vmem>>, vector<8x8xf32>
      %c0_92 = arith.constant 0 : index
      %c0_93 = arith.constant 0 : index
      %c0_94 = arith.constant 0 : index
      %164 = vector.load %arg9[%c0_92, %c0_93, %c0_94] : memref<4x8x1xf32, #tpu.memory_space<vmem>>, vector<1x8x1xf32>
      %165 = vector.shape_cast %164 : vector<1x8x1xf32> to vector<8x1xf32>
      %166 = tpu.reciprocal %165 {approx = true} : vector<8x1xf32> -> vector<8x1xf32>
      %167 = vector.broadcast %166 : vector<8x1xf32> to vector<8x8xf32>
      %168 = arith.mulf %163, %167 : vector<8x8xf32>
      %c0_95 = arith.constant 0 : index
      %c0_96 = arith.constant 0 : index
      %169 = vector.load %arg10[%c0_95, %c0_96] : memref<8x32xf32, #tpu.memory_space<vmem>>, vector<8x8xf32>
      tpu.vector_store %arg10[%c0_95, %c0_96], %168 {strides = array<i32>} : memref<8x32xf32, #tpu.memory_space<vmem>>, vector<8x8xf32>,
      %c0_97 = arith.constant 0 : index
      %c8_98 = arith.constant 8 : index
      %170 = vector.load %arg10[%c0_97, %c8_98] : memref<8x32xf32, #tpu.memory_space<vmem>>, vector<8x8xf32>
      %c1_99 = arith.constant 1 : index
      %c0_100 = arith.constant 0 : index
      %c0_101 = arith.constant 0 : index
      %171 = vector.load %arg9[%c1_99, %c0_100, %c0_101] : memref<4x8x1xf32, #tpu.memory_space<vmem>>, vector<1x8x1xf32>
      %172 = vector.shape_cast %171 : vector<1x8x1xf32> to vector<8x1xf32>
      %173 = tpu.reciprocal %172 {approx = true} : vector<8x1xf32> -> vector<8x1xf32>
      %174 = vector.broadcast %173 : vector<8x1xf32> to vector<8x8xf32>
      %175 = arith.mulf %170, %174 : vector<8x8xf32>
      %c0_102 = arith.constant 0 : index
      %c8_103 = arith.constant 8 : index
      %176 = vector.load %arg10[%c0_102, %c8_103] : memref<8x32xf32, #tpu.memory_space<vmem>>, vector<8x8xf32>
      tpu.vector_store %arg10[%c0_102, %c8_103], %175 {strides = array<i32>} : memref<8x32xf32, #tpu.memory_space<vmem>>, vector<8x8xf32>,
      %c0_104 = arith.constant 0 : index
      %c16_105 = arith.constant 16 : index
      %177 = vector.load %arg10[%c0_104, %c16_105] : memref<8x32xf32, #tpu.memory_space<vmem>>, vector<8x8xf32>
      %c2_106 = arith.constant 2 : index
      %c0_107 = arith.constant 0 : index
      %c0_108 = arith.constant 0 : index
      %178 = vector.load %arg9[%c2_106, %c0_107, %c0_108] : memref<4x8x1xf32, #tpu.memory_space<vmem>>, vector<1x8x1xf32>
      %179 = vector.shape_cast %178 : vector<1x8x1xf32> to vector<8x1xf32>
      %180 = tpu.reciprocal %179 {approx = true} : vector<8x1xf32> -> vector<8x1xf32>
      %181 = vector.broadcast %180 : vector<8x1xf32> to vector<8x8xf32>
      %182 = arith.mulf %177, %181 : vector<8x8xf32>
      %c0_109 = arith.constant 0 : index
      %c16_110 = arith.constant 16 : index
      %183 = vector.load %arg10[%c0_109, %c16_110] : memref<8x32xf32, #tpu.memory_space<vmem>>, vector<8x8xf32>
      tpu.vector_store %arg10[%c0_109, %c16_110], %182 {strides = array<i32>} : memref<8x32xf32, #tpu.memory_space<vmem>>, vector<8x8xf32>,
      %c0_111 = arith.constant 0 : index
      %c24_112 = arith.constant 24 : index
      %184 = vector.load %arg10[%c0_111, %c24_112] : memref<8x32xf32, #tpu.memory_space<vmem>>, vector<8x8xf32>
      %c3_113 = arith.constant 3 : index
      %c0_114 = arith.constant 0 : index
      %c0_115 = arith.constant 0 : index
      %185 = vector.load %arg9[%c3_113, %c0_114, %c0_115] : memref<4x8x1xf32, #tpu.memory_space<vmem>>, vector<1x8x1xf32>
      %186 = vector.shape_cast %185 : vector<1x8x1xf32> to vector<8x1xf32>
      %187 = tpu.reciprocal %186 {approx = true} : vector<8x1xf32> -> vector<8x1xf32>
      %188 = vector.broadcast %187 : vector<8x1xf32> to vector<8x8xf32>
      %189 = arith.mulf %184, %188 : vector<8x8xf32>
      %c0_116 = arith.constant 0 : index
      %c24_117 = arith.constant 24 : index
      %190 = vector.load %arg10[%c0_116, %c24_117] : memref<8x32xf32, #tpu.memory_space<vmem>>, vector<8x8xf32>
      tpu.vector_store %arg10[%c0_116, %c24_117], %189 {strides = array<i32>} : memref<8x32xf32, #tpu.memory_space<vmem>>, vector<8x8xf32>,
      %c0_118 = arith.constant 0 : index
      %c0_119 = arith.constant 0 : index
      %191 = vector.load %arg10[%c0_118, %c0_119] : memref<8x32xf32, #tpu.memory_space<vmem>>, vector<8x32xf32>
      %c0_120 = arith.constant 0 : index
      %c0_121 = arith.constant 0 : index
      %c0_122 = arith.constant 0 : index
      %192 = vector.load %arg7[%c0_120, %c0_121, %c0_122] : memref<1x8x32xf32, #tpu.memory_space<vmem>>, vector<1x8x32xf32>
      %193 = vector.shape_cast %192 : vector<1x8x32xf32> to vector<8x32xf32>
      %194 = vector.shape_cast %191 : vector<8x32xf32> to vector<1x8x32xf32>
      tpu.vector_store %arg7[%c0_120, %c0_121, %c0_122], %194 {strides = array<i32>} : memref<1x8x32xf32, #tpu.memory_space<vmem>>, vector<1x8x32xf32>,
    } else {
    }
    return
  }
  func.func @transform_0(%arg0: i32, %arg1: i32, %arg2: i32) -> (i32, i32, i32) {
    %c0_i32 = arith.constant 0 : i32
    %c0_i32_0 = arith.constant 0 : i32
    return %arg0, %arg1, %c0_i32 : i32, i32, i32
  }
  func.func @transform_1(%arg0: i32, %arg1: i32, %arg2: i32) -> (i32, i32, i32) {
    %c0_i32 = arith.constant 0 : i32
    %c0_i32_0 = arith.constant 0 : i32
    return %arg0, %arg2, %c0_i32 : i32, i32, i32
  }
  func.func @transform_2(%arg0: i32, %arg1: i32, %arg2: i32) -> (i32, i32, i32) {
    %c0_i32 = arith.constant 0 : i32
    %c0_i32_0 = arith.constant 0 : i32
    return %arg0, %arg2, %c0_i32 : i32, i32, i32
  }
  func.func @transform_3(%arg0: i32, %arg1: i32, %arg2: i32) -> (i32, i32, i32) {
    %c0_i32 = arith.constant 0 : i32
    %c0_i32_0 = arith.constant 0 : i32
    return %arg0, %c0_i32, %arg2 : i32, i32, i32
  }
  func.func @transform_4(%arg0: i32, %arg1: i32, %arg2: i32) -> (i32, i32, i32) {
    %c0_i32 = arith.constant 0 : i32
    %c0_i32_0 = arith.constant 0 : i32
    return %arg0, %arg1, %c0_i32 : i32, i32, i32
  }
}

module attributes {stable_mosaic.version = 11 : i64} {
  func.func @_linear_kernel(%arg0: i32, %arg1: i32, %arg2: i32, %arg3: memref<16x128xf32, #tpu.memory_space<vmem>>, %arg4: memref<128x128xbf16, #tpu.memory_space<vmem>>, %arg5: memref<1x128xf32, #tpu.memory_space<vmem>>, %arg6: memref<16x128xf32, #tpu.memory_space<vmem>>, %arg7: memref<16x128xf32, #tpu.memory_space<vmem>>) attributes {dimension_semantics = [#tpu.dimension_semantics<parallel>, #tpu.dimension_semantics<parallel>, #tpu.dimension_semantics<arbitrary>], iteration_bounds = array<i64: 1, 1, 1>, scalar_prefetch = 0 : i64, scratch_operands = 1 : i64, tpu.core_type = #tpu.core_type<tc>, window_params = [{transform_indices = @transform_0, window_bounds = array<i64: 16, 128>}, {transform_indices = @transform_1, window_bounds = array<i64: 128, 128>}, {transform_indices = @transform_2, window_bounds = array<i64: 1, 128>}, {transform_indices = @transform_3, window_bounds = array<i64: 16, 128>}]} {
    %c0_i32 = arith.constant 0 : i32
    %0 = arith.cmpi eq, %arg2, %c0_i32 : i32
    %1 = arith.extui %0 : i1 to i32
    %c0_i32_0 = arith.constant 0 : i32
    %2 = arith.cmpi ne, %1, %c0_i32_0 : i32
    scf.if %2 {
      %cst_10 = arith.constant 0.000000e+00 : f32
      %13 = vector.broadcast %cst_10 : f32 to vector<16x128xf32>
      %c0_11 = arith.constant 0 : index
      %c0_12 = arith.constant 0 : index
      %14 = vector.load %arg7[%c0_11, %c0_12] : memref<16x128xf32, #tpu.memory_space<vmem>>, vector<16x128xf32>
      tpu.vector_store %arg7[%c0_11, %c0_12], %13 {strides = array<i32>} : memref<16x128xf32, #tpu.memory_space<vmem>>, vector<16x128xf32>,
    } else {
    }
    %c0 = arith.constant 0 : index
    %c0_1 = arith.constant 0 : index
    %3 = vector.load %arg7[%c0, %c0_1] : memref<16x128xf32, #tpu.memory_space<vmem>>, vector<16x128xf32>
    %c0_2 = arith.constant 0 : index
    %c0_3 = arith.constant 0 : index
    %4 = vector.load %arg3[%c0_2, %c0_3] : memref<16x128xf32, #tpu.memory_space<vmem>>, vector<16x128xf32>
    %5 = arith.truncf %4 : vector<16x128xf32> to vector<16x128xbf16>
    %c0_4 = arith.constant 0 : index
    %c0_5 = arith.constant 0 : index
    %6 = vector.load %arg4[%c0_4, %c0_5] : memref<128x128xbf16, #tpu.memory_space<vmem>>, vector<128x128xbf16>
    %cst = arith.constant dense<0.000000e+00> : vector<16x128xf32>
    %7 = tpu.matmul %5, %6, %cst {dimension_numbers = #tpu.dot_dimension_numbers<[1], [0], [0], [1], [0, 0, 1, 1], [], []>} : vector<16x128xbf16>, vector<128x128xbf16>, vector<16x128xf32> -> vector<16x128xf32>
    %8 = arith.addf %3, %7 : vector<16x128xf32>
    %c0_6 = arith.constant 0 : index
    %c0_7 = arith.constant 0 : index
    %9 = vector.load %arg7[%c0_6, %c0_7] : memref<16x128xf32, #tpu.memory_space<vmem>>, vector<16x128xf32>
    tpu.vector_store %arg7[%c0_6, %c0_7], %8 {strides = array<i32>} : memref<16x128xf32, #tpu.memory_space<vmem>>, vector<16x128xf32>,
    %c0_i32_8 = arith.constant 0 : i32
    %10 = arith.cmpi eq, %arg2, %c0_i32_8 : i32
    %11 = arith.extui %10 : i1 to i32
    %c0_i32_9 = arith.constant 0 : i32
    %12 = arith.cmpi ne, %11, %c0_i32_9 : i32
    scf.if %12 {
      %c0_10 = arith.constant 0 : index
      %c0_11 = arith.constant 0 : index
      %13 = vector.load %arg7[%c0_10, %c0_11] : memref<16x128xf32, #tpu.memory_space<vmem>>, vector<16x128xf32>
      %c0_12 = arith.constant 0 : index
      %c0_13 = arith.constant 0 : index
      %14 = vector.load %arg5[%c0_12, %c0_13] : memref<1x128xf32, #tpu.memory_space<vmem>>, vector<1x128xf32>
      %15 = vector.broadcast %14 : vector<1x128xf32> to vector<16x128xf32>
      %16 = arith.addf %13, %15 : vector<16x128xf32>
      %17 = arith.mulf %16, %16 : vector<16x128xf32>
      %18 = arith.mulf %16, %17 : vector<16x128xf32>
      %cst_14 = arith.constant 4.471500e-02 : f32
      %19 = vector.broadcast %cst_14 : f32 to vector<16x128xf32>
      %20 = arith.mulf %19, %18 : vector<16x128xf32>
      %21 = arith.addf %16, %20 : vector<16x128xf32>
      %cst_15 = arith.constant 0.797884583 : f32
      %22 = vector.broadcast %cst_15 : f32 to vector<16x128xf32>
      %23 = arith.mulf %22, %21 : vector<16x128xf32>
      %24 = math.tanh %23 : vector<16x128xf32>
      %cst_16 = arith.constant 1.000000e+00 : f32
      %25 = vector.broadcast %cst_16 : f32 to vector<16x128xf32>
      %26 = arith.addf %25, %24 : vector<16x128xf32>
      %cst_17 = arith.constant 5.000000e-01 : f32
      %27 = vector.broadcast %cst_17 : f32 to vector<16x128xf32>
      %28 = arith.mulf %27, %26 : vector<16x128xf32>
      %29 = arith.mulf %16, %28 : vector<16x128xf32>
      %c0_18 = arith.constant 0 : index
      %c0_19 = arith.constant 0 : index
      %30 = vector.load %arg6[%c0_18, %c0_19] : memref<16x128xf32, #tpu.memory_space<vmem>>, vector<16x128xf32>
      tpu.vector_store %arg6[%c0_18, %c0_19], %29 {strides = array<i32>} : memref<16x128xf32, #tpu.memory_space<vmem>>, vector<16x128xf32>,
    } else {
    }
    return
  }
  func.func @transform_0(%arg0: i32, %arg1: i32, %arg2: i32) -> (i32, i32) {
    %c0_i32 = arith.constant 0 : i32
    return %arg0, %arg2 : i32, i32
  }
  func.func @transform_1(%arg0: i32, %arg1: i32, %arg2: i32) -> (i32, i32) {
    %c0_i32 = arith.constant 0 : i32
    return %arg2, %arg1 : i32, i32
  }
  func.func @transform_2(%arg0: i32, %arg1: i32, %arg2: i32) -> (i32, i32) {
    %c0_i32 = arith.constant 0 : i32
    %c0_i32_0 = arith.constant 0 : i32
    return %c0_i32, %arg1 : i32, i32
  }
  func.func @transform_3(%arg0: i32, %arg1: i32, %arg2: i32) -> (i32, i32) {
    %c0_i32 = arith.constant 0 : i32
    return %arg0, %arg1 : i32, i32
  }
}

module attributes {stable_mosaic.version = 11 : i64} {
  func.func @_linear_kernel(%arg0: i32, %arg1: i32, %arg2: i32, %arg3: memref<16x128xf32, #tpu.memory_space<vmem>>, %arg4: memref<128x128xbf16, #tpu.memory_space<vmem>>, %arg5: memref<1x128xf32, #tpu.memory_space<vmem>>, %arg6: memref<16x128xf32, #tpu.memory_space<vmem>>, %arg7: memref<16x128xf32, #tpu.memory_space<vmem>>, %arg8: memref<16x128xf32, #tpu.memory_space<vmem>>) attributes {dimension_semantics = [#tpu.dimension_semantics<parallel>, #tpu.dimension_semantics<parallel>, #tpu.dimension_semantics<arbitrary>], iteration_bounds = array<i64: 1, 1, 1>, scalar_prefetch = 0 : i64, scratch_operands = 1 : i64, tpu.core_type = #tpu.core_type<tc>, window_params = [{transform_indices = @transform_0, window_bounds = array<i64: 16, 128>}, {transform_indices = @transform_1, window_bounds = array<i64: 128, 128>}, {transform_indices = @transform_2, window_bounds = array<i64: 1, 128>}, {transform_indices = @transform_3, window_bounds = array<i64: 16, 128>}, {transform_indices = @transform_4, window_bounds = array<i64: 16, 128>}]} {
    %c0_i32 = arith.constant 0 : i32
    %0 = arith.cmpi eq, %arg2, %c0_i32 : i32
    %1 = arith.extui %0 : i1 to i32
    %c0_i32_0 = arith.constant 0 : i32
    %2 = arith.cmpi ne, %1, %c0_i32_0 : i32
    scf.if %2 {
      %cst_10 = arith.constant 0.000000e+00 : f32
      %13 = vector.broadcast %cst_10 : f32 to vector<16x128xf32>
      %c0_11 = arith.constant 0 : index
      %c0_12 = arith.constant 0 : index
      %14 = vector.load %arg8[%c0_11, %c0_12] : memref<16x128xf32, #tpu.memory_space<vmem>>, vector<16x128xf32>
      tpu.vector_store %arg8[%c0_11, %c0_12], %13 {strides = array<i32>} : memref<16x128xf32, #tpu.memory_space<vmem>>, vector<16x128xf32>,
    } else {
    }
    %c0 = arith.constant 0 : index
    %c0_1 = arith.constant 0 : index
    %3 = vector.load %arg8[%c0, %c0_1] : memref<16x128xf32, #tpu.memory_space<vmem>>, vector<16x128xf32>
    %c0_2 = arith.constant 0 : index
    %c0_3 = arith.constant 0 : index
    %4 = vector.load %arg3[%c0_2, %c0_3] : memref<16x128xf32, #tpu.memory_space<vmem>>, vector<16x128xf32>
    %5 = arith.truncf %4 : vector<16x128xf32> to vector<16x128xbf16>
    %c0_4 = arith.constant 0 : index
    %c0_5 = arith.constant 0 : index
    %6 = vector.load %arg4[%c0_4, %c0_5] : memref<128x128xbf16, #tpu.memory_space<vmem>>, vector<128x128xbf16>
    %cst = arith.constant dense<0.000000e+00> : vector<16x128xf32>
    %7 = tpu.matmul %5, %6, %cst {dimension_numbers = #tpu.dot_dimension_numbers<[1], [0], [0], [1], [0, 0, 1, 1], [], []>} : vector<16x128xbf16>, vector<128x128xbf16>, vector<16x128xf32> -> vector<16x128xf32>
    %8 = arith.addf %3, %7 : vector<16x128xf32>
    %c0_6 = arith.constant 0 : index
    %c0_7 = arith.constant 0 : index
    %9 = vector.load %arg8[%c0_6, %c0_7] : memref<16x128xf32, #tpu.memory_space<vmem>>, vector<16x128xf32>
    tpu.vector_store %arg8[%c0_6, %c0_7], %8 {strides = array<i32>} : memref<16x128xf32, #tpu.memory_space<vmem>>, vector<16x128xf32>,
    %c0_i32_8 = arith.constant 0 : i32
    %10 = arith.cmpi eq, %arg2, %c0_i32_8 : i32
    %11 = arith.extui %10 : i1 to i32
    %c0_i32_9 = arith.constant 0 : i32
    %12 = arith.cmpi ne, %11, %c0_i32_9 : i32
    scf.if %12 {
      %c0_10 = arith.constant 0 : index
      %c0_11 = arith.constant 0 : index
      %13 = vector.load %arg8[%c0_10, %c0_11] : memref<16x128xf32, #tpu.memory_space<vmem>>, vector<16x128xf32>
      %c0_12 = arith.constant 0 : index
      %c0_13 = arith.constant 0 : index
      %14 = vector.load %arg5[%c0_12, %c0_13] : memref<1x128xf32, #tpu.memory_space<vmem>>, vector<1x128xf32>
      %15 = vector.broadcast %14 : vector<1x128xf32> to vector<16x128xf32>
      %16 = arith.addf %13, %15 : vector<16x128xf32>
      %c0_14 = arith.constant 0 : index
      %c0_15 = arith.constant 0 : index
      %17 = vector.load %arg6[%c0_14, %c0_15] : memref<16x128xf32, #tpu.memory_space<vmem>>, vector<16x128xf32>
      %18 = arith.addf %16, %17 : vector<16x128xf32>
      %c0_16 = arith.constant 0 : index
      %c0_17 = arith.constant 0 : index
      %19 = vector.load %arg7[%c0_16, %c0_17] : memref<16x128xf32, #tpu.memory_space<vmem>>, vector<16x128xf32>
      tpu.vector_store %arg7[%c0_16, %c0_17], %18 {strides = array<i32>} : memref<16x128xf32, #tpu.memory_space<vmem>>, vector<16x128xf32>,
    } else {
    }
    return
  }
  func.func @transform_0(%arg0: i32, %arg1: i32, %arg2: i32) -> (i32, i32) {
    %c0_i32 = arith.constant 0 : i32
    return %arg0, %arg2 : i32, i32
  }
  func.func @transform_1(%arg0: i32, %arg1: i32, %arg2: i32) -> (i32, i32) {
    %c0_i32 = arith.constant 0 : i32
    return %arg2, %arg1 : i32, i32
  }
  func.func @transform_2(%arg0: i32, %arg1: i32, %arg2: i32) -> (i32, i32) {
    %c0_i32 = arith.constant 0 : i32
    %c0_i32_0 = arith.constant 0 : i32
    return %c0_i32, %arg1 : i32, i32
  }
  func.func @transform_3(%arg0: i32, %arg1: i32, %arg2: i32) -> (i32, i32) {
    %c0_i32 = arith.constant 0 : i32
    return %arg0, %arg1 : i32, i32
  }
  func.func @transform_4(%arg0: i32, %arg1: i32, %arg2: i32) -> (i32, i32) {
    %c0_i32 = arith.constant 0 : i32
    return %arg0, %arg1 : i32, i32
  }
}

module attributes {stable_mosaic.version = 11 : i64} {
  func.func @_layernorm_kernel(%arg0: i32, %arg1: memref<16x32xf32, #tpu.memory_space<vmem>>, %arg2: memref<16x32xf32, #tpu.memory_space<vmem>>, %arg3: memref<1x32xf32, #tpu.memory_space<vmem>>, %arg4: memref<1x32xf32, #tpu.memory_space<vmem>>, %arg5: memref<16x32xf32, #tpu.memory_space<vmem>>) attributes {dimension_semantics = [#tpu.dimension_semantics<parallel>], iteration_bounds = array<i64: 1>, scalar_prefetch = 0 : i64, scratch_operands = 0 : i64, tpu.core_type = #tpu.core_type<tc>, window_params = [{transform_indices = @transform_0, window_bounds = array<i64: 16, 32>}, {transform_indices = @transform_1, window_bounds = array<i64: 16, 32>}, {pipeline_mode = #tpu.pipeline_mode<synchronous>, transform_indices = @transform_2, window_bounds = array<i64: 1, 32>}, {pipeline_mode = #tpu.pipeline_mode<synchronous>, transform_indices = @transform_3, window_bounds = array<i64: 1, 32>}, {transform_indices = @transform_4, window_bounds = array<i64: 16, 32>}]} {
    %c0 = arith.constant 0 : index
    %c0_0 = arith.constant 0 : index
    %0 = vector.load %arg1[%c0, %c0_0] : memref<16x32xf32, #tpu.memory_space<vmem>>, vector<16x32xf32>
    %c0_1 = arith.constant 0 : index
    %c0_2 = arith.constant 0 : index
    %1 = vector.load %arg2[%c0_1, %c0_2] : memref<16x32xf32, #tpu.memory_space<vmem>>, vector<16x32xf32>
    %2 = arith.addf %0, %1 : vector<16x32xf32>
    %cst = arith.constant dense<0.000000e+00> : vector<16xf32>
    %3 = vector.multi_reduction <add>, %2, %cst [1] : vector<16x32xf32> to vector<16xf32>
    %4 = vector.shape_cast %3 : vector<16xf32> to vector<16x1xf32>
    %cst_3 = arith.constant 3.200000e+01 : f32
    %5 = vector.broadcast %cst_3 : f32 to vector<16x1xf32>
    %6 = arith.divf %4, %5 : vector<16x1xf32>
    %7 = vector.broadcast %6 : vector<16x1xf32> to vector<16x32xf32>
    %8 = arith.subf %2, %7 : vector<16x32xf32>
    %9 = arith.mulf %8, %8 : vector<16x32xf32>
    %cst_4 = arith.constant dense<0.000000e+00> : vector<16xf32>
    %10 = vector.multi_reduction <add>, %9, %cst_4 [1] : vector<16x32xf32> to vector<16xf32>
    %11 = vector.shape_cast %10 : vector<16xf32> to vector<16x1xf32>
    %cst_5 = arith.constant 3.200000e+01 : f32
    %12 = vector.broadcast %cst_5 : f32 to vector<16x1xf32>
    %13 = arith.divf %11, %12 : vector<16x1xf32>
    %cst_6 = arith.constant 9.99999996E-13 : f32
    %14 = vector.broadcast %cst_6 : f32 to vector<16x1xf32>
    %15 = arith.addf %13, %14 : vector<16x1xf32>
    %16 = math.rsqrt %15 : vector<16x1xf32>
    %17 = vector.broadcast %6 : vector<16x1xf32> to vector<16x32xf32>
    %18 = arith.subf %2, %17 : vector<16x32xf32>
    %19 = vector.broadcast %16 : vector<16x1xf32> to vector<16x32xf32>
    %20 = arith.mulf %18, %19 : vector<16x32xf32>
    %c0_7 = arith.constant 0 : index
    %c0_8 = arith.constant 0 : index
    %21 = vector.load %arg3[%c0_7, %c0_8] : memref<1x32xf32, #tpu.memory_space<vmem>>, vector<1x32xf32>
    %22 = vector.broadcast %21 : vector<1x32xf32> to vector<16x32xf32>
    %23 = arith.mulf %20, %22 : vector<16x32xf32>
    %c0_9 = arith.constant 0 : index
    %c0_10 = arith.constant 0 : index
    %24 = vector.load %arg4[%c0_9, %c0_10] : memref<1x32xf32, #tpu.memory_space<vmem>>, vector<1x32xf32>
    %25 = vector.broadcast %24 : vector<1x32xf32> to vector<16x32xf32>
    %26 = arith.addf %23, %25 : vector<16x32xf32>
    %c0_11 = arith.constant 0 : index
    %c0_12 = arith.constant 0 : index
    %27 = vector.load %arg5[%c0_11, %c0_12] : memref<16x32xf32, #tpu.memory_space<vmem>>, vector<16x32xf32>
    tpu.vector_store %arg5[%c0_11, %c0_12], %26 {strides = array<i32>} : memref<16x32xf32, #tpu.memory_space<vmem>>, vector<16x32xf32>,
    return
  }
  func.func @transform_0(%arg0: i32) -> (i32, i32) {
    %c0_i32 = arith.constant 0 : i32
    %c0_i32_0 = arith.constant 0 : i32
    return %arg0, %c0_i32 : i32, i32
  }
  func.func @transform_1(%arg0: i32) -> (i32, i32) {
    %c0_i32 = arith.constant 0 : i32
    %c0_i32_0 = arith.constant 0 : i32
    return %arg0, %c0_i32 : i32, i32
  }
  func.func @transform_2(%arg0: i32) -> (i32, i32) {
    %c0_i32 = arith.constant 0 : i32
    %c0_i32_0 = arith.constant 0 : i32
    %c0_i32_1 = arith.constant 0 : i32
    return %c0_i32, %c0_i32_0 : i32, i32
  }
  func.func @transform_3(%arg0: i32) -> (i32, i32) {
    %c0_i32 = arith.constant 0 : i32
    %c0_i32_0 = arith.constant 0 : i32
    %c0_i32_1 = arith.constant 0 : i32
    return %c0_i32, %c0_i32_0 : i32, i32
  }
  func.func @transform_4(%arg0: i32) -> (i32, i32) {
    %c0_i32 = arith.constant 0 : i32
    %c0_i32_0 = arith.constant 0 : i32
    return %arg0, %c0_i32 : i32, i32
  }
}

module attributes {stable_mosaic.version = 11 : i64} {
  func.func @_layernorm_kernel(%arg0: i32, %arg1: memref<16x32xf32, #tpu.memory_space<vmem>>, %arg2: memref<1x32xf32, #tpu.memory_space<vmem>>, %arg3: memref<1x32xf32, #tpu.memory_space<vmem>>, %arg4: memref<16x32xf32, #tpu.memory_space<vmem>>) attributes {dimension_semantics = [#tpu.dimension_semantics<parallel>], iteration_bounds = array<i64: 1>, scalar_prefetch = 0 : i64, scratch_operands = 0 : i64, tpu.core_type = #tpu.core_type<tc>, window_params = [{transform_indices = @transform_0, window_bounds = array<i64: 16, 32>}, {pipeline_mode = #tpu.pipeline_mode<synchronous>, transform_indices = @transform_1, window_bounds = array<i64: 1, 32>}, {pipeline_mode = #tpu.pipeline_mode<synchronous>, transform_indices = @transform_2, window_bounds = array<i64: 1, 32>}, {transform_indices = @transform_3, window_bounds = array<i64: 16, 32>}]} {
    %c0 = arith.constant 0 : index
    %c0_0 = arith.constant 0 : index
    %0 = vector.load %arg1[%c0, %c0_0] : memref<16x32xf32, #tpu.memory_space<vmem>>, vector<16x32xf32>
    %cst = arith.constant dense<0.000000e+00> : vector<16xf32>
    %1 = vector.multi_reduction <add>, %0, %cst [1] : vector<16x32xf32> to vector<16xf32>
    %2 = vector.shape_cast %1 : vector<16xf32> to vector<16x1xf32>
    %cst_1 = arith.constant 3.200000e+01 : f32
    %3 = vector.broadcast %cst_1 : f32 to vector<16x1xf32>
    %4 = arith.divf %2, %3 : vector<16x1xf32>
    %5 = vector.broadcast %4 : vector<16x1xf32> to vector<16x32xf32>
    %6 = arith.subf %0, %5 : vector<16x32xf32>
    %7 = arith.mulf %6, %6 : vector<16x32xf32>
    %cst_2 = arith.constant dense<0.000000e+00> : vector<16xf32>
    %8 = vector.multi_reduction <add>, %7, %cst_2 [1] : vector<16x32xf32> to vector<16xf32>
    %9 = vector.shape_cast %8 : vector<16xf32> to vector<16x1xf32>
    %cst_3 = arith.constant 3.200000e+01 : f32
    %10 = vector.broadcast %cst_3 : f32 to vector<16x1xf32>
    %11 = arith.divf %9, %10 : vector<16x1xf32>
    %cst_4 = arith.constant 9.99999996E-13 : f32
    %12 = vector.broadcast %cst_4 : f32 to vector<16x1xf32>
    %13 = arith.addf %11, %12 : vector<16x1xf32>
    %14 = math.rsqrt %13 : vector<16x1xf32>
    %15 = vector.broadcast %4 : vector<16x1xf32> to vector<16x32xf32>
    %16 = arith.subf %0, %15 : vector<16x32xf32>
    %17 = vector.broadcast %14 : vector<16x1xf32> to vector<16x32xf32>
    %18 = arith.mulf %16, %17 : vector<16x32xf32>
    %c0_5 = arith.constant 0 : index
    %c0_6 = arith.constant 0 : index
    %19 = vector.load %arg2[%c0_5, %c0_6] : memref<1x32xf32, #tpu.memory_space<vmem>>, vector<1x32xf32>
    %20 = vector.broadcast %19 : vector<1x32xf32> to vector<16x32xf32>
    %21 = arith.mulf %18, %20 : vector<16x32xf32>
    %c0_7 = arith.constant 0 : index
    %c0_8 = arith.constant 0 : index
    %22 = vector.load %arg3[%c0_7, %c0_8] : memref<1x32xf32, #tpu.memory_space<vmem>>, vector<1x32xf32>
    %23 = vector.broadcast %22 : vector<1x32xf32> to vector<16x32xf32>
    %24 = arith.addf %21, %23 : vector<16x32xf32>
    %c0_9 = arith.constant 0 : index
    %c0_10 = arith.constant 0 : index
    %25 = vector.load %arg4[%c0_9, %c0_10] : memref<16x32xf32, #tpu.memory_space<vmem>>, vector<16x32xf32>
    tpu.vector_store %arg4[%c0_9, %c0_10], %24 {strides = array<i32>} : memref<16x32xf32, #tpu.memory_space<vmem>>, vector<16x32xf32>,
    return
  }
  func.func @transform_0(%arg0: i32) -> (i32, i32) {
    %c0_i32 = arith.constant 0 : i32
    %c0_i32_0 = arith.constant 0 : i32
    return %arg0, %c0_i32 : i32, i32
  }
  func.func @transform_1(%arg0: i32) -> (i32, i32) {
    %c0_i32 = arith.constant 0 : i32
    %c0_i32_0 = arith.constant 0 : i32
    %c0_i32_1 = arith.constant 0 : i32
    return %c0_i32, %c0_i32_0 : i32, i32
  }
  func.func @transform_2(%arg0: i32) -> (i32, i32) {
    %c0_i32 = arith.constant 0 : i32
    %c0_i32_0 = arith.constant 0 : i32
    %c0_i32_1 = arith.constant 0 : i32
    return %c0_i32, %c0_i32_0 : i32, i32
  }
  func.func @transform_3(%arg0: i32) -> (i32, i32) {
    %c0_i32 = arith.constant 0 : i32
    %c0_i32_0 = arith.constant 0 : i32
    return %arg0, %c0_i32 : i32, i32
  }
}

module attributes {stable_mosaic.version = 11 : i64} {
  func.func @_mha_kernel(%arg0: i32, %arg1: i32, %arg2: i32, %arg3: memref<1x8x32xf32, #tpu.memory_space<vmem>>, %arg4: memref<1x8x32xf32, #tpu.memory_space<vmem>>, %arg5: memref<1x8x32xf32, #tpu.memory_space<vmem>>, %arg6: memref<1x1x8xf32, #tpu.memory_space<vmem>>, %arg7: memref<1x8x32xf32, #tpu.memory_space<vmem>>, %arg8: memref<4x8x1xf32, #tpu.memory_space<vmem>>, %arg9: memref<4x8x1xf32, #tpu.memory_space<vmem>>, %arg10: memref<8x32xf32, #tpu.memory_space<vmem>>) attributes {dimension_semantics = [#tpu.dimension_semantics<parallel>, #tpu.dimension_semantics<parallel>, #tpu.dimension_semantics<arbitrary>], iteration_bounds = array<i64: 2, 1, 1>, scalar_prefetch = 0 : i64, scratch_operands = 3 : i64, tpu.core_type = #tpu.core_type<tc>, window_params = [{transform_indices = @transform_0, window_bounds = array<i64: 1, 8, 32>}, {transform_indices = @transform_1, window_bounds = array<i64: 1, 8, 32>}, {transform_indices = @transform_2, window_bounds = array<i64: 1, 8, 32>}, {transform_indices = @transform_3, window_bounds = array<i64: 1, 1, 8>}, {transform_indices = @transform_4, window_bounds = array<i64: 1, 8, 32>}]} {
    %c0_i32 = arith.constant 0 : i32
    %0 = arith.cmpi eq, %arg2, %c0_i32 : i32
    %1 = arith.extui %0 : i1 to i32
    %c0_i32_0 = arith.constant 0 : i32
    %2 = arith.cmpi ne, %1, %c0_i32_0 : i32
    scf.if %2 {
      %cst_93 = arith.constant -1.000000e+30 : f32
      %173 = vector.broadcast %cst_93 : f32 to vector<4x8x1xf32>
      %c0_94 = arith.constant 0 : index
      %c0_95 = arith.constant 0 : index
      %c0_96 = arith.constant 0 : index
      %174 = vector.load %arg8[%c0_94, %c0_95, %c0_96] : memref<4x8x1xf32, #tpu.memory_space<vmem>>, vector<4x8x1xf32>
      tpu.vector_store %arg8[%c0_94, %c0_95, %c0_96], %173 {strides = array<i32>} : memref<4x8x1xf32, #tpu.memory_space<vmem>>, vector<4x8x1xf32>,
      %cst_97 = arith.constant 0.000000e+00 : f32
      %175 = vector.broadcast %cst_97 : f32 to vector<4x8x1xf32>
      %c0_98 = arith.constant 0 : index
      %c0_99 = arith.constant 0 : index
      %c0_100 = arith.constant 0 : index
      %176 = vector.load %arg9[%c0_98, %c0_99, %c0_100] : memref<4x8x1xf32, #tpu.memory_space<vmem>>, vector<4x8x1xf32>
      tpu.vector_store %arg9[%c0_98, %c0_99, %c0_100], %175 {strides = array<i32>} : memref<4x8x1xf32, #tpu.memory_space<vmem>>, vector<4x8x1xf32>,
      %cst_101 = arith.constant 0.000000e+00 : f32
      %177 = vector.broadcast %cst_101 : f32 to vector<8x32xf32>
      %c0_102 = arith.constant 0 : index
      %c0_103 = arith.constant 0 : index
      %178 = vector.load %arg10[%c0_102, %c0_103] : memref<8x32xf32, #tpu.memory_space<vmem>>, vector<8x32xf32>
      tpu.vector_store %arg10[%c0_102, %c0_103], %177 {strides = array<i32>} : memref<8x32xf32, #tpu.memory_space<vmem>>, vector<8x32xf32>,
    } else {
    }
    %c0 = arith.constant 0 : index
    %c0_1 = arith.constant 0 : index
    %c0_2 = arith.constant 0 : index
    %3 = vector.load %arg3[%c0, %c0_1, %c0_2] : memref<1x8x32xf32, #tpu.memory_space<vmem>>, vector<1x8x32xf32>
    %4 = vector.shape_cast %3 : vector<1x8x32xf32> to vector<8x32xf32>
    %cst = arith.constant 0.353553385 : f32
    %5 = vector.broadcast %cst : f32 to vector<8x32xf32>
    %6 = arith.mulf %4, %5 : vector<8x32xf32>
    %7 = arith.truncf %6 : vector<8x32xf32> to vector<8x32xbf16>
    %c0_3 = arith.constant 0 : index
    %c0_4 = arith.constant 0 : index
    %c0_5 = arith.constant 0 : index
    %8 = vector.load %arg4[%c0_3, %c0_4, %c0_5] : memref<1x8x32xf32, #tpu.memory_space<vmem>>, vector<1x8x32xf32>
    %9 = vector.shape_cast %8 : vector<1x8x32xf32> to vector<8x32xf32>
    %10 = arith.truncf %9 : vector<8x32xf32> to vector<8x32xbf16>
    %c0_6 = arith.constant 0 : index
    %c0_7 = arith.constant 0 : index
    %c0_8 = arith.constant 0 : index
    %11 = vector.load %arg5[%c0_6, %c0_7, %c0_8] : memref<1x8x32xf32, #tpu.memory_space<vmem>>, vector<1x8x32xf32>
    %12 = vector.shape_cast %11 : vector<1x8x32xf32> to vector<8x32xf32>
    %13 = arith.truncf %12 : vector<8x32xf32> to vector<8x32xbf16>
    %c0_9 = arith.constant 0 : index
    %c0_10 = arith.constant 0 : index
    %c0_11 = arith.constant 0 : index
    %14 = vector.load %arg6[%c0_9, %c0_10, %c0_11] : memref<1x1x8xf32, #tpu.memory_space<vmem>>, vector<1x1x8xf32>
    %15 = vector.shape_cast %14 : vector<1x1x8xf32> to vector<1x8xf32>
    %cst_12 = arith.constant 1.000000e+00 : f32
    %16 = vector.broadcast %cst_12 : f32 to vector<1x8xf32>
    %17 = arith.subf %16, %15 : vector<1x8xf32>
    %cst_13 = arith.constant -1.000000e+09 : f32
    %18 = vector.broadcast %cst_13 : f32 to vector<1x8xf32>
    %19 = arith.mulf %17, %18 : vector<1x8xf32>
    %c8_i32 = arith.constant 8 : i32
    %20 = arith.muli %arg1, %c8_i32 : i32
    %21 = tpu.iota {dimensions = array<i32: 0>} : vector<8x8xi32>
    %22 = vector.broadcast %20 : i32 to vector<8x8xi32>
    %23 = arith.addi %22, %21 : vector<8x8xi32>
    %c8_i32_14 = arith.constant 8 : i32
    %24 = arith.muli %arg2, %c8_i32_14 : i32
    %25 = tpu.iota {dimensions = array<i32: 1>} : vector<8x8xi32>
    %26 = vector.broadcast %24 : i32 to vector<8x8xi32>
    %27 = arith.addi %26, %25 : vector<8x8xi32>
    %28 = arith.cmpi sgt, %27, %23 : vector<8x8xi32>
    %cst_15 = arith.constant -1.000000e+09 : f32
    %cst_16 = arith.constant 0.000000e+00 : f32
    %29 = vector.broadcast %cst_15 : f32 to vector<8x8xf32>
    %30 = vector.broadcast %cst_16 : f32 to vector<8x8xf32>
    %31 = arith.select %28, %29, %30 : vector<8x8xi1>, vector<8x8xf32>
    %32 = vector.broadcast %19 : vector<1x8xf32> to vector<8x8xf32>
    %33 = arith.addf %32, %31 : vector<8x8xf32>
    %34 = vector.extract_strided_slice %7 {offsets = [0, 0], sizes = [8, 8], strides = [1, 1]} : vector<8x32xbf16> to vector<8x8xbf16>
    %35 = vector.extract_strided_slice %10 {offsets = [0, 0], sizes = [8, 8], strides = [1, 1]} : vector<8x32xbf16> to vector<8x8xbf16>
    %cst_17 = arith.constant dense<0.000000e+00> : vector<8x8xf32>
    %36 = tpu.matmul %34, %35, %cst_17 {dimension_numbers = #tpu.dot_dimension_numbers<[1], [1], [0], [0], [0, 0, 1, 0], [], []>} : vector<8x8xbf16>, vector<8x8xbf16>, vector<8x8xf32> -> vector<8x8xf32>
    %37 = arith.addf %36, %33 : vector<8x8xf32>
    %c0_18 = arith.constant 0 : index
    %c0_19 = arith.constant 0 : index
    %c0_20 = arith.constant 0 : index
    %38 = vector.load %arg8[%c0_18, %c0_19, %c0_20] : memref<4x8x1xf32, #tpu.memory_space<vmem>>, vector<1x8x1xf32>
    %39 = vector.shape_cast %38 : vector<1x8x1xf32> to vector<8x1xf32>
    %cst_21 = arith.constant dense<0xFF800000> : vector<8xf32>
    %40 = vector.multi_reduction <maximumf>, %37, %cst_21 [1] : vector<8x8xf32> to vector<8xf32>
    %41 = vector.shape_cast %40 : vector<8xf32> to vector<8x1xf32>
    %42 = arith.maximumf %39, %41 : vector<8x1xf32>
    %43 = arith.subf %39, %42 : vector<8x1xf32>
    %44 = math.exp %43 : vector<8x1xf32>
    %45 = vector.broadcast %42 : vector<8x1xf32> to vector<8x8xf32>
    %46 = arith.subf %37, %45 : vector<8x8xf32>
    %47 = math.exp %46 : vector<8x8xf32>
    %c0_22 = arith.constant 0 : index
    %c0_23 = arith.constant 0 : index
    %c0_24 = arith.constant 0 : index
    %48 = vector.load %arg9[%c0_22, %c0_23, %c0_24] : memref<4x8x1xf32, #tpu.memory_space<vmem>>, vector<1x8x1xf32>
    %49 = vector.shape_cast %48 : vector<1x8x1xf32> to vector<8x1xf32>
    %50 = arith.mulf %44, %49 : vector<8x1xf32>
    %cst_25 = arith.constant dense<0.000000e+00> : vector<8xf32>
    %51 = vector.multi_reduction <add>, %47, %cst_25 [1] : vector<8x8xf32> to vector<8xf32>
    %52 = vector.shape_cast %51 : vector<8xf32> to vector<8x1xf32>
    %53 = arith.addf %50, %52 : vector<8x1xf32>
    %c0_26 = arith.constant 0 : index
    %c0_27 = arith.constant 0 : index
    %c0_28 = arith.constant 0 : index
    %54 = vector.load %arg9[%c0_26, %c0_27, %c0_28] : memref<4x8x1xf32, #tpu.memory_space<vmem>>, vector<1x8x1xf32>
    %55 = vector.shape_cast %54 : vector<1x8x1xf32> to vector<8x1xf32>
    %56 = vector.shape_cast %53 : vector<8x1xf32> to vector<1x8x1xf32>
    tpu.vector_store %arg9[%c0_26, %c0_27, %c0_28], %56 {strides = array<i32>} : memref<4x8x1xf32, #tpu.memory_space<vmem>>, vector<1x8x1xf32>,
    %c0_29 = arith.constant 0 : index
    %c0_30 = arith.constant 0 : index
    %57 = vector.load %arg10[%c0_29, %c0_30] : memref<8x32xf32, #tpu.memory_space<vmem>>, vector<8x8xf32>
    %58 = vector.broadcast %44 : vector<8x1xf32> to vector<8x8xf32>
    %59 = arith.mulf %58, %57 : vector<8x8xf32>
    %60 = arith.truncf %47 : vector<8x8xf32> to vector<8x8xbf16>
    %61 = vector.extract_strided_slice %13 {offsets = [0, 0], sizes = [8, 8], strides = [1, 1]} : vector<8x32xbf16> to vector<8x8xbf16>
    %cst_31 = arith.constant dense<0.000000e+00> : vector<8x8xf32>
    %62 = tpu.matmul %60, %61, %cst_31 {dimension_numbers = #tpu.dot_dimension_numbers<[1], [0], [0], [1], [0, 0, 1, 1], [], []>} : vector<8x8xbf16>, vector<8x8xbf16>, vector<8x8xf32> -> vector<8x8xf32>
    %63 = arith.addf %59, %62 : vector<8x8xf32>
    %c0_32 = arith.constant 0 : index
    %c0_33 = arith.constant 0 : index
    %64 = vector.load %arg10[%c0_32, %c0_33] : memref<8x32xf32, #tpu.memory_space<vmem>>, vector<8x8xf32>
    tpu.vector_store %arg10[%c0_32, %c0_33], %63 {strides = array<i32>} : memref<8x32xf32, #tpu.memory_space<vmem>>, vector<8x8xf32>,
    %c0_34 = arith.constant 0 : index
    %c0_35 = arith.constant 0 : index
    %c0_36 = arith.constant 0 : index
    %65 = vector.load %arg8[%c0_34, %c0_35, %c0_36] : memref<4x8x1xf32, #tpu.memory_space<vmem>>, vector<1x8x1xf32>
    %66 = vector.shape_cast %65 : vector<1x8x1xf32> to vector<8x1xf32>
    %67 = vector.shape_cast %42 : vector<8x1xf32> to vector<1x8x1xf32>
    tpu.vector_store %arg8[%c0_34, %c0_35, %c0_36], %67 {strides = array<i32>} : memref<4x8x1xf32, #tpu.memory_space<vmem>>, vector<1x8x1xf32>,
    %68 = vector.extract_strided_slice %7 {offsets = [0, 8], sizes = [8, 8], strides = [1, 1]} : vector<8x32xbf16> to vector<8x8xbf16>
    %69 = vector.extract_strided_slice %10 {offsets = [0, 8], sizes = [8, 8], strides = [1, 1]} : vector<8x32xbf16> to vector<8x8xbf16>
    %cst_37 = arith.constant dense<0.000000e+00> : vector<8x8xf32>
    %70 = tpu.matmul %68, %69, %cst_37 {dimension_numbers = #tpu.dot_dimension_numbers<[1], [1], [0], [0], [0, 0, 1, 0], [], []>} : vector<8x8xbf16>, vector<8x8xbf16>, vector<8x8xf32> -> vector<8x8xf32>
    %71 = arith.addf %70, %33 : vector<8x8xf32>
    %c1 = arith.constant 1 : index
    %c0_38 = arith.constant 0 : index
    %c0_39 = arith.constant 0 : index
    %72 = vector.load %arg8[%c1, %c0_38, %c0_39] : memref<4x8x1xf32, #tpu.memory_space<vmem>>, vector<1x8x1xf32>
    %73 = vector.shape_cast %72 : vector<1x8x1xf32> to vector<8x1xf32>
    %cst_40 = arith.constant dense<0xFF800000> : vector<8xf32>
    %74 = vector.multi_reduction <maximumf>, %71, %cst_40 [1] : vector<8x8xf32> to vector<8xf32>
    %75 = vector.shape_cast %74 : vector<8xf32> to vector<8x1xf32>
    %76 = arith.maximumf %73, %75 : vector<8x1xf32>
    %77 = arith.subf %73, %76 : vector<8x1xf32>
    %78 = math.exp %77 : vector<8x1xf32>
    %79 = vector.broadcast %76 : vector<8x1xf32> to vector<8x8xf32>
    %80 = arith.subf %71, %79 : vector<8x8xf32>
    %81 = math.exp %80 : vector<8x8xf32>
    %c1_41 = arith.constant 1 : index
    %c0_42 = arith.constant 0 : index
    %c0_43 = arith.constant 0 : index
    %82 = vector.load %arg9[%c1_41, %c0_42, %c0_43] : memref<4x8x1xf32, #tpu.memory_space<vmem>>, vector<1x8x1xf32>
    %83 = vector.shape_cast %82 : vector<1x8x1xf32> to vector<8x1xf32>
    %84 = arith.mulf %78, %83 : vector<8x1xf32>
    %cst_44 = arith.constant dense<0.000000e+00> : vector<8xf32>
    %85 = vector.multi_reduction <add>, %81, %cst_44 [1] : vector<8x8xf32> to vector<8xf32>
    %86 = vector.shape_cast %85 : vector<8xf32> to vector<8x1xf32>
    %87 = arith.addf %84, %86 : vector<8x1xf32>
    %c1_45 = arith.constant 1 : index
    %c0_46 = arith.constant 0 : index
    %c0_47 = arith.constant 0 : index
    %88 = vector.load %arg9[%c1_45, %c0_46, %c0_47] : memref<4x8x1xf32, #tpu.memory_space<vmem>>, vector<1x8x1xf32>
    %89 = vector.shape_cast %88 : vector<1x8x1xf32> to vector<8x1xf32>
    %90 = vector.shape_cast %87 : vector<8x1xf32> to vector<1x8x1xf32>
    tpu.vector_store %arg9[%c1_45, %c0_46, %c0_47], %90 {strides = array<i32>} : memref<4x8x1xf32, #tpu.memory_space<vmem>>, vector<1x8x1xf32>,
    %c0_48 = arith.constant 0 : index
    %c8 = arith.constant 8 : index
    %91 = vector.load %arg10[%c0_48, %c8] : memref<8x32xf32, #tpu.memory_space<vmem>>, vector<8x8xf32>
    %92 = vector.broadcast %78 : vector<8x1xf32> to vector<8x8xf32>
    %93 = arith.mulf %92, %91 : vector<8x8xf32>
    %94 = arith.truncf %81 : vector<8x8xf32> to vector<8x8xbf16>
    %95 = vector.extract_strided_slice %13 {offsets = [0, 8], sizes = [8, 8], strides = [1, 1]} : vector<8x32xbf16> to vector<8x8xbf16>
    %cst_49 = arith.constant dense<0.000000e+00> : vector<8x8xf32>
    %96 = tpu.matmul %94, %95, %cst_49 {dimension_numbers = #tpu.dot_dimension_numbers<[1], [0], [0], [1], [0, 0, 1, 1], [], []>} : vector<8x8xbf16>, vector<8x8xbf16>, vector<8x8xf32> -> vector<8x8xf32>
    %97 = arith.addf %93, %96 : vector<8x8xf32>
    %c0_50 = arith.constant 0 : index
    %c8_51 = arith.constant 8 : index
    %98 = vector.load %arg10[%c0_50, %c8_51] : memref<8x32xf32, #tpu.memory_space<vmem>>, vector<8x8xf32>
    tpu.vector_store %arg10[%c0_50, %c8_51], %97 {strides = array<i32>} : memref<8x32xf32, #tpu.memory_space<vmem>>, vector<8x8xf32>,
    %c1_52 = arith.constant 1 : index
    %c0_53 = arith.constant 0 : index
    %c0_54 = arith.constant 0 : index
    %99 = vector.load %arg8[%c1_52, %c0_53, %c0_54] : memref<4x8x1xf32, #tpu.memory_space<vmem>>, vector<1x8x1xf32>
    %100 = vector.shape_cast %99 : vector<1x8x1xf32> to vector<8x1xf32>
    %101 = vector.shape_cast %76 : vector<8x1xf32> to vector<1x8x1xf32>
    tpu.vector_store %arg8[%c1_52, %c0_53, %c0_54], %101 {strides = array<i32>} : memref<4x8x1xf32, #tpu.memory_space<vmem>>, vector<1x8x1xf32>,
    %102 = vector.extract_strided_slice %7 {offsets = [0, 16], sizes = [8, 8], strides = [1, 1]} : vector<8x32xbf16> to vector<8x8xbf16>
    %103 = vector.extract_strided_slice %10 {offsets = [0, 16], sizes = [8, 8], strides = [1, 1]} : vector<8x32xbf16> to vector<8x8xbf16>
    %cst_55 = arith.constant dense<0.000000e+00> : vector<8x8xf32>
    %104 = tpu.matmul %102, %103, %cst_55 {dimension_numbers = #tpu.dot_dimension_numbers<[1], [1], [0], [0], [0, 0, 1, 0], [], []>} : vector<8x8xbf16>, vector<8x8xbf16>, vector<8x8xf32> -> vector<8x8xf32>
    %105 = arith.addf %104, %33 : vector<8x8xf32>
    %c2 = arith.constant 2 : index
    %c0_56 = arith.constant 0 : index
    %c0_57 = arith.constant 0 : index
    %106 = vector.load %arg8[%c2, %c0_56, %c0_57] : memref<4x8x1xf32, #tpu.memory_space<vmem>>, vector<1x8x1xf32>
    %107 = vector.shape_cast %106 : vector<1x8x1xf32> to vector<8x1xf32>
    %cst_58 = arith.constant dense<0xFF800000> : vector<8xf32>
    %108 = vector.multi_reduction <maximumf>, %105, %cst_58 [1] : vector<8x8xf32> to vector<8xf32>
    %109 = vector.shape_cast %108 : vector<8xf32> to vector<8x1xf32>
    %110 = arith.maximumf %107, %109 : vector<8x1xf32>
    %111 = arith.subf %107, %110 : vector<8x1xf32>
    %112 = math.exp %111 : vector<8x1xf32>
    %113 = vector.broadcast %110 : vector<8x1xf32> to vector<8x8xf32>
    %114 = arith.subf %105, %113 : vector<8x8xf32>
    %115 = math.exp %114 : vector<8x8xf32>
    %c2_59 = arith.constant 2 : index
    %c0_60 = arith.constant 0 : index
    %c0_61 = arith.constant 0 : index
    %116 = vector.load %arg9[%c2_59, %c0_60, %c0_61] : memref<4x8x1xf32, #tpu.memory_space<vmem>>, vector<1x8x1xf32>
    %117 = vector.shape_cast %116 : vector<1x8x1xf32> to vector<8x1xf32>
    %118 = arith.mulf %112, %117 : vector<8x1xf32>
    %cst_62 = arith.constant dense<0.000000e+00> : vector<8xf32>
    %119 = vector.multi_reduction <add>, %115, %cst_62 [1] : vector<8x8xf32> to vector<8xf32>
    %120 = vector.shape_cast %119 : vector<8xf32> to vector<8x1xf32>
    %121 = arith.addf %118, %120 : vector<8x1xf32>
    %c2_63 = arith.constant 2 : index
    %c0_64 = arith.constant 0 : index
    %c0_65 = arith.constant 0 : index
    %122 = vector.load %arg9[%c2_63, %c0_64, %c0_65] : memref<4x8x1xf32, #tpu.memory_space<vmem>>, vector<1x8x1xf32>
    %123 = vector.shape_cast %122 : vector<1x8x1xf32> to vector<8x1xf32>
    %124 = vector.shape_cast %121 : vector<8x1xf32> to vector<1x8x1xf32>
    tpu.vector_store %arg9[%c2_63, %c0_64, %c0_65], %124 {strides = array<i32>} : memref<4x8x1xf32, #tpu.memory_space<vmem>>, vector<1x8x1xf32>,
    %c0_66 = arith.constant 0 : index
    %c16 = arith.constant 16 : index
    %125 = vector.load %arg10[%c0_66, %c16] : memref<8x32xf32, #tpu.memory_space<vmem>>, vector<8x8xf32>
    %126 = vector.broadcast %112 : vector<8x1xf32> to vector<8x8xf32>
    %127 = arith.mulf %126, %125 : vector<8x8xf32>
    %128 = arith.truncf %115 : vector<8x8xf32> to vector<8x8xbf16>
    %129 = vector.extract_strided_slice %13 {offsets = [0, 16], sizes = [8, 8], strides = [1, 1]} : vector<8x32xbf16> to vector<8x8xbf16>
    %cst_67 = arith.constant dense<0.000000e+00> : vector<8x8xf32>
    %130 = tpu.matmul %128, %129, %cst_67 {dimension_numbers = #tpu.dot_dimension_numbers<[1], [0], [0], [1], [0, 0, 1, 1], [], []>} : vector<8x8xbf16>, vector<8x8xbf16>, vector<8x8xf32> -> vector<8x8xf32>
    %131 = arith.addf %127, %130 : vector<8x8xf32>
    %c0_68 = arith.constant 0 : index
    %c16_69 = arith.constant 16 : index
    %132 = vector.load %arg10[%c0_68, %c16_69] : memref<8x32xf32, #tpu.memory_space<vmem>>, vector<8x8xf32>
    tpu.vector_store %arg10[%c0_68, %c16_69], %131 {strides = array<i32>} : memref<8x32xf32, #tpu.memory_space<vmem>>, vector<8x8xf32>,
    %c2_70 = arith.constant 2 : index
    %c0_71 = arith.constant 0 : index
    %c0_72 = arith.constant 0 : index
    %133 = vector.load %arg8[%c2_70, %c0_71, %c0_72] : memref<4x8x1xf32, #tpu.memory_space<vmem>>, vector<1x8x1xf32>
    %134 = vector.shape_cast %133 : vector<1x8x1xf32> to vector<8x1xf32>
    %135 = vector.shape_cast %110 : vector<8x1xf32> to vector<1x8x1xf32>
    tpu.vector_store %arg8[%c2_70, %c0_71, %c0_72], %135 {strides = array<i32>} : memref<4x8x1xf32, #tpu.memory_space<vmem>>, vector<1x8x1xf32>,
    %136 = vector.extract_strided_slice %7 {offsets = [0, 24], sizes = [8, 8], strides = [1, 1]} : vector<8x32xbf16> to vector<8x8xbf16>
    %137 = vector.extract_strided_slice %10 {offsets = [0, 24], sizes = [8, 8], strides = [1, 1]} : vector<8x32xbf16> to vector<8x8xbf16>
    %cst_73 = arith.constant dense<0.000000e+00> : vector<8x8xf32>
    %138 = tpu.matmul %136, %137, %cst_73 {dimension_numbers = #tpu.dot_dimension_numbers<[1], [1], [0], [0], [0, 0, 1, 0], [], []>} : vector<8x8xbf16>, vector<8x8xbf16>, vector<8x8xf32> -> vector<8x8xf32>
    %139 = arith.addf %138, %33 : vector<8x8xf32>
    %c3 = arith.constant 3 : index
    %c0_74 = arith.constant 0 : index
    %c0_75 = arith.constant 0 : index
    %140 = vector.load %arg8[%c3, %c0_74, %c0_75] : memref<4x8x1xf32, #tpu.memory_space<vmem>>, vector<1x8x1xf32>
    %141 = vector.shape_cast %140 : vector<1x8x1xf32> to vector<8x1xf32>
    %cst_76 = arith.constant dense<0xFF800000> : vector<8xf32>
    %142 = vector.multi_reduction <maximumf>, %139, %cst_76 [1] : vector<8x8xf32> to vector<8xf32>
    %143 = vector.shape_cast %142 : vector<8xf32> to vector<8x1xf32>
    %144 = arith.maximumf %141, %143 : vector<8x1xf32>
    %145 = arith.subf %141, %144 : vector<8x1xf32>
    %146 = math.exp %145 : vector<8x1xf32>
    %147 = vector.broadcast %144 : vector<8x1xf32> to vector<8x8xf32>
    %148 = arith.subf %139, %147 : vector<8x8xf32>
    %149 = math.exp %148 : vector<8x8xf32>
    %c3_77 = arith.constant 3 : index
    %c0_78 = arith.constant 0 : index
    %c0_79 = arith.constant 0 : index
    %150 = vector.load %arg9[%c3_77, %c0_78, %c0_79] : memref<4x8x1xf32, #tpu.memory_space<vmem>>, vector<1x8x1xf32>
    %151 = vector.shape_cast %150 : vector<1x8x1xf32> to vector<8x1xf32>
    %152 = arith.mulf %146, %151 : vector<8x1xf32>
    %cst_80 = arith.constant dense<0.000000e+00> : vector<8xf32>
    %153 = vector.multi_reduction <add>, %149, %cst_80 [1] : vector<8x8xf32> to vector<8xf32>
    %154 = vector.shape_cast %153 : vector<8xf32> to vector<8x1xf32>
    %155 = arith.addf %152, %154 : vector<8x1xf32>
    %c3_81 = arith.constant 3 : index
    %c0_82 = arith.constant 0 : index
    %c0_83 = arith.constant 0 : index
    %156 = vector.load %arg9[%c3_81, %c0_82, %c0_83] : memref<4x8x1xf32, #tpu.memory_space<vmem>>, vector<1x8x1xf32>
    %157 = vector.shape_cast %156 : vector<1x8x1xf32> to vector<8x1xf32>
    %158 = vector.shape_cast %155 : vector<8x1xf32> to vector<1x8x1xf32>
    tpu.vector_store %arg9[%c3_81, %c0_82, %c0_83], %158 {strides = array<i32>} : memref<4x8x1xf32, #tpu.memory_space<vmem>>, vector<1x8x1xf32>,
    %c0_84 = arith.constant 0 : index
    %c24 = arith.constant 24 : index
    %159 = vector.load %arg10[%c0_84, %c24] : memref<8x32xf32, #tpu.memory_space<vmem>>, vector<8x8xf32>
    %160 = vector.broadcast %146 : vector<8x1xf32> to vector<8x8xf32>
    %161 = arith.mulf %160, %159 : vector<8x8xf32>
    %162 = arith.truncf %149 : vector<8x8xf32> to vector<8x8xbf16>
    %163 = vector.extract_strided_slice %13 {offsets = [0, 24], sizes = [8, 8], strides = [1, 1]} : vector<8x32xbf16> to vector<8x8xbf16>
    %cst_85 = arith.constant dense<0.000000e+00> : vector<8x8xf32>
    %164 = tpu.matmul %162, %163, %cst_85 {dimension_numbers = #tpu.dot_dimension_numbers<[1], [0], [0], [1], [0, 0, 1, 1], [], []>} : vector<8x8xbf16>, vector<8x8xbf16>, vector<8x8xf32> -> vector<8x8xf32>
    %165 = arith.addf %161, %164 : vector<8x8xf32>
    %c0_86 = arith.constant 0 : index
    %c24_87 = arith.constant 24 : index
    %166 = vector.load %arg10[%c0_86, %c24_87] : memref<8x32xf32, #tpu.memory_space<vmem>>, vector<8x8xf32>
    tpu.vector_store %arg10[%c0_86, %c24_87], %165 {strides = array<i32>} : memref<8x32xf32, #tpu.memory_space<vmem>>, vector<8x8xf32>,
    %c3_88 = arith.constant 3 : index
    %c0_89 = arith.constant 0 : index
    %c0_90 = arith.constant 0 : index
    %167 = vector.load %arg8[%c3_88, %c0_89, %c0_90] : memref<4x8x1xf32, #tpu.memory_space<vmem>>, vector<1x8x1xf32>
    %168 = vector.shape_cast %167 : vector<1x8x1xf32> to vector<8x1xf32>
    %169 = vector.shape_cast %144 : vector<8x1xf32> to vector<1x8x1xf32>
    tpu.vector_store %arg8[%c3_88, %c0_89, %c0_90], %169 {strides = array<i32>} : memref<4x8x1xf32, #tpu.memory_space<vmem>>, vector<1x8x1xf32>,
    %c0_i32_91 = arith.constant 0 : i32
    %170 = arith.cmpi eq, %arg2, %c0_i32_91 : i32
    %171 = arith.extui %170 : i1 to i32
    %c0_i32_92 = arith.constant 0 : i32
    %172 = arith.cmpi ne, %171, %c0_i32_92 : i32
    scf.if %172 {
      %c0_93 = arith.constant 0 : index
      %c0_94 = arith.constant 0 : index
      %173 = vector.load %arg10[%c0_93, %c0_94] : memref<8x32xf32, #tpu.memory_space<vmem>>, vector<8x8xf32>
      %c0_95 = arith.constant 0 : index
      %c0_96 = arith.constant 0 : index
      %c0_97 = arith.constant 0 : index
      %174 = vector.load %arg9[%c0_95, %c0_96, %c0_97] : memref<4x8x1xf32, #tpu.memory_space<vmem>>, vector<1x8x1xf32>
      %175 = vector.shape_cast %174 : vector<1x8x1xf32> to vector<8x1xf32>
      %176 = tpu.reciprocal %175 {approx = true} : vector<8x1xf32> -> vector<8x1xf32>
      %177 = vector.broadcast %176 : vector<8x1xf32> to vector<8x8xf32>
      %178 = arith.mulf %173, %177 : vector<8x8xf32>
      %c0_98 = arith.constant 0 : index
      %c0_99 = arith.constant 0 : index
      %179 = vector.load %arg10[%c0_98, %c0_99] : memref<8x32xf32, #tpu.memory_space<vmem>>, vector<8x8xf32>
      tpu.vector_store %arg10[%c0_98, %c0_99], %178 {strides = array<i32>} : memref<8x32xf32, #tpu.memory_space<vmem>>, vector<8x8xf32>,
      %c0_100 = arith.constant 0 : index
      %c8_101 = arith.constant 8 : index
      %180 = vector.load %arg10[%c0_100, %c8_101] : memref<8x32xf32, #tpu.memory_space<vmem>>, vector<8x8xf32>
      %c1_102 = arith.constant 1 : index
      %c0_103 = arith.constant 0 : index
      %c0_104 = arith.constant 0 : index
      %181 = vector.load %arg9[%c1_102, %c0_103, %c0_104] : memref<4x8x1xf32, #tpu.memory_space<vmem>>, vector<1x8x1xf32>
      %182 = vector.shape_cast %181 : vector<1x8x1xf32> to vector<8x1xf32>
      %183 = tpu.reciprocal %182 {approx = true} : vector<8x1xf32> -> vector<8x1xf32>
      %184 = vector.broadcast %183 : vector<8x1xf32> to vector<8x8xf32>
      %185 = arith.mulf %180, %184 : vector<8x8xf32>
      %c0_105 = arith.constant 0 : index
      %c8_106 = arith.constant 8 : index
      %186 = vector.load %arg10[%c0_105, %c8_106] : memref<8x32xf32, #tpu.memory_space<vmem>>, vector<8x8xf32>
      tpu.vector_store %arg10[%c0_105, %c8_106], %185 {strides = array<i32>} : memref<8x32xf32, #tpu.memory_space<vmem>>, vector<8x8xf32>,
      %c0_107 = arith.constant 0 : index
      %c16_108 = arith.constant 16 : index
      %187 = vector.load %arg10[%c0_107, %c16_108] : memref<8x32xf32, #tpu.memory_space<vmem>>, vector<8x8xf32>
      %c2_109 = arith.constant 2 : index
      %c0_110 = arith.constant 0 : index
      %c0_111 = arith.constant 0 : index
      %188 = vector.load %arg9[%c2_109, %c0_110, %c0_111] : memref<4x8x1xf32, #tpu.memory_space<vmem>>, vector<1x8x1xf32>
      %189 = vector.shape_cast %188 : vector<1x8x1xf32> to vector<8x1xf32>
      %190 = tpu.reciprocal %189 {approx = true} : vector<8x1xf32> -> vector<8x1xf32>
      %191 = vector.broadcast %190 : vector<8x1xf32> to vector<8x8xf32>
      %192 = arith.mulf %187, %191 : vector<8x8xf32>
      %c0_112 = arith.constant 0 : index
      %c16_113 = arith.constant 16 : index
      %193 = vector.load %arg10[%c0_112, %c16_113] : memref<8x32xf32, #tpu.memory_space<vmem>>, vector<8x8xf32>
      tpu.vector_store %arg10[%c0_112, %c16_113], %192 {strides = array<i32>} : memref<8x32xf32, #tpu.memory_space<vmem>>, vector<8x8xf32>,
      %c0_114 = arith.constant 0 : index
      %c24_115 = arith.constant 24 : index
      %194 = vector.load %arg10[%c0_114, %c24_115] : memref<8x32xf32, #tpu.memory_space<vmem>>, vector<8x8xf32>
      %c3_116 = arith.constant 3 : index
      %c0_117 = arith.constant 0 : index
      %c0_118 = arith.constant 0 : index
      %195 = vector.load %arg9[%c3_116, %c0_117, %c0_118] : memref<4x8x1xf32, #tpu.memory_space<vmem>>, vector<1x8x1xf32>
      %196 = vector.shape_cast %195 : vector<1x8x1xf32> to vector<8x1xf32>
      %197 = tpu.reciprocal %196 {approx = true} : vector<8x1xf32> -> vector<8x1xf32>
      %198 = vector.broadcast %197 : vector<8x1xf32> to vector<8x8xf32>
      %199 = arith.mulf %194, %198 : vector<8x8xf32>
      %c0_119 = arith.constant 0 : index
      %c24_120 = arith.constant 24 : index
      %200 = vector.load %arg10[%c0_119, %c24_120] : memref<8x32xf32, #tpu.memory_space<vmem>>, vector<8x8xf32>
      tpu.vector_store %arg10[%c0_119, %c24_120], %199 {strides = array<i32>} : memref<8x32xf32, #tpu.memory_space<vmem>>, vector<8x8xf32>,
      %c0_121 = arith.constant 0 : index
      %c0_122 = arith.constant 0 : index
      %201 = vector.load %arg10[%c0_121, %c0_122] : memref<8x32xf32, #tpu.memory_space<vmem>>, vector<8x32xf32>
      %c0_123 = arith.constant 0 : index
      %c0_124 = arith.constant 0 : index
      %c0_125 = arith.constant 0 : index
      %202 = vector.load %arg7[%c0_123, %c0_124, %c0_125] : memref<1x8x32xf32, #tpu.memory_space<vmem>>, vector<1x8x32xf32>
      %203 = vector.shape_cast %202 : vector<1x8x32xf32> to vector<8x32xf32>
      %204 = vector.shape_cast %201 : vector<8x32xf32> to vector<1x8x32xf32>
      tpu.vector_store %arg7[%c0_123, %c0_124, %c0_125], %204 {strides = array<i32>} : memref<1x8x32xf32, #tpu.memory_space<vmem>>, vector<1x8x32xf32>,
    } else {
    }
    return
  }
  func.func @transform_0(%arg0: i32, %arg1: i32, %arg2: i32) -> (i32, i32, i32) {
    %c0_i32 = arith.constant 0 : i32
    %c0_i32_0 = arith.constant 0 : i32
    return %arg0, %arg1, %c0_i32 : i32, i32, i32
  }
  func.func @transform_1(%arg0: i32, %arg1: i32, %arg2: i32) -> (i32, i32, i32) {
    %c0_i32 = arith.constant 0 : i32
    %c0_i32_0 = arith.constant 0 : i32
    return %arg0, %arg2, %c0_i32 : i32, i32, i32
  }
  func.func @transform_2(%arg0: i32, %arg1: i32, %arg2: i32) -> (i32, i32, i32) {
    %c0_i32 = arith.constant 0 : i32
    %c0_i32_0 = arith.constant 0 : i32
    return %arg0, %arg2, %c0_i32 : i32, i32, i32
  }
  func.func @transform_3(%arg0: i32, %arg1: i32, %arg2: i32) -> (i32, i32, i32) {
    %c0_i32 = arith.constant 0 : i32
    %c0_i32_0 = arith.constant 0 : i32
    return %arg0, %c0_i32, %arg2 : i32, i32, i32
  }
  func.func @transform_4(%arg0: i32, %arg1: i32, %arg2: i32) -> (i32, i32, i32) {
    %c0_i32 = arith.constant 0 : i32
    %c0_i32_0 = arith.constant 0 : i32
    return %arg0, %arg1, %c0_i32 : i32, i32, i32
  }
}

module attributes {stable_mosaic.version = 11 : i64} {
  func.func @_heat_kernel(%arg0: i32, %arg1: memref<2x5x32xf32, #tpu.memory_space<vmem>>, %arg2: memref<32x256xbf16, #tpu.memory_space<vmem>>, %arg3: memref<1x256xf32, #tpu.memory_space<vmem>>, %arg4: memref<2x256xf32, #tpu.memory_space<vmem>>) attributes {dimension_semantics = [#tpu.dimension_semantics<arbitrary>], iteration_bounds = array<i64: 1>, scalar_prefetch = 0 : i64, scratch_operands = 0 : i64, tpu.core_type = #tpu.core_type<tc>, window_params = [{pipeline_mode = #tpu.pipeline_mode<synchronous>, transform_indices = @transform_0, window_bounds = array<i64: 2, 5, 32>}, {pipeline_mode = #tpu.pipeline_mode<synchronous>, transform_indices = @transform_1, window_bounds = array<i64: 32, 256>}, {pipeline_mode = #tpu.pipeline_mode<synchronous>, transform_indices = @transform_2, window_bounds = array<i64: 1, 256>}, {pipeline_mode = #tpu.pipeline_mode<synchronous>, transform_indices = @transform_3, window_bounds = array<i64: 2, 256>}]} {
    %c0 = arith.constant 0 : index
    %c0_0 = arith.constant 0 : index
    %c0_1 = arith.constant 0 : index
    %0 = vector.load %arg1[%c0, %c0_0, %c0_1] : memref<2x5x32xf32, #tpu.memory_space<vmem>>, vector<2x5x32xf32>
    %1 = vector.extract_strided_slice %0 {offsets = [0, 1, 0], sizes = [2, 4, 32], strides = [1, 1, 1]} : vector<2x5x32xf32> to vector<2x4x32xf32>
    %cst = arith.constant dense<0.000000e+00> : vector<2x32xf32>
    %2 = vector.multi_reduction <add>, %1, %cst [1] : vector<2x4x32xf32> to vector<2x32xf32>
    %cst_2 = arith.constant 4.000000e+00 : f32
    %3 = vector.broadcast %cst_2 : f32 to vector<2x32xf32>
    %4 = arith.divf %2, %3 : vector<2x32xf32>
    %5 = arith.truncf %4 : vector<2x32xf32> to vector<2x32xbf16>
    %c0_3 = arith.constant 0 : index
    %c0_4 = arith.constant 0 : index
    %6 = vector.load %arg2[%c0_3, %c0_4] : memref<32x256xbf16, #tpu.memory_space<vmem>>, vector<32x256xbf16>
    %cst_5 = arith.constant dense<0.000000e+00> : vector<2x256xf32>
    %7 = tpu.matmul %5, %6, %cst_5 {dimension_numbers = #tpu.dot_dimension_numbers<[1], [0], [0], [1], [0, 0, 1, 1], [], []>} : vector<2x32xbf16>, vector<32x256xbf16>, vector<2x256xf32> -> vector<2x256xf32>
    %c0_6 = arith.constant 0 : index
    %c0_7 = arith.constant 0 : index
    %8 = vector.load %arg3[%c0_6, %c0_7] : memref<1x256xf32, #tpu.memory_space<vmem>>, vector<1x256xf32>
    %9 = vector.broadcast %8 : vector<1x256xf32> to vector<2x256xf32>
    %10 = arith.addf %7, %9 : vector<2x256xf32>
    %c0_8 = arith.constant 0 : index
    %c0_9 = arith.constant 0 : index
    %11 = vector.load %arg4[%c0_8, %c0_9] : memref<2x256xf32, #tpu.memory_space<vmem>>, vector<2x256xf32>
    tpu.vector_store %arg4[%c0_8, %c0_9], %10 {strides = array<i32>} : memref<2x256xf32, #tpu.memory_space<vmem>>, vector<2x256xf32>,
    return
  }
  func.func @transform_0(%arg0: i32) -> (i32, i32, i32) {
    %c0_i32 = arith.constant 0 : i32
    %c0_i32_0 = arith.constant 0 : i32
    %c0_i32_1 = arith.constant 0 : i32
    %c0_i32_2 = arith.constant 0 : i32
    return %c0_i32, %c0_i32_0, %c0_i32_1 : i32, i32, i32
  }
  func.func @transform_1(%arg0: i32) -> (i32, i32) {
    %c0_i32 = arith.constant 0 : i32
    %c0_i32_0 = arith.constant 0 : i32
    %c0_i32_1 = arith.constant 0 : i32
    return %c0_i32, %c0_i32_0 : i32, i32
  }
  func.func @transform_2(%arg0: i32) -> (i32, i32) {
    %c0_i32 = arith.constant 0 : i32
    %c0_i32_0 = arith.constant 0 : i32
    %c0_i32_1 = arith.constant 0 : i32
    return %c0_i32, %c0_i32_0 : i32, i32
  }
  func.func @transform_3(%arg0: i32) -> (i32, i32) {
    %c0_i32 = arith.constant 0 : i32
    %c0_i32_0 = arith.constant 0 : i32
    %c0_i32_1 = arith.constant 0 : i32
    return %c0_i32, %c0_i32_0 : i32, i32
  }
}

</mosaic_0001>

<llo_original>
// kernel: blip_decoder_v2_forward.54
$region0: #{blip_decoder_v2_forward.54}
  #allocation0 [shape = 'u32[]', space=smem, size = 0x4, offset = 0x4, fixed_abs, tag = 'smem constant byte address 0x4 - core index']
  #allocation1 [shape = 'u32[144,128]{1,0:T(1,128)}', space=vmem, size = 0x12000, scoped, tag = 'internal scratch']
  #allocation2 [shape = 'f32[8,128]{1,0:T(8,128)}', space=vmem, size = 0x1000, scoped, tag = 'scratch operand']
  %s0 = inlined_call_operand.vmem [shape: f32[8,1024], index: 0, kind: input, shape index: {}]
  %s1 = inlined_call_operand.vmem [shape: bf16[1024,128], index: 1, kind: input, shape index: {}]
  %s2 = inlined_call_operand.vmem [shape: f32[1,128], index: 2, kind: input, shape index: {}]
  %s3 = inlined_call_operand.vmem [shape: f32[8,128], index: 3, kind: output, shape index: {}]
  %s4 = sld [smem:[#allocation0]]
  $region53: #{blip_decoder_v2_forward.54} parent=0
    _
  %s6 = ssub.s32 1, %s4
  %s7 = scalar_select 0, %s6, %s4
  loop: start=0, step=1, limit=4
  $region2: #{blip_decoder_v2_forward.54} parent=0 // loop_pre_header
    _
  $region3: #{blip_decoder_v2_forward.54} parent=0 // loop_header
    %s9 = sphi 0, %s13
    %p10 = scmp.ge.s32.totalorder %s9, 4
    %s16 = sphi 0, %s35
    %s17 = sphi 0, %s31
    %s18 = sphi 0, %s27
    %s19 = sphi 0, %s16
    %s20 = sphi 0, %s17
    %s21 = sphi 0, %s18
    %s22 = sphi 0, %s19
    %s23 = sphi 0, %s20
    %s24 = sphi 0, %s21
    %s40 = sphi 0, %s42
    %s43 = sphi 0, %s40
    %s44 = sphi 0, %s43
    %s60 = sphi 0, %s44
    %s68 = sphi 0, %s70
    %s71 = sphi 0, %s68
    %s72 = sphi 0, %s71
    %s88 = sphi 0, %s72
    %s94 = sphi 0, %s96
    %s97 = sphi 0, %s94
    %s98 = sphi 0, %s97
    %s114 = sphi 0, %s98
    %s122 = sphi 0, %s124
    %s125 = sphi 0, %s122
    %s126 = sphi 0, %s125
    %s142 = sphi 0, %s126
  $region4: #{blip_decoder_v2_forward.54} parent=0 // loop_header_branch
    %12 = sbr.rel (%p10) target = $region8
  $region5: #{blip_decoder_v2_forward.54} parent=0 // loop_body
    %s14 = ssub.s32 %s9, 1
    %s15 = ssub.s32 %s9, 2
    %s25 = sadd.s32 1, %s18
    %p26 = scmp.ge.s32.totalorder %s25, 2
    %s27 = scalar_select %p26, 0, %s25
    %s28 = sadd.s32 1, %s17
    %s29 = scalar_select %p26, %s28, %s17
    %p30 = scmp.ge.s32.totalorder %s29, 1
    %s31 = scalar_select %p30, 0, %s29
    %s32 = sadd.s32 1, %s16
    %s33 = scalar_select %p30, %s32, %s16
    %p34 = scmp.ge.s32.totalorder %s33, 1
    %s35 = scalar_select %p34, 0, %s33
    %s36 = ssub.s32 %s16, %s35
    %s37 = ssub.s32 %s18, %s27
    %s38 = sor.u32 %s36, %s37
    %p39 = scmp.eq.s32.totalorder %s38, 0
    %s41 = sadd.s32 %s40, 1
    %s42 = scalar_select %p39, %s40, %s41
    %p45 = pneg %p39
    %p46 = scmp.eq.s32.totalorder %s9, 1
    %p47 = por %p45, %p46
    %p48 = scmp.ne.s32.totalorder %s40, %s43
    %p49 = scmp.eq.s32.totalorder %s9, 0
    %p50 = por %p48, %p49
    %p51 = scmp.ne.s32.totalorder %s40, %s43
    %p52 = scmp.eq.s32.totalorder %s14, 1
    %p53 = por %p51, %p52
    %p54 = scmp.ne.s32.totalorder %s43, %s44
    %p55 = scmp.eq.s32.totalorder %s14, 0
    %p56 = por %p54, %p55
    %p57 = scmp.ne.s32.totalorder %s43, %s44
    %p58 = scmp.eq.s32.totalorder %s15, 1
    %p59 = por %p57, %p58
    %p61 = scmp.ne.s32.totalorder %s44, %s60
    %p62 = scmp.eq.s32.totalorder %s15, 0
    %p63 = por %p61, %p62
    %s64 = ssub.s32 %s18, %s27
    %s65 = ssub.s32 %s17, %s31
    %s66 = sor.u32 %s64, %s65
    %p67 = scmp.eq.s32.totalorder %s66, 0
    %s69 = sadd.s32 %s68, 1
    %s70 = scalar_select %p67, %s68, %s69
    %p73 = pneg %p67
    %p74 = scmp.eq.s32.totalorder %s9, 1
    %p75 = por %p73, %p74
    %p76 = scmp.ne.s32.totalorder %s68, %s71
    %p77 = scmp.eq.s32.totalorder %s9, 0
    %p78 = por %p76, %p77
    %p79 = scmp.ne.s32.totalorder %s68, %s71
    %p80 = scmp.eq.s32.totalorder %s14, 1
    %p81 = por %p79, %p80
    %p82 = scmp.ne.s32.totalorder %s71, %s72
    %p83 = scmp.eq.s32.totalorder %s14, 0
    %p84 = por %p82, %p83
    %p85 = scmp.ne.s32.totalorder %s71, %s72
    %p86 = scmp.eq.s32.totalorder %s15, 1
    %p87 = por %p85, %p86
    %p89 = scmp.ne.s32.totalorder %s72, %s88
    %p90 = scmp.eq.s32.totalorder %s15, 0
    %p91 = por %p89, %p90
    %s92 = ssub.s32 %s17, %s31
    %p93 = scmp.eq.s32.totalorder %s92, 0
    %s95 = sadd.s32 %s94, 1
    %s96 = scalar_select %p93, %s94, %s95
    %p99 = pneg %p93
    %p100 = scmp.eq.s32.totalorder %s9, 1
    %p101 = por %p99, %p100
    %p102 = scmp.ne.s32.totalorder %s94, %s97
    %p103 = scmp.eq.s32.totalorder %s9, 0
    %p104 = por %p102, %p103
    %p105 = scmp.ne.s32.totalorder %s94, %s97
    %p106 = scmp.eq.s32.totalorder %s14, 1
    %p107 = por %p105, %p106
    %p108 = scmp.ne.s32.totalorder %s97, %s98
    %p109 = scmp.eq.s32.totalorder %s14, 0
    %p110 = por %p108, %p109
    %p111 = scmp.ne.s32.totalorder %s97, %s98
    %p112 = scmp.eq.s32.totalorder %s15, 1
    %p113 = por %p111, %p112
    %p115 = scmp.ne.s32.totalorder %s98, %s114
    %p116 = scmp.eq.s32.totalorder %s15, 0
    %p117 = por %p115, %p116
    %s118 = ssub.s32 %s16, %s35
    %s119 = ssub.s32 %s17, %s31
    %s120 = sor.u32 %s118, %s119
    %p121 = scmp.eq.s32.totalorder %s120, 0
    %s123 = sadd.s32 %s122, 1
    %s124 = scalar_select %p121, %s122, %s123
    %p127 = pneg %p121
    %p128 = scmp.eq.s32.totalorder %s9, 1
    %p129 = por %p127, %p128
    %p130 = scmp.ne.s32.totalorder %s122, %s125
    %p131 = scmp.eq.s32.totalorder %s9, 0
    %p132 = por %p130, %p131
    %p133 = scmp.ne.s32.totalorder %s122, %s125
    %p134 = scmp.eq.s32.totalorder %s14, 1
    %p135 = por %p133, %p134
    %p136 = scmp.ne.s32.totalorder %s125, %s126
    %p137 = scmp.eq.s32.totalorder %s14, 0
    %p138 = por %p136, %p137
    %p139 = scmp.ne.s32.totalorder %s125, %s126
    %p140 = scmp.eq.s32.totalorder %s15, 1
    %p141 = por %p139, %p140
    %p143 = scmp.ne.s32.totalorder %s126, %s142
    %p144 = scmp.eq.s32.totalorder %s15, 0
    %p145 = por %p143, %p144
    %p146 = scmp.le.s32.totalorder 1, %s9
    %p147 = scmp.lt.s32.totalorder %s9, 3
    %p148 = pnand %p146, %p147
    %p149 = pneg %p148
    // Predicated region
    $region9: #{blip_decoder_v2_forward.54} parent=5 // pred_check
      _
    $region10: #{blip_decoder_v2_forward.54} parent=5 // pred_check_branch
      %151 = sbr.rel (%p148) target = $region12
    $region11: #{blip_decoder_v2_forward.54} parent=5 // pred_region
      %s152 = ssub.s32 %s9, 1
      // Predicated region
      $region13: #{blip_decoder_v2_forward.54} parent=11 // pred_check
        %p153 = pneg %p110
      $region14: #{blip_decoder_v2_forward.54} parent=11 // pred_check_branch
        %155 = sbr.rel (%p153) target = $region16
      $region15: #{blip_decoder_v2_forward.54} parent=11 // pred_region
        %p156 = scmp.lt.s32.totalorder %s20, 0
        %s157 = scalar_select %p156, %s20, 0
        %s158 = scalar_lea.vmem %s2, %s157
      $region16: #{blip_decoder_v2_forward.54} parent=11 // pred_fallthru
        _
    $region12: #{blip_decoder_v2_forward.54} parent=5 // pred_fallthru
      _
    %p159 = scmp.lt.s32.totalorder %s9, 2
    // Predicated region
    $region17: #{blip_decoder_v2_forward.54} parent=5 // pred_check
      %p160 = pneg %p159
    $region18: #{blip_decoder_v2_forward.54} parent=5 // pred_check_branch
      %162 = sbr.rel (%p160) target = $region20
    $region19: #{blip_decoder_v2_forward.54} parent=5 // pred_region
      // Predicated region
      $region21: #{blip_decoder_v2_forward.54} parent=19 // pred_check
        %p163 = pneg %p50
      $region22: #{blip_decoder_v2_forward.54} parent=19 // pred_check_branch
        %165 = sbr.rel (%p163) target = $region24
      $region23: #{blip_decoder_v2_forward.54} parent=19 // pred_region
        %s166 = smul.u32 4, %s18
        %p167 = scmp.lt.s32.totalorder %s16, 0
        %s168 = scalar_select %p167, %s16, 0
        %p169 = scmp.lt.s32.totalorder %s166, 7
        %s170 = scalar_select %p169, %s166, 7
        %s171 = smul.addr %s168, 8
        %s172 = sadd.s32 %s170, %s171
        %s173 = smul.addr %s172, 8
        %s174 = scalar_lea.vmem %s0, %s173
        %s175 = smul.u32 4, %s18
      $region24: #{blip_decoder_v2_forward.54} parent=19 // pred_fallthru
        _
      // Predicated region
      $region25: #{blip_decoder_v2_forward.54} parent=19 // pred_check
        %p176 = pneg %p78
      $region26: #{blip_decoder_v2_forward.54} parent=19 // pred_check_branch
        %178 = sbr.rel (%p176) target = $region28
      $region27: #{blip_decoder_v2_forward.54} parent=19 // pred_region
        %s179 = smul.u32 64, %s18
        %p180 = scmp.lt.s32.totalorder %s179, 127
        %s181 = scalar_select %p180, %s179, 127
        %p182 = scmp.lt.s32.totalorder %s17, 0
        %s183 = scalar_select %p182, %s17, 0
        %s184 = sadd.s32 %s183, %s181
        %s185 = smul.addr %s184, 4
        %s186 = scalar_lea.vmem %s1, %s185
        %s187 = smul.u32 64, %s18
      $region28: #{blip_decoder_v2_forward.54} parent=19 // pred_fallthru
        _
    $region20: #{blip_decoder_v2_forward.54} parent=5 // pred_fallthru
      _
    %p188 = scmp.le.s32.totalorder 1, %s9
    %p189 = scmp.lt.s32.totalorder %s9, 3
    %p190 = pnand %p188, %p189
    %p191 = pneg %p190
    // Predicated region
    $region29: #{blip_decoder_v2_forward.54} parent=5 // pred_check
      _
    $region30: #{blip_decoder_v2_forward.54} parent=5 // pred_check_branch
      %193 = sbr.rel (%p190) target = $region32
    $region31: #{blip_decoder_v2_forward.54} parent=5 // pred_region
      %s194 = ssub.s32 %s9, 1
      %s195 = smul.u32 4, %s21
      %p196 = scmp.lt.s32.totalorder %s19, 0
      %s197 = scalar_select %p196, %s19, 0
      %p198 = scmp.lt.s32.totalorder %s195, 7
      %s199 = scalar_select %p198, %s195, 7
      %s200 = smul.addr %s197, 8
      %s201 = sadd.s32 %s199, %s200
      %s202 = smul.addr %s201, 8
      %s203 = scalar_lea.vmem %s0, %s202
      %p204 = pneg %p56
      %p205 = pneg %p53
      %s206 = smul.u32 64, %s21
      %p207 = scmp.lt.s32.totalorder %s206, 127
      %s208 = scalar_select %p207, %s206, 127
      %p209 = scmp.lt.s32.totalorder %s20, 0
      %s210 = scalar_select %p209, %s20, 0
      %s211 = sadd.s32 %s210, %s208
      %s212 = smul.addr %s211, 4
      %s213 = scalar_lea.vmem %s1, %s212
      %p214 = pneg %p84
      %p215 = pneg %p81
      %p216 = scmp.lt.s32.totalorder %s20, 0
      %s217 = scalar_select %p216, %s20, 0
      %s218 = scalar_lea.vmem %s2, %s217
      %p219 = pneg %p110
      %p220 = pneg %p107
      %p221 = pneg %p138
      %p222 = pneg %p135
      %p223 = scmp.lt.s32.totalorder %s19, 0
      %s224 = scalar_select %p223, %s19, 0
      %p225 = scmp.lt.s32.totalorder %s20, 0
      %s226 = scalar_select %p225, %s20, 0
      %s227 = sadd.s32 %s226, %s224
      %s228 = smul.addr %s227, 8
      %s229 = scalar_lea.vmem %s3, %s228
      %s230 = smul.u32 4, %s21
      %p231 = scmp.lt.s32.totalorder %s19, 0
      %s232 = scalar_select %p231, %s19, 0
      %p233 = scmp.lt.s32.totalorder %s230, 7
      %s234 = scalar_select %p233, %s230, 7
      %s235 = smul.addr %s232, 8
      %s236 = sadd.s32 %s234, %s235
      %s237 = smul.addr %s236, 8
      %s238 = scalar_lea.vmem %s0, %s237
      %s239 = smul.u32 4, %s21
      %s240 = smul.u32 64, %s21
      %p241 = scmp.lt.s32.totalorder %s240, 127
      %s242 = scalar_select %p241, %s240, 127
      %p243 = scmp.lt.s32.totalorder %s20, 0
      %s244 = scalar_select %p243, %s20, 0
      %s245 = sadd.s32 %s244, %s242
      %s246 = smul.addr %s245, 4
      %s247 = scalar_lea.vmem %s1, %s246
      %s248 = smul.u32 64, %s21
      %p249 = scmp.lt.s32.totalorder %s20, 0
      %s250 = scalar_select %p249, %s20, 0
      %s251 = scalar_lea.vmem %s2, %s250
      %p252 = scmp.lt.s32.totalorder %s19, 0
      %s253 = scalar_select %p252, %s19, 0
      %p254 = scmp.lt.s32.totalorder %s20, 0
      %s255 = scalar_select %p254, %s20, 0
      %s256 = sadd.s32 %s255, %s253
      %s257 = smul.addr %s256, 8
      %s258 = scalar_lea.vmem %s3, %s257
      %p260 = scmp.eq.s32.totalorder %s21, 0
      // Predicated region
      $region33: #{blip_decoder_v2_forward.54} parent=31 // pred_check
        %p261 = pneg %p260
      $region34: #{blip_decoder_v2_forward.54} parent=31 // pred_check_branch
        %263 = sbr.rel (%p261) target = $region36
      $region35: #{blip_decoder_v2_forward.54} parent=31 // pred_region
        %264 = vst [vmem:[#allocation2] sm:$0xff] 0.0
      $region36: #{blip_decoder_v2_forward.54} parent=31 // pred_fallthru
        _
      %v265 = vld [vmem:[#allocation2] sm:$0xff]
      %v266 = vld [vmem:[%s238] sm:$0xff]
      %v267 = vld [vmem:[%s238 + $0x8] sm:$0xff]
      %v268 = vld [vmem:[%s238 + $0x10] sm:$0xff]
      %v269 = vld [vmem:[%s238 + $0x18] sm:$0xff]
      %v270 = vpack.c.bf16 %v266, %v266
      %v271 = vpack.c.bf16 %v267, %v267
      %v272 = vpack.c.bf16 %v268, %v268
      %v273 = vpack.c.bf16 %v269, %v269
      %v274 = vld [vmem:[%s247] sm:$0xf]
      %v275 = vld [vmem:[%s247 + $0x4] sm:$0xf]
      %v276 = vld [vmem:[%s247 + $0x8] sm:$0xf]
      %v277 = vld [vmem:[%s247 + $0xc] sm:$0xf]
      %v278 = vld [vmem:[%s247 + $0x10] sm:$0xf]
      %v279 = vld [vmem:[%s247 + $0x14] sm:$0xf]
      %v280 = vld [vmem:[%s247 + $0x18] sm:$0xf]
      %v281 = vld [vmem:[%s247 + $0x1c] sm:$0xf]
      %v282 = vld [vmem:[%s247 + $0x20] sm:$0xf]
      %v283 = vld [vmem:[%s247 + $0x24] sm:$0xf]
      %v284 = vld [vmem:[%s247 + $0x28] sm:$0xf]
      %v285 = vld [vmem:[%s247 + $0x2c] sm:$0xf]
      %v286 = vld [vmem:[%s247 + $0x30] sm:$0xf]
      %v287 = vld [vmem:[%s247 + $0x34] sm:$0xf]
      %v288 = vld [vmem:[%s247 + $0x38] sm:$0xf]
      %v289 = vld [vmem:[%s247 + $0x3c] sm:$0xf]
      %v290 = vld [vmem:[%s247 + $0x40] sm:$0xf]
      %v291 = vld [vmem:[%s247 + $0x44] sm:$0xf]
      %v292 = vld [vmem:[%s247 + $0x48] sm:$0xf]
      %v293 = vld [vmem:[%s247 + $0x4c] sm:$0xf]
      %v294 = vld [vmem:[%s247 + $0x50] sm:$0xf]
      %v295 = vld [vmem:[%s247 + $0x54] sm:$0xf]
      %v296 = vld [vmem:[%s247 + $0x58] sm:$0xf]
      %v297 = vld [vmem:[%s247 + $0x5c] sm:$0xf]
      %v298 = vld [vmem:[%s247 + $0x60] sm:$0xf]
      %v299 = vld [vmem:[%s247 + $0x64] sm:$0xf]
      %v300 = vld [vmem:[%s247 + $0x68] sm:$0xf]
      %v301 = vld [vmem:[%s247 + $0x6c] sm:$0xf]
      %v302 = vld [vmem:[%s247 + $0x70] sm:$0xf]
      %v303 = vld [vmem:[%s247 + $0x74] sm:$0xf]
      %v304 = vld [vmem:[%s247 + $0x78] sm:$0xf]
      %v305 = vld [vmem:[%s247 + $0x7c] sm:$0xf]
      %v306 = vld [vmem:[%s247 + $0x80] sm:$0xf]
      %v307 = vld [vmem:[%s247 + $0x84] sm:$0xf]
      %v308 = vld [vmem:[%s247 + $0x88] sm:$0xf]
      %v309 = vld [vmem:[%s247 + $0x8c] sm:$0xf]
      %v310 = vld [vmem:[%s247 + $0x90] sm:$0xf]
      %v311 = vld [vmem:[%s247 + $0x94] sm:$0xf]
      %v312 = vld [vmem:[%s247 + $0x98] sm:$0xf]
      %v313 = vld [vmem:[%s247 + $0x9c] sm:$0xf]
      %v314 = vld [vmem:[%s247 + $0xa0] sm:$0xf]
      %v315 = vld [vmem:[%s247 + $0xa4] sm:$0xf]
      %v316 = vld [vmem:[%s247 + $0xa8] sm:$0xf]
      %v317 = vld [vmem:[%s247 + $0xac] sm:$0xf]
      %v318 = vld [vmem:[%s247 + $0xb0] sm:$0xf]
      %v319 = vld [vmem:[%s247 + $0xb4] sm:$0xf]
      %v320 = vld [vmem:[%s247 + $0xb8] sm:$0xf]
      %v321 = vld [vmem:[%s247 + $0xbc] sm:$0xf]
      %v322 = vld [vmem:[%s247 + $0xc0] sm:$0xf]
      %v323 = vld [vmem:[%s247 + $0xc4] sm:$0xf]
      %v324 = vld [vmem:[%s247 + $0xc8] sm:$0xf]
      %v325 = vld [vmem:[%s247 + $0xcc] sm:$0xf]
      %v326 = vld [vmem:[%s247 + $0xd0] sm:$0xf]
      %v327 = vld [vmem:[%s247 + $0xd4] sm:$0xf]
      %v328 = vld [vmem:[%s247 + $0xd8] sm:$0xf]
      %v329 = vld [vmem:[%s247 + $0xdc] sm:$0xf]
      %v330 = vld [vmem:[%s247 + $0xe0] sm:$0xf]
      %v331 = vld [vmem:[%s247 + $0xe4] sm:$0xf]
      %v332 = vld [vmem:[%s247 + $0xe8] sm:$0xf]
      %v333 = vld [vmem:[%s247 + $0xec] sm:$0xf]
      %v334 = vld [vmem:[%s247 + $0xf0] sm:$0xf]
      %v335 = vld [vmem:[%s247 + $0xf4] sm:$0xf]
      %v336 = vld [vmem:[%s247 + $0xf8] sm:$0xf]
      %v337 = vld [vmem:[%s247 + $0xfc] sm:$0xf]
      %v402 = vunpack.c.l.b16 %v274
      %v403 = vunpack.c.l.b16 %v275
      %v404 = vunpack.c.l.b16 %v276
      %v405 = vunpack.c.l.b16 %v277
      %v406 = vunpack.c.l.b16 %v278
      %v407 = vunpack.c.l.b16 %v279
      %v408 = vunpack.c.l.b16 %v280
      %v409 = vunpack.c.l.b16 %v281
      %v410 = vunpack.c.l.b16 %v282
      %v411 = vunpack.c.l.b16 %v283
      %v412 = vunpack.c.l.b16 %v284
      %v413 = vunpack.c.l.b16 %v285
      %v414 = vunpack.c.l.b16 %v286
      %v415 = vunpack.c.l.b16 %v287
      %v416 = vunpack.c.l.b16 %v288
      %v417 = vunpack.c.l.b16 %v289
      %v418 = vunpack.c.l.b16 %v290
      %v419 = vunpack.c.l.b16 %v291
      %v420 = vunpack.c.l.b16 %v292
      %v421 = vunpack.c.l.b16 %v293
      %v422 = vunpack.c.l.b16 %v294
      %v423 = vunpack.c.l.b16 %v295
      %v424 = vunpack.c.l.b16 %v296
      %v425 = vunpack.c.l.b16 %v297
      %v426 = vunpack.c.l.b16 %v298
      %v427 = vunpack.c.l.b16 %v299
      %v428 = vunpack.c.l.b16 %v300
      %v429 = vunpack.c.l.b16 %v301
      %v430 = vunpack.c.l.b16 %v302
      %v431 = vunpack.c.l.b16 %v303
      %v432 = vunpack.c.l.b16 %v304
      %v433 = vunpack.c.l.b16 %v305
      %v434 = vunpack.c.l.b16 %v306
      %v435 = vunpack.c.l.b16 %v307
      %v436 = vunpack.c.l.b16 %v308
      %v437 = vunpack.c.l.b16 %v309
      %v438 = vunpack.c.l.b16 %v310
      %v439 = vunpack.c.l.b16 %v311
      %v440 = vunpack.c.l.b16 %v312
      %v441 = vunpack.c.l.b16 %v313
      %v442 = vunpack.c.l.b16 %v314
      %v443 = vunpack.c.l.b16 %v315
      %v444 = vunpack.c.l.b16 %v316
      %v445 = vunpack.c.l.b16 %v317
      %v446 = vunpack.c.l.b16 %v318
      %v447 = vunpack.c.l.b16 %v319
      %v448 = vunpack.c.l.b16 %v320
      %v449 = vunpack.c.l.b16 %v321
      %v450 = vunpack.c.l.b16 %v322
      %v451 = vunpack.c.l.b16 %v323
      %v452 = vunpack.c.l.b16 %v324
      %v453 = vunpack.c.l.b16 %v325
      %v454 = vunpack.c.l.b16 %v326
      %v455 = vunpack.c.l.b16 %v327
      %v456 = vunpack.c.l.b16 %v328
      %v457 = vunpack.c.l.b16 %v329
      %v458 = vunpack.c.l.b16 %v330
      %v459 = vunpack.c.l.b16 %v331
      %v460 = vunpack.c.l.b16 %v332
      %v461 = vunpack.c.l.b16 %v333
      %v462 = vunpack.c.l.b16 %v334
      %v463 = vunpack.c.l.b16 %v335
      %v464 = vunpack.c.l.b16 %v336
      %v465 = vunpack.c.l.b16 %v337
      %v466 = vpack.c.b16 %v403, %v402
      %v467 = vpack.c.b16 %v405, %v404
      %v468 = vpack.c.b16 %v407, %v406
      %v469 = vpack.c.b16 %v409, %v408
      %v470 = vpack.c.b16 %v411, %v410
      %v471 = vpack.c.b16 %v413, %v412
      %v472 = vpack.c.b16 %v415, %v414
      %v473 = vpack.c.b16 %v417, %v416
      %v474 = vpack.c.b16 %v419, %v418
      %v475 = vpack.c.b16 %v421, %v420
      %v476 = vpack.c.b16 %v423, %v422
      %v477 = vpack.c.b16 %v425, %v424
      %v478 = vpack.c.b16 %v427, %v426
      %v479 = vpack.c.b16 %v429, %v428
      %v480 = vpack.c.b16 %v431, %v430
      %v481 = vpack.c.b16 %v433, %v432
      %v482 = vpack.c.b16 %v435, %v434
      %v483 = vpack.c.b16 %v437, %v436
      %v484 = vpack.c.b16 %v439, %v438
      %v485 = vpack.c.b16 %v441, %v440
      %v486 = vpack.c.b16 %v443, %v442
      %v487 = vpack.c.b16 %v445, %v444
      %v488 = vpack.c.b16 %v447, %v446
      %v489 = vpack.c.b16 %v449, %v448
      %v490 = vpack.c.b16 %v451, %v450
      %v491 = vpack.c.b16 %v453, %v452
      %v492 = vpack.c.b16 %v455, %v454
      %v493 = vpack.c.b16 %v457, %v456
      %v494 = vpack.c.b16 %v459, %v458
      %v495 = vpack.c.b16 %v461, %v460
      %v496 = vpack.c.b16 %v463, %v462
      %v497 = vpack.c.b16 %v465, %v464
      %530 = vmatprep.subr.bf16.mxu0 0
      %531 = vmatpush1.bf16.msra.mxu0 %v466
      %532 = vmatprep.subr.bf16.mxu0 0
      %533 = vmatpush1.bf16.msra.mxu0 %v467
      %534 = vmatprep.subr.bf16.mxu0 0
      %535 = vmatpush1.bf16.msra.mxu0 %v468
      %536 = vmatprep.subr.bf16.mxu0 0
      %537 = vmatpush1.bf16.msra.mxu0 %v469
      %538 = vmatprep.subr.bf16.mxu0 0
      %539 = vmatpush1.bf16.msra.mxu0 %v470
      %540 = vmatprep.subr.bf16.mxu0 0
      %541 = vmatpush1.bf16.msra.mxu0 %v471
      %542 = vmatprep.subr.bf16.mxu0 0
      %543 = vmatpush1.bf16.msra.mxu0 %v472
      %544 = vmatprep.subr.bf16.mxu0 0
      %545 = vmatpush1.bf16.msra.mxu0 %v473
      %546 = vmatprep.subr.bf16.mxu0 0
      %547 = vmatpush1.bf16.msra.mxu0 %v474
      %548 = vmatprep.subr.bf16.mxu0 0
      %549 = vmatpush1.bf16.msra.mxu0 %v475
      %550 = vmatprep.subr.bf16.mxu0 0
      %551 = vmatpush1.bf16.msra.mxu0 %v476
      %552 = vmatprep.subr.bf16.mxu0 0
      %553 = vmatpush1.bf16.msra.mxu0 %v477
      %554 = vmatprep.subr.bf16.mxu0 0
      %555 = vmatpush1.bf16.msra.mxu0 %v478
      %556 = vmatprep.subr.bf16.mxu0 0
      %557 = vmatpush1.bf16.msra.mxu0 %v479
      %558 = vmatprep.subr.bf16.mxu0 0
      %559 = vmatpush1.bf16.msra.mxu0 %v480
      %560 = vmatprep.subr.bf16.mxu0 0
      %561 = vmatpush1.bf16.msra.mxu0 %v481
      %562 = vmatprep.mubr.bf16.mxu0 %v271
      %563 = vmatmul.mubr.bf16.gmra.mrb[0].mxu0 %v270
      %v564 = vpop.f32.mrb[0].mxu0
      %v565 = vadd.f32 0.0, %v564
      %v566 = vpop.f32.mrb[0].mxu0
      %v567 = vpop.f32.mrb[0].mxu0
      %v568 = vpop.f32.mrb[0].mxu0
      %569 = vdwg.mxu0
      %570 = vmatprep.subr.bf16.mxu0 0
      %571 = vmatpush1.bf16.msra.mxu0 %v482
      %572 = vmatprep.subr.bf16.mxu0 0
      %573 = vmatpush1.bf16.msra.mxu0 %v483
      %574 = vmatprep.subr.bf16.mxu0 0
      %575 = vmatpush1.bf16.msra.mxu0 %v484
      %576 = vmatprep.subr.bf16.mxu0 0
      %577 = vmatpush1.bf16.msra.mxu0 %v485
      %578 = vmatprep.subr.bf16.mxu0 0
      %579 = vmatpush1.bf16.msra.mxu0 %v486
      %580 = vmatprep.subr.bf16.mxu0 0
      %581 = vmatpush1.bf16.msra.mxu0 %v487
      %582 = vmatprep.subr.bf16.mxu0 0
      %583 = vmatpush1.bf16.msra.mxu0 %v488
      %584 = vmatprep.subr.bf16.mxu0 0
      %585 = vmatpush1.bf16.msra.mxu0 %v489
      %586 = vmatprep.subr.bf16.mxu0 0
      %587 = vmatpush1.bf16.msra.mxu0 %v490
      %588 = vmatprep.subr.bf16.mxu0 0
      %589 = vmatpush1.bf16.msra.mxu0 %v491
      %590 = vmatprep.subr.bf16.mxu0 0
      %591 = vmatpush1.bf16.msra.mxu0 %v492
      %592 = vmatprep.subr.bf16.mxu0 0
      %593 = vmatpush1.bf16.msra.mxu0 %v493
      %594 = vmatprep.subr.bf16.mxu0 0
      %595 = vmatpush1.bf16.msra.mxu0 %v494
      %596 = vmatprep.subr.bf16.mxu0 0
      %597 = vmatpush1.bf16.msra.mxu0 %v495
      %598 = vmatprep.subr.bf16.mxu0 0
      %599 = vmatpush1.bf16.msra.mxu0 %v496
      %600 = vmatprep.subr.bf16.mxu0 0
      %601 = vmatpush1.bf16.msra.mxu0 %v497
      %602 = vmatprep.mubr.bf16.mxu0 %v273
      %603 = vmatmul.mubr.bf16.gmra.mrb[0].mxu0 %v272
      %v604 = vpop.f32.mrb[0].mxu0
      %v605 = vadd.f32 %v565, %v604
      %v606 = vpop.f32.mrb[0].mxu0
      %v607 = vpop.f32.mrb[0].mxu0
      %v608 = vpop.f32.mrb[0].mxu0
      %609 = vdwg.mxu0
      %v610 = vadd.f32 %v265, %v605
      %611 = vst [vmem:[#allocation2] sm:$0xff] %v610
      %p612 = scmp.eq.s32.totalorder %s21, 1
      // Predicated region
      $region37: #{blip_decoder_v2_forward.54} parent=31 // pred_check
        %p613 = pneg %p612
      $region38: #{blip_decoder_v2_forward.54} parent=31 // pred_check_branch
        %615 = sbr.rel (%p613) target = $region40
      $region39: #{blip_decoder_v2_forward.54} parent=31 // pred_region
        %v616 = vld [vmem:[#allocation2] sm:$0xff]
        %v617 = vld [vmem:[%s251] sm:$0x1]
        %v619 = vlaneseq
        %v620 = vshrl.u32 %v619, 7
        %v621 = vsub.s32 0, %v620
        %v622 = vrot.slane %v617, %v621
        %v624 = vadd.f32 %v616, %v622
        %625 = vst [vmem:[%s258] sm:$0xff] %v624
      $region40: #{blip_decoder_v2_forward.54} parent=31 // pred_fallthru
        _
      %p626 = scmp.lt.s32.totalorder %s19, 0
      %s627 = scalar_select %p626, %s19, 0
      %p628 = scmp.lt.s32.totalorder %s20, 0
      %s629 = scalar_select %p628, %s20, 0
      %s630 = sadd.s32 %s629, %s627
      %s631 = smul.addr %s630, 8
      %s632 = scalar_lea.vmem %s3, %s631
      // Predicated region
      $region41: #{blip_decoder_v2_forward.54} parent=31 // pred_check
        %p633 = pneg %p135
      $region42: #{blip_decoder_v2_forward.54} parent=31 // pred_check_branch
        %635 = sbr.rel (%p633) target = $region44
      $region43: #{blip_decoder_v2_forward.54} parent=31 // pred_region
        _
      $region44: #{blip_decoder_v2_forward.54} parent=31 // pred_fallthru
        _
      // Predicated region
      $region45: #{blip_decoder_v2_forward.54} parent=31 // pred_check
        %p636 = pneg %p135
      $region46: #{blip_decoder_v2_forward.54} parent=31 // pred_check_branch
        %638 = sbr.rel (%p636) target = $region48
      $region47: #{blip_decoder_v2_forward.54} parent=31 // pred_region
        %p639 = scmp.lt.s32.totalorder %s19, 0
        %s640 = scalar_select %p639, %s19, 0
        %p641 = scmp.lt.s32.totalorder %s20, 0
        %s642 = scalar_select %p641, %s20, 0
        %s643 = sadd.s32 %s642, %s640
        %s644 = smul.addr %s643, 8
        %s645 = scalar_lea.vmem %s3, %s644
      $region48: #{blip_decoder_v2_forward.54} parent=31 // pred_fallthru
        _
    $region32: #{blip_decoder_v2_forward.54} parent=5 // pred_fallthru
      _
    %p646 = scmp.le.s32.totalorder 2, %s9
    // Predicated region
    $region49: #{blip_decoder_v2_forward.54} parent=5 // pred_check
      %p647 = pneg %p646
    $region50: #{blip_decoder_v2_forward.54} parent=5 // pred_check_branch
      %649 = sbr.rel (%p647) target = $region52
    $region51: #{blip_decoder_v2_forward.54} parent=5 // pred_region
      %s650 = ssub.s32 %s9, 2
    $region52: #{blip_decoder_v2_forward.54} parent=5 // pred_fallthru
      _
  $region6: #{blip_decoder_v2_forward.54} parent=0 // loop_footer
    %s13 = sadd.s32 1, %s9
  $region7: #{blip_decoder_v2_forward.54} parent=0 // loop_footer_branch
    %8 = sbr.rel target = $region3
  $region8: #{blip_decoder_v2_forward.54} parent=0 // loop_exit
    _

// kernel: blip_decoder_v2_forward.55
$region0: #{blip_decoder_v2_forward.55}
  #allocation0 [shape = 'u32[]', space=smem, size = 0x4, offset = 0x4, fixed_abs, tag = 'smem constant byte address 0x4 - core index']
  #allocation1 [shape = 'u32[144,128]{1,0:T(1,128)}', space=vmem, size = 0x12000, scoped, tag = 'internal scratch']
  %s0 = inlined_call_operand.vmem [shape: f32[16,32], index: 0, kind: input, shape index: {}]
  %s1 = inlined_call_operand.vmem [shape: f32[1,32], index: 1, kind: input, shape index: {}]
  %s2 = inlined_call_operand.vmem [shape: f32[1,32], index: 2, kind: input, shape index: {}]
  %s3 = inlined_call_operand.vmem [shape: f32[16,32], index: 3, kind: output, shape index: {}]
  %s4 = sld [smem:[#allocation0]]
  $region22: #{blip_decoder_v2_forward.55} parent=0
    _
  %s6 = ssub.s32 1, %s4
  %s7 = scalar_select 0, %s6, %s4
  // Predicated region
  $region2: #{blip_decoder_v2_forward.55} parent=0 // pred_check
    _
  $region3: #{blip_decoder_v2_forward.55} parent=0 // pred_check_branch
    %9 = sbr.rel (0) target = $region5
  $region4: #{blip_decoder_v2_forward.55} parent=0 // pred_region
    _
  $region5: #{blip_decoder_v2_forward.55} parent=0 // pred_fallthru
    _
  // Predicated region
  $region6: #{blip_decoder_v2_forward.55} parent=0 // pred_check
    _
  $region7: #{blip_decoder_v2_forward.55} parent=0 // pred_check_branch
    %11 = sbr.rel (0) target = $region9
  $region8: #{blip_decoder_v2_forward.55} parent=0 // pred_region
    _
  $region9: #{blip_decoder_v2_forward.55} parent=0 // pred_fallthru
    _
  // Predicated region
  $region10: #{blip_decoder_v2_forward.55} parent=0 // pred_check
    _
  $region11: #{blip_decoder_v2_forward.55} parent=0 // pred_check_branch
    %13 = sbr.rel (0) target = $region13
  $region12: #{blip_decoder_v2_forward.55} parent=0 // pred_region
    _
  $region13: #{blip_decoder_v2_forward.55} parent=0 // pred_fallthru
    _
  %v14 = vld [vmem:[%s0] sm:$0xff]
  %v15 = vld [vmem:[%s0 + $0x8] sm:$0xff]
  %vm16 = vcmask 261120
  %v17 = vsel %vm16, %v14, 0.0
  %18 = vadd.xlane.f32.xlu0 %v17
  %v19 = vpop.xlane.xlu0 %18
  %v20 = vsel %vm16, %v15, 0.0
  %21 = vadd.xlane.f32.xlu0 %v20
  %v22 = vpop.xlane.xlu0 %21
  %v23 = vrcp.pop 32.0
  %v24 = vmul.f32 %v19, %v23
  %v25 = vmul.f32 %v22, %v23
  %v26 = vsub.f32 %v14, %v24
  %v27 = vsub.f32 %v15, %v25
  %v28 = vmul.f32 %v26, %v26
  %v29 = vmul.f32 %v27, %v27
  %v30 = vsel %vm16, %v28, 0.0
  %31 = vadd.xlane.f32.xlu0 %v30
  %v32 = vpop.xlane.xlu0 %31
  %v33 = vsel %vm16, %v29, 0.0
  %34 = vadd.xlane.f32.xlu0 %v33
  %v35 = vpop.xlane.xlu0 %34
  %v36 = vmul.f32 %v32, %v23
  %v37 = vmul.f32 %v35, %v23
  %v38 = vadd.f32 %v36, 1e-06
  %v39 = vadd.f32 %v37, 1e-06
  %v40 = vrsqrt.pop %v38
  %v41 = vrsqrt.pop %v39
  %v42 = vmul.f32 %v26, %v40
  %v43 = vmul.f32 %v27, %v41
  %v44 = vld [vmem:[%s1] sm:$0x1]
  %v46 = vlaneseq
  %v47 = vshrl.u32 %v46, 7
  %v48 = vsub.s32 0, %v47
  %v49 = vrot.slane %v44, %v48
  %v51 = vmul.f32 %v42, %v49
  %v52 = vmul.f32 %v43, %v49
  %v53 = vld [vmem:[%s2] sm:$0x1]
  %v55 = vlaneseq
  %v56 = vshrl.u32 %v55, 7
  %v57 = vsub.s32 0, %v56
  %v58 = vrot.slane %v53, %v57
  %v60 = vadd.f32 %v51, %v58
  %v61 = vadd.f32 %v52, %v58
  %62 = vst.msk [vmem:[%s3] sm:$0xff] %vm16, %v60
  %63 = vst.msk [vmem:[%s3 + $0x8] sm:$0xff] %vm16, %v61
  // Predicated region
  $region14: #{blip_decoder_v2_forward.55} parent=0 // pred_check
    _
  $region15: #{blip_decoder_v2_forward.55} parent=0 // pred_check_branch
    %65 = sbr.rel (0) target = $region17
  $region16: #{blip_decoder_v2_forward.55} parent=0 // pred_region
    _
  $region17: #{blip_decoder_v2_forward.55} parent=0 // pred_fallthru
    _
  // Predicated region
  $region18: #{blip_decoder_v2_forward.55} parent=0 // pred_check
    _
  $region19: #{blip_decoder_v2_forward.55} parent=0 // pred_check_branch
    %67 = sbr.rel (0) target = $region21
  $region20: #{blip_decoder_v2_forward.55} parent=0 // pred_region
    _
  $region21: #{blip_decoder_v2_forward.55} parent=0 // pred_fallthru
    _

// kernel: blip_decoder_v2_forward.56
$region0: #{blip_decoder_v2_forward.56}
  #allocation0 [shape = 'u32[]', space=smem, size = 0x4, offset = 0x4, fixed_abs, tag = 'smem constant byte address 0x4 - core index']
  #allocation1 [shape = 'u32[144,128]{1,0:T(1,128)}', space=vmem, size = 0x12000, scoped, tag = 'internal scratch']
  #allocation2 [shape = 'f32[16,128]{1,0:T(8,128)}', space=vmem, size = 0x2000, scoped, tag = 'scratch operand']
  %s0 = inlined_call_operand.vmem [shape: f32[16,128], index: 0, kind: input, shape index: {}]
  %s1 = inlined_call_operand.vmem [shape: bf16[128,128], index: 1, kind: input, shape index: {}]
  %s2 = inlined_call_operand.vmem [shape: f32[1,128], index: 2, kind: input, shape index: {}]
  %s3 = inlined_call_operand.vmem [shape: f32[16,128], index: 3, kind: output, shape index: {}]
  %s4 = sld [smem:[#allocation0]]
  $region30: #{blip_decoder_v2_forward.56} parent=0
    _
  %s6 = ssub.s32 1, %s4
  %s7 = scalar_select 0, %s6, %s4
  // Predicated region
  $region2: #{blip_decoder_v2_forward.56} parent=0 // pred_check
    _
  $region3: #{blip_decoder_v2_forward.56} parent=0 // pred_check_branch
    %9 = sbr.rel (0) target = $region5
  $region4: #{blip_decoder_v2_forward.56} parent=0 // pred_region
    _
  $region5: #{blip_decoder_v2_forward.56} parent=0 // pred_fallthru
    _
  // Predicated region
  $region6: #{blip_decoder_v2_forward.56} parent=0 // pred_check
    _
  $region7: #{blip_decoder_v2_forward.56} parent=0 // pred_check_branch
    %11 = sbr.rel (0) target = $region9
  $region8: #{blip_decoder_v2_forward.56} parent=0 // pred_region
    _
  $region9: #{blip_decoder_v2_forward.56} parent=0 // pred_fallthru
    _
  // Predicated region
  $region10: #{blip_decoder_v2_forward.56} parent=0 // pred_check
    _
  $region11: #{blip_decoder_v2_forward.56} parent=0 // pred_check_branch
    %13 = sbr.rel (0) target = $region13
  $region12: #{blip_decoder_v2_forward.56} parent=0 // pred_region
    _
  $region13: #{blip_decoder_v2_forward.56} parent=0 // pred_fallthru
    _
  %p15 = scmp.eq.s32.totalorder 0, 0
  // Predicated region
  $region14: #{blip_decoder_v2_forward.56} parent=0 // pred_check
    %p16 = pneg %p15
  $region15: #{blip_decoder_v2_forward.56} parent=0 // pred_check_branch
    %18 = sbr.rel (%p16) target = $region17
  $region16: #{blip_decoder_v2_forward.56} parent=0 // pred_region
    %19 = vst [vmem:[#allocation2] sm:$0xff] 0.0
    %20 = vst [vmem:[#allocation2 + $0x8] sm:$0xff] 0.0
  $region17: #{blip_decoder_v2_forward.56} parent=0 // pred_fallthru
    _
  %v21 = vld [vmem:[#allocation2] sm:$0xff]
  %v22 = vld [vmem:[#allocation2 + $0x8] sm:$0xff]
  %v23 = vld [vmem:[%s0] sm:$0xff]
  %v24 = vld [vmem:[%s0 + $0x8] sm:$0xff]
  %v25 = vpack.c.bf16 %v24, %v23
  %v26 = vld [vmem:[%s1] sm:$0xf]
  %v27 = vld [vmem:[%s1 + $0x4] sm:$0xf]
  %v28 = vld [vmem:[%s1 + $0x8] sm:$0xf]
  %v29 = vld [vmem:[%s1 + $0xc] sm:$0xf]
  %v30 = vld [vmem:[%s1 + $0x10] sm:$0xf]
  %v31 = vld [vmem:[%s1 + $0x14] sm:$0xf]
  %v32 = vld [vmem:[%s1 + $0x18] sm:$0xf]
  %v33 = vld [vmem:[%s1 + $0x1c] sm:$0xf]
  %v34 = vld [vmem:[%s1 + $0x20] sm:$0xf]
  %v35 = vld [vmem:[%s1 + $0x24] sm:$0xf]
  %v36 = vld [vmem:[%s1 + $0x28] sm:$0xf]
  %v37 = vld [vmem:[%s1 + $0x2c] sm:$0xf]
  %v38 = vld [vmem:[%s1 + $0x30] sm:$0xf]
  %v39 = vld [vmem:[%s1 + $0x34] sm:$0xf]
  %v40 = vld [vmem:[%s1 + $0x38] sm:$0xf]
  %v41 = vld [vmem:[%s1 + $0x3c] sm:$0xf]
  %v58 = vunpack.c.l.b16 %v26
  %v59 = vunpack.c.l.b16 %v27
  %v60 = vunpack.c.l.b16 %v28
  %v61 = vunpack.c.l.b16 %v29
  %v62 = vunpack.c.l.b16 %v30
  %v63 = vunpack.c.l.b16 %v31
  %v64 = vunpack.c.l.b16 %v32
  %v65 = vunpack.c.l.b16 %v33
  %v66 = vunpack.c.l.b16 %v34
  %v67 = vunpack.c.l.b16 %v35
  %v68 = vunpack.c.l.b16 %v36
  %v69 = vunpack.c.l.b16 %v37
  %v70 = vunpack.c.l.b16 %v38
  %v71 = vunpack.c.l.b16 %v39
  %v72 = vunpack.c.l.b16 %v40
  %v73 = vunpack.c.l.b16 %v41
  %v74 = vpack.c.b16 %v59, %v58
  %v75 = vpack.c.b16 %v61, %v60
  %v76 = vpack.c.b16 %v63, %v62
  %v77 = vpack.c.b16 %v65, %v64
  %v78 = vpack.c.b16 %v67, %v66
  %v79 = vpack.c.b16 %v69, %v68
  %v80 = vpack.c.b16 %v71, %v70
  %v81 = vpack.c.b16 %v73, %v72
  %90 = vmatprep.subr.bf16.mxu0 0
  %91 = vmatpush1.bf16.msra.mxu0 %v74
  %92 = vmatprep.subr.bf16.mxu0 0
  %93 = vmatpush1.bf16.msra.mxu0 %v75
  %94 = vmatprep.subr.bf16.mxu0 0
  %95 = vmatpush1.bf16.msra.mxu0 %v76
  %96 = vmatprep.subr.bf16.mxu0 0
  %97 = vmatpush1.bf16.msra.mxu0 %v77
  %98 = vmatprep.subr.bf16.mxu0 0
  %99 = vmatpush1.bf16.msra.mxu0 %v78
  %100 = vmatprep.subr.bf16.mxu0 0
  %101 = vmatpush1.bf16.msra.mxu0 %v79
  %102 = vmatprep.subr.bf16.mxu0 0
  %103 = vmatpush1.bf16.msra.mxu0 %v80
  %104 = vmatprep.subr.bf16.mxu0 0
  %105 = vmatpush1.bf16.msra.mxu0 %v81
  %106 = vmatprep.subr.bf16.mxu0 0
  %107 = vmatpush1.bf16.msra.mxu0 0
  %108 = vmatprep.subr.bf16.mxu0 0
  %109 = vmatpush1.bf16.msra.mxu0 0
  %110 = vmatprep.subr.bf16.mxu0 0
  %111 = vmatpush1.bf16.msra.mxu0 0
  %112 = vmatprep.subr.bf16.mxu0 0
  %113 = vmatpush1.bf16.msra.mxu0 0
  %114 = vmatprep.subr.bf16.mxu0 0
  %115 = vmatpush1.bf16.msra.mxu0 0
  %116 = vmatprep.subr.bf16.mxu0 0
  %117 = vmatpush1.bf16.msra.mxu0 0
  %118 = vmatprep.subr.bf16.mxu0 0
  %119 = vmatpush1.bf16.msra.mxu0 0
  %120 = vmatprep.subr.bf16.mxu0 0
  %121 = vmatpush1.bf16.msra.mxu0 0
  %122 = vmatprep.mubr.bf16.mxu0 0
  %123 = vmatmul.mubr.bf16.gmra.mrb[0].mxu0 %v25
  %v124 = vpop.f32.mrb[0].mxu0
  %v125 = vadd.f32 0.0, %v124
  %v126 = vpop.f32.mrb[0].mxu0
  %v127 = vpop.f32.mrb[0].mxu0
  %v128 = vadd.f32 0.0, %v127
  %v129 = vpop.f32.mrb[0].mxu0
  %130 = vdwg.mxu0
  %v131 = vadd.f32 %v21, %v125
  %v132 = vadd.f32 %v22, %v128
  %133 = vst [vmem:[#allocation2] sm:$0xff] %v131
  %134 = vst [vmem:[#allocation2 + $0x8] sm:$0xff] %v132
  // Predicated region
  $region18: #{blip_decoder_v2_forward.56} parent=0 // pred_check
    %p135 = pneg %p15
  $region19: #{blip_decoder_v2_forward.56} parent=0 // pred_check_branch
    %137 = sbr.rel (%p135) target = $region21
  $region20: #{blip_decoder_v2_forward.56} parent=0 // pred_region
    %v138 = vld [vmem:[#allocation2] sm:$0xff]
    %v139 = vld [vmem:[#allocation2 + $0x8] sm:$0xff]
    %v140 = vld [vmem:[%s2] sm:$0x1]
    %v142 = vlaneseq
    %v143 = vshrl.u32 %v142, 7
    %v144 = vsub.s32 0, %v143
    %v145 = vrot.slane %v140, %v144
    %v147 = vadd.f32 %v138, %v145
    %v148 = vadd.f32 %v139, %v145
    %149 = vst [vmem:[%s3] sm:$0xff] %v147
    %150 = vst [vmem:[%s3 + $0x8] sm:$0xff] %v148
  $region21: #{blip_decoder_v2_forward.56} parent=0 // pred_fallthru
    _
  // Predicated region
  $region22: #{blip_decoder_v2_forward.56} parent=0 // pred_check
    _
  $region23: #{blip_decoder_v2_forward.56} parent=0 // pred_check_branch
    %152 = sbr.rel (0) target = $region25
  $region24: #{blip_decoder_v2_forward.56} parent=0 // pred_region
    _
  $region25: #{blip_decoder_v2_forward.56} parent=0 // pred_fallthru
    _
  // Predicated region
  $region26: #{blip_decoder_v2_forward.56} parent=0 // pred_check
    _
  $region27: #{blip_decoder_v2_forward.56} parent=0 // pred_check_branch
    %154 = sbr.rel (0) target = $region29
  $region28: #{blip_decoder_v2_forward.56} parent=0 // pred_region
    _
  $region29: #{blip_decoder_v2_forward.56} parent=0 // pred_fallthru
    _

// kernel: blip_decoder_v2_forward.58
$region0: #{blip_decoder_v2_forward.58}
  #allocation0 [shape = 'u32[]', space=smem, size = 0x4, offset = 0x4, fixed_abs, tag = 'smem constant byte address 0x4 - core index']
  #allocation1 [shape = 'u32[144,128]{1,0:T(1,128)}', space=vmem, size = 0x12000, scoped, tag = 'internal scratch']
  #allocation2 [shape = 'f32[16,128]{1,0:T(8,128)}', space=vmem, size = 0x2000, scoped, tag = 'scratch operand']
  %s0 = inlined_call_operand.vmem [shape: f32[16,128], index: 0, kind: input, shape index: {}]
  %s1 = inlined_call_operand.vmem [shape: bf16[128,128], index: 1, kind: input, shape index: {}]
  %s2 = inlined_call_operand.vmem [shape: f32[1,128], index: 2, kind: input, shape index: {}]
  %s3 = inlined_call_operand.vmem [shape: f32[16,128], index: 3, kind: input, shape index: {}]
  %s4 = inlined_call_operand.vmem [shape: f32[16,128], index: 4, kind: output, shape index: {}]
  %s5 = sld [smem:[#allocation0]]
  $region34: #{blip_decoder_v2_forward.58} parent=0
    _
  %s7 = ssub.s32 1, %s5
  %s8 = scalar_select 0, %s7, %s5
  // Predicated region
  $region2: #{blip_decoder_v2_forward.58} parent=0 // pred_check
    _
  $region3: #{blip_decoder_v2_forward.58} parent=0 // pred_check_branch
    %10 = sbr.rel (0) target = $region5
  $region4: #{blip_decoder_v2_forward.58} parent=0 // pred_region
    _
  $region5: #{blip_decoder_v2_forward.58} parent=0 // pred_fallthru
    _
  // Predicated region
  $region6: #{blip_decoder_v2_forward.58} parent=0 // pred_check
    _
  $region7: #{blip_decoder_v2_forward.58} parent=0 // pred_check_branch
    %12 = sbr.rel (0) target = $region9
  $region8: #{blip_decoder_v2_forward.58} parent=0 // pred_region
    _
  $region9: #{blip_decoder_v2_forward.58} parent=0 // pred_fallthru
    _
  // Predicated region
  $region10: #{blip_decoder_v2_forward.58} parent=0 // pred_check
    _
  $region11: #{blip_decoder_v2_forward.58} parent=0 // pred_check_branch
    %14 = sbr.rel (0) target = $region13
  $region12: #{blip_decoder_v2_forward.58} parent=0 // pred_region
    _
  $region13: #{blip_decoder_v2_forward.58} parent=0 // pred_fallthru
    _
  // Predicated region
  $region14: #{blip_decoder_v2_forward.58} parent=0 // pred_check
    _
  $region15: #{blip_decoder_v2_forward.58} parent=0 // pred_check_branch
    %16 = sbr.rel (0) target = $region17
  $region16: #{blip_decoder_v2_forward.58} parent=0 // pred_region
    _
  $region17: #{blip_decoder_v2_forward.58} parent=0 // pred_fallthru
    _
  %p18 = scmp.eq.s32.totalorder 0, 0
  // Predicated region
  $region18: #{blip_decoder_v2_forward.58} parent=0 // pred_check
    %p19 = pneg %p18
  $region19: #{blip_decoder_v2_forward.58} parent=0 // pred_check_branch
    %21 = sbr.rel (%p19) target = $region21
  $region20: #{blip_decoder_v2_forward.58} parent=0 // pred_region
    %22 = vst [vmem:[#allocation2] sm:$0xff] 0.0
    %23 = vst [vmem:[#allocation2 + $0x8] sm:$0xff] 0.0
  $region21: #{blip_decoder_v2_forward.58} parent=0 // pred_fallthru
    _
  %v24 = vld [vmem:[#allocation2] sm:$0xff]
  %v25 = vld [vmem:[#allocation2 + $0x8] sm:$0xff]
  %v26 = vld [vmem:[%s0] sm:$0xff]
  %v27 = vld [vmem:[%s0 + $0x8] sm:$0xff]
  %v28 = vpack.c.bf16 %v27, %v26
  %v29 = vld [vmem:[%s1] sm:$0xf]
  %v30 = vld [vmem:[%s1 + $0x4] sm:$0xf]
  %v31 = vld [vmem:[%s1 + $0x8] sm:$0xf]
  %v32 = vld [vmem:[%s1 + $0xc] sm:$0xf]
  %v33 = vld [vmem:[%s1 + $0x10] sm:$0xf]
  %v34 = vld [vmem:[%s1 + $0x14] sm:$0xf]
  %v35 = vld [vmem:[%s1 + $0x18] sm:$0xf]
  %v36 = vld [vmem:[%s1 + $0x1c] sm:$0xf]
  %v37 = vld [vmem:[%s1 + $0x20] sm:$0xf]
  %v38 = vld [vmem:[%s1 + $0x24] sm:$0xf]
  %v39 = vld [vmem:[%s1 + $0x28] sm:$0xf]
  %v40 = vld [vmem:[%s1 + $0x2c] sm:$0xf]
  %v41 = vld [vmem:[%s1 + $0x30] sm:$0xf]
  %v42 = vld [vmem:[%s1 + $0x34] sm:$0xf]
  %v43 = vld [vmem:[%s1 + $0x38] sm:$0xf]
  %v44 = vld [vmem:[%s1 + $0x3c] sm:$0xf]
  %v61 = vunpack.c.l.b16 %v29
  %v62 = vunpack.c.l.b16 %v30
  %v63 = vunpack.c.l.b16 %v31
  %v64 = vunpack.c.l.b16 %v32
  %v65 = vunpack.c.l.b16 %v33
  %v66 = vunpack.c.l.b16 %v34
  %v67 = vunpack.c.l.b16 %v35
  %v68 = vunpack.c.l.b16 %v36
  %v69 = vunpack.c.l.b16 %v37
  %v70 = vunpack.c.l.b16 %v38
  %v71 = vunpack.c.l.b16 %v39
  %v72 = vunpack.c.l.b16 %v40
  %v73 = vunpack.c.l.b16 %v41
  %v74 = vunpack.c.l.b16 %v42
  %v75 = vunpack.c.l.b16 %v43
  %v76 = vunpack.c.l.b16 %v44
  %v77 = vpack.c.b16 %v62, %v61
  %v78 = vpack.c.b16 %v64, %v63
  %v79 = vpack.c.b16 %v66, %v65
  %v80 = vpack.c.b16 %v68, %v67
  %v81 = vpack.c.b16 %v70, %v69
  %v82 = vpack.c.b16 %v72, %v71
  %v83 = vpack.c.b16 %v74, %v73
  %v84 = vpack.c.b16 %v76, %v75
  %93 = vmatprep.subr.bf16.mxu0 0
  %94 = vmatpush1.bf16.msra.mxu0 %v77
  %95 = vmatprep.subr.bf16.mxu0 0
  %96 = vmatpush1.bf16.msra.mxu0 %v78
  %97 = vmatprep.subr.bf16.mxu0 0
  %98 = vmatpush1.bf16.msra.mxu0 %v79
  %99 = vmatprep.subr.bf16.mxu0 0
  %100 = vmatpush1.bf16.msra.mxu0 %v80
  %101 = vmatprep.subr.bf16.mxu0 0
  %102 = vmatpush1.bf16.msra.mxu0 %v81
  %103 = vmatprep.subr.bf16.mxu0 0
  %104 = vmatpush1.bf16.msra.mxu0 %v82
  %105 = vmatprep.subr.bf16.mxu0 0
  %106 = vmatpush1.bf16.msra.mxu0 %v83
  %107 = vmatprep.subr.bf16.mxu0 0
  %108 = vmatpush1.bf16.msra.mxu0 %v84
  %109 = vmatprep.subr.bf16.mxu0 0
  %110 = vmatpush1.bf16.msra.mxu0 0
  %111 = vmatprep.subr.bf16.mxu0 0
  %112 = vmatpush1.bf16.msra.mxu0 0
  %113 = vmatprep.subr.bf16.mxu0 0
  %114 = vmatpush1.bf16.msra.mxu0 0
  %115 = vmatprep.subr.bf16.mxu0 0
  %116 = vmatpush1.bf16.msra.mxu0 0
  %117 = vmatprep.subr.bf16.mxu0 0
  %118 = vmatpush1.bf16.msra.mxu0 0
  %119 = vmatprep.subr.bf16.mxu0 0
  %120 = vmatpush1.bf16.msra.mxu0 0
  %121 = vmatprep.subr.bf16.mxu0 0
  %122 = vmatpush1.bf16.msra.mxu0 0
  %123 = vmatprep.subr.bf16.mxu0 0
  %124 = vmatpush1.bf16.msra.mxu0 0
  %125 = vmatprep.mubr.bf16.mxu0 0
  %126 = vmatmul.mubr.bf16.gmra.mrb[0].mxu0 %v28
  %v127 = vpop.f32.mrb[0].mxu0
  %v128 = vadd.f32 0.0, %v127
  %v129 = vpop.f32.mrb[0].mxu0
  %v130 = vpop.f32.mrb[0].mxu0
  %v131 = vadd.f32 0.0, %v130
  %v132 = vpop.f32.mrb[0].mxu0
  %133 = vdwg.mxu0
  %v134 = vadd.f32 %v24, %v128
  %v135 = vadd.f32 %v25, %v131
  %136 = vst [vmem:[#allocation2] sm:$0xff] %v134
  %137 = vst [vmem:[#allocation2 + $0x8] sm:$0xff] %v135
  // Predicated region
  $region22: #{blip_decoder_v2_forward.58} parent=0 // pred_check
    %p138 = pneg %p18
  $region23: #{blip_decoder_v2_forward.58} parent=0 // pred_check_branch
    %140 = sbr.rel (%p138) target = $region25
  $region24: #{blip_decoder_v2_forward.58} parent=0 // pred_region
    %v141 = vld [vmem:[#allocation2] sm:$0xff]
    %v142 = vld [vmem:[#allocation2 + $0x8] sm:$0xff]
    %v143 = vld [vmem:[%s2] sm:$0x1]
    %v145 = vlaneseq
    %v146 = vshrl.u32 %v145, 7
    %v147 = vsub.s32 0, %v146
    %v148 = vrot.slane %v143, %v147
    %v150 = vadd.f32 %v141, %v148
    %v151 = vadd.f32 %v142, %v148
    %v152 = vld [vmem:[%s3] sm:$0xff]
    %v153 = vld [vmem:[%s3 + $0x8] sm:$0xff]
    %v154 = vadd.f32 %v150, %v152
    %v155 = vadd.f32 %v151, %v153
    %156 = vst [vmem:[%s4] sm:$0xff] %v154
    %157 = vst [vmem:[%s4 + $0x8] sm:$0xff] %v155
  $region25: #{blip_decoder_v2_forward.58} parent=0 // pred_fallthru
    _
  // Predicated region
  $region26: #{blip_decoder_v2_forward.58} parent=0 // pred_check
    _
  $region27: #{blip_decoder_v2_forward.58} parent=0 // pred_check_branch
    %159 = sbr.rel (0) target = $region29
  $region28: #{blip_decoder_v2_forward.58} parent=0 // pred_region
    _
  $region29: #{blip_decoder_v2_forward.58} parent=0 // pred_fallthru
    _
  // Predicated region
  $region30: #{blip_decoder_v2_forward.58} parent=0 // pred_check
    _
  $region31: #{blip_decoder_v2_forward.58} parent=0 // pred_check_branch
    %161 = sbr.rel (0) target = $region33
  $region32: #{blip_decoder_v2_forward.58} parent=0 // pred_region
    _
  $region33: #{blip_decoder_v2_forward.58} parent=0 // pred_fallthru
    _

// kernel: blip_decoder_v2_forward.60
$region0: #{blip_decoder_v2_forward.60}
  #allocation0 [shape = 'u32[]', space=smem, size = 0x4, offset = 0x4, fixed_abs, tag = 'smem constant byte address 0x4 - core index']
  #allocation1 [shape = 'u32[144,128]{1,0:T(1,128)}', space=vmem, size = 0x12000, scoped, tag = 'internal scratch']
  #allocation2 [shape = 'f32[16,128]{1,0:T(8,128)}', space=vmem, size = 0x2000, scoped, tag = 'scratch operand']
  %s0 = inlined_call_operand.vmem [shape: f32[16,128], index: 0, kind: input, shape index: {}]
  %s1 = inlined_call_operand.vmem [shape: bf16[128,128], index: 1, kind: input, shape index: {}]
  %s2 = inlined_call_operand.vmem [shape: f32[1,128], index: 2, kind: input, shape index: {}]
  %s3 = inlined_call_operand.vmem [shape: f32[16,128], index: 3, kind: output, shape index: {}]
  %s4 = sld [smem:[#allocation0]]
  $region30: #{blip_decoder_v2_forward.60} parent=0
    _
  %s6 = ssub.s32 1, %s4
  %s7 = scalar_select 0, %s6, %s4
  // Predicated region
  $region2: #{blip_decoder_v2_forward.60} parent=0 // pred_check
    _
  $region3: #{blip_decoder_v2_forward.60} parent=0 // pred_check_branch
    %9 = sbr.rel (0) target = $region5
  $region4: #{blip_decoder_v2_forward.60} parent=0 // pred_region
    _
  $region5: #{blip_decoder_v2_forward.60} parent=0 // pred_fallthru
    _
  // Predicated region
  $region6: #{blip_decoder_v2_forward.60} parent=0 // pred_check
    _
  $region7: #{blip_decoder_v2_forward.60} parent=0 // pred_check_branch
    %11 = sbr.rel (0) target = $region9
  $region8: #{blip_decoder_v2_forward.60} parent=0 // pred_region
    _
  $region9: #{blip_decoder_v2_forward.60} parent=0 // pred_fallthru
    _
  // Predicated region
  $region10: #{blip_decoder_v2_forward.60} parent=0 // pred_check
    _
  $region11: #{blip_decoder_v2_forward.60} parent=0 // pred_check_branch
    %13 = sbr.rel (0) target = $region13
  $region12: #{blip_decoder_v2_forward.60} parent=0 // pred_region
    _
  $region13: #{blip_decoder_v2_forward.60} parent=0 // pred_fallthru
    _
  %p15 = scmp.eq.s32.totalorder 0, 0
  // Predicated region
  $region14: #{blip_decoder_v2_forward.60} parent=0 // pred_check
    %p16 = pneg %p15
  $region15: #{blip_decoder_v2_forward.60} parent=0 // pred_check_branch
    %18 = sbr.rel (%p16) target = $region17
  $region16: #{blip_decoder_v2_forward.60} parent=0 // pred_region
    %19 = vst [vmem:[#allocation2] sm:$0xff] 0.0
    %20 = vst [vmem:[#allocation2 + $0x8] sm:$0xff] 0.0
  $region17: #{blip_decoder_v2_forward.60} parent=0 // pred_fallthru
    _
  %v21 = vld [vmem:[#allocation2] sm:$0xff]
  %v22 = vld [vmem:[#allocation2 + $0x8] sm:$0xff]
  %v23 = vld [vmem:[%s0] sm:$0xff]
  %v24 = vld [vmem:[%s0 + $0x8] sm:$0xff]
  %v25 = vpack.c.bf16 %v24, %v23
  %v26 = vld [vmem:[%s1] sm:$0xf]
  %v27 = vld [vmem:[%s1 + $0x4] sm:$0xf]
  %v28 = vld [vmem:[%s1 + $0x8] sm:$0xf]
  %v29 = vld [vmem:[%s1 + $0xc] sm:$0xf]
  %v30 = vld [vmem:[%s1 + $0x10] sm:$0xf]
  %v31 = vld [vmem:[%s1 + $0x14] sm:$0xf]
  %v32 = vld [vmem:[%s1 + $0x18] sm:$0xf]
  %v33 = vld [vmem:[%s1 + $0x1c] sm:$0xf]
  %v34 = vld [vmem:[%s1 + $0x20] sm:$0xf]
  %v35 = vld [vmem:[%s1 + $0x24] sm:$0xf]
  %v36 = vld [vmem:[%s1 + $0x28] sm:$0xf]
  %v37 = vld [vmem:[%s1 + $0x2c] sm:$0xf]
  %v38 = vld [vmem:[%s1 + $0x30] sm:$0xf]
  %v39 = vld [vmem:[%s1 + $0x34] sm:$0xf]
  %v40 = vld [vmem:[%s1 + $0x38] sm:$0xf]
  %v41 = vld [vmem:[%s1 + $0x3c] sm:$0xf]
  %v58 = vunpack.c.l.b16 %v26
  %v59 = vunpack.c.l.b16 %v27
  %v60 = vunpack.c.l.b16 %v28
  %v61 = vunpack.c.l.b16 %v29
  %v62 = vunpack.c.l.b16 %v30
  %v63 = vunpack.c.l.b16 %v31
  %v64 = vunpack.c.l.b16 %v32
  %v65 = vunpack.c.l.b16 %v33
  %v66 = vunpack.c.l.b16 %v34
  %v67 = vunpack.c.l.b16 %v35
  %v68 = vunpack.c.l.b16 %v36
  %v69 = vunpack.c.l.b16 %v37
  %v70 = vunpack.c.l.b16 %v38
  %v71 = vunpack.c.l.b16 %v39
  %v72 = vunpack.c.l.b16 %v40
  %v73 = vunpack.c.l.b16 %v41
  %v74 = vpack.c.b16 %v59, %v58
  %v75 = vpack.c.b16 %v61, %v60
  %v76 = vpack.c.b16 %v63, %v62
  %v77 = vpack.c.b16 %v65, %v64
  %v78 = vpack.c.b16 %v67, %v66
  %v79 = vpack.c.b16 %v69, %v68
  %v80 = vpack.c.b16 %v71, %v70
  %v81 = vpack.c.b16 %v73, %v72
  %90 = vmatprep.subr.bf16.mxu0 0
  %91 = vmatpush1.bf16.msra.mxu0 %v74
  %92 = vmatprep.subr.bf16.mxu0 0
  %93 = vmatpush1.bf16.msra.mxu0 %v75
  %94 = vmatprep.subr.bf16.mxu0 0
  %95 = vmatpush1.bf16.msra.mxu0 %v76
  %96 = vmatprep.subr.bf16.mxu0 0
  %97 = vmatpush1.bf16.msra.mxu0 %v77
  %98 = vmatprep.subr.bf16.mxu0 0
  %99 = vmatpush1.bf16.msra.mxu0 %v78
  %100 = vmatprep.subr.bf16.mxu0 0
  %101 = vmatpush1.bf16.msra.mxu0 %v79
  %102 = vmatprep.subr.bf16.mxu0 0
  %103 = vmatpush1.bf16.msra.mxu0 %v80
  %104 = vmatprep.subr.bf16.mxu0 0
  %105 = vmatpush1.bf16.msra.mxu0 %v81
  %106 = vmatprep.subr.bf16.mxu0 0
  %107 = vmatpush1.bf16.msra.mxu0 0
  %108 = vmatprep.subr.bf16.mxu0 0
  %109 = vmatpush1.bf16.msra.mxu0 0
  %110 = vmatprep.subr.bf16.mxu0 0
  %111 = vmatpush1.bf16.msra.mxu0 0
  %112 = vmatprep.subr.bf16.mxu0 0
  %113 = vmatpush1.bf16.msra.mxu0 0
  %114 = vmatprep.subr.bf16.mxu0 0
  %115 = vmatpush1.bf16.msra.mxu0 0
  %116 = vmatprep.subr.bf16.mxu0 0
  %117 = vmatpush1.bf16.msra.mxu0 0
  %118 = vmatprep.subr.bf16.mxu0 0
  %119 = vmatpush1.bf16.msra.mxu0 0
  %120 = vmatprep.subr.bf16.mxu0 0
  %121 = vmatpush1.bf16.msra.mxu0 0
  %122 = vmatprep.mubr.bf16.mxu0 0
  %123 = vmatmul.mubr.bf16.gmra.mrb[0].mxu0 %v25
  %v124 = vpop.f32.mrb[0].mxu0
  %v125 = vadd.f32 0.0, %v124
  %v126 = vpop.f32.mrb[0].mxu0
  %v127 = vpop.f32.mrb[0].mxu0
  %v128 = vadd.f32 0.0, %v127
  %v129 = vpop.f32.mrb[0].mxu0
  %130 = vdwg.mxu0
  %v131 = vadd.f32 %v21, %v125
  %v132 = vadd.f32 %v22, %v128
  %133 = vst [vmem:[#allocation2] sm:$0xff] %v131
  %134 = vst [vmem:[#allocation2 + $0x8] sm:$0xff] %v132
  // Predicated region
  $region18: #{blip_decoder_v2_forward.60} parent=0 // pred_check
    %p135 = pneg %p15
  $region19: #{blip_decoder_v2_forward.60} parent=0 // pred_check_branch
    %137 = sbr.rel (%p135) target = $region21
  $region20: #{blip_decoder_v2_forward.60} parent=0 // pred_region
    %v138 = vld [vmem:[#allocation2] sm:$0xff]
    %v139 = vld [vmem:[#allocation2 + $0x8] sm:$0xff]
    %v140 = vld [vmem:[%s2] sm:$0x1]
    %v142 = vlaneseq
    %v143 = vshrl.u32 %v142, 7
    %v144 = vsub.s32 0, %v143
    %v145 = vrot.slane %v140, %v144
    %v147 = vadd.f32 %v138, %v145
    %v148 = vadd.f32 %v139, %v145
    %v149 = vmul.f32 %v147, %v147
    %v150 = vmul.f32 %v148, %v148
    %v151 = vmul.f32 %v147, %v149
    %v152 = vmul.f32 %v148, %v150
    %v153 = vmul.f32 %v151, 0.044715
    %v154 = vmul.f32 %v152, 0.044715
    %v155 = vadd.f32 %v147, %v153
    %v156 = vadd.f32 %v148, %v154
    %v157 = vmul.f32 %v155, 0.7978846
    %v158 = vmul.f32 %v156, 0.7978846
    %v159 = vtanh.pop %v157
    %v160 = vtanh.pop %v158
    %v161 = vadd.f32 %v159, 1.0
    %v162 = vadd.f32 %v160, 1.0
    %v163 = vmul.f32 %v161, 0.5
    %v164 = vmul.f32 %v162, 0.5
    %v165 = vmul.f32 %v147, %v163
    %v166 = vmul.f32 %v148, %v164
    %167 = vst [vmem:[%s3] sm:$0xff] %v165
    %168 = vst [vmem:[%s3 + $0x8] sm:$0xff] %v166
  $region21: #{blip_decoder_v2_forward.60} parent=0 // pred_fallthru
    _
  // Predicated region
  $region22: #{blip_decoder_v2_forward.60} parent=0 // pred_check
    _
  $region23: #{blip_decoder_v2_forward.60} parent=0 // pred_check_branch
    %170 = sbr.rel (0) target = $region25
  $region24: #{blip_decoder_v2_forward.60} parent=0 // pred_region
    _
  $region25: #{blip_decoder_v2_forward.60} parent=0 // pred_fallthru
    _
  // Predicated region
  $region26: #{blip_decoder_v2_forward.60} parent=0 // pred_check
    _
  $region27: #{blip_decoder_v2_forward.60} parent=0 // pred_check_branch
    %172 = sbr.rel (0) target = $region29
  $region28: #{blip_decoder_v2_forward.60} parent=0 // pred_region
    _
  $region29: #{blip_decoder_v2_forward.60} parent=0 // pred_fallthru
    _

// kernel: blip_decoder_v2_forward.57
$region0: #{blip_decoder_v2_forward.57}
  #allocation0 [shape = 'u32[]', space=smem, size = 0x4, offset = 0x4, fixed_abs, tag = 'smem constant byte address 0x4 - core index']
  #allocation1 [shape = 'u32[144,128]{1,0:T(1,128)}', space=vmem, size = 0x12000, scoped, tag = 'internal scratch']
  #allocation2 [shape = 'f32[4,8,1]{2,1,0:T(8,128)}', space=vmem, size = 0x4000, scoped, tag = 'scratch operand']
  #allocation3 [shape = 'f32[4,8,1]{2,1,0:T(8,128)}', space=vmem, size = 0x4000, scoped, tag = 'scratch operand']
  #allocation4 [shape = 'f32[8,32]{1,0:T(8,128)}', space=vmem, size = 0x1000, scoped, tag = 'scratch operand']
  %s0 = inlined_call_operand.vmem [shape: f32[2,8,32], index: 0, kind: input, shape index: {}]
  %s1 = inlined_call_operand.vmem [shape: f32[2,8,32], index: 1, kind: input, shape index: {}]
  %s2 = inlined_call_operand.vmem [shape: f32[2,8,32], index: 2, kind: input, shape index: {}]
  %s3 = inlined_call_operand.vmem [shape: f32[2,1,8], index: 3, kind: input, shape index: {}]
  %s4 = inlined_call_operand.vmem [shape: f32[2,8,32], index: 4, kind: output, shape index: {}]
  %s5 = sld [smem:[#allocation0]]
  $region57: #{blip_decoder_v2_forward.57} parent=0
    _
  %s7 = ssub.s32 1, %s5
  %s8 = scalar_select 0, %s7, %s5
  loop: start=0, step=1, limit=4
  $region2: #{blip_decoder_v2_forward.57} parent=0 // loop_pre_header
    _
  $region3: #{blip_decoder_v2_forward.57} parent=0 // loop_header
    %s10 = sphi 0, %s14
    %p11 = scmp.ge.s32.totalorder %s10, 4
    %s17 = sphi 0, %s36
    %s18 = sphi 0, %s32
    %s19 = sphi 0, %s28
    %s20 = sphi 0, %s17
    %s21 = sphi 0, %s18
    %s22 = sphi 0, %s19
    %s23 = sphi 0, %s20
    %s24 = sphi 0, %s21
    %s25 = sphi 0, %s22
    %s41 = sphi 0, %s43
    %s44 = sphi 0, %s41
    %s45 = sphi 0, %s44
    %s61 = sphi 0, %s45
    %s69 = sphi 0, %s71
    %s72 = sphi 0, %s69
    %s73 = sphi 0, %s72
    %s89 = sphi 0, %s73
    %s97 = sphi 0, %s99
    %s100 = sphi 0, %s97
    %s101 = sphi 0, %s100
    %s117 = sphi 0, %s101
    %s125 = sphi 0, %s127
    %s128 = sphi 0, %s125
    %s129 = sphi 0, %s128
    %s145 = sphi 0, %s129
    %s153 = sphi 0, %s155
    %s156 = sphi 0, %s153
    %s157 = sphi 0, %s156
    %s173 = sphi 0, %s157
  $region4: #{blip_decoder_v2_forward.57} parent=0 // loop_header_branch
    %13 = sbr.rel (%p11) target = $region8
  $region5: #{blip_decoder_v2_forward.57} parent=0 // loop_body
    %s15 = ssub.s32 %s10, 1
    %s16 = ssub.s32 %s10, 2
    %s26 = sadd.s32 1, %s19
    %p27 = scmp.ge.s32.totalorder %s26, 1
    %s28 = scalar_select %p27, 0, %s26
    %s29 = sadd.s32 1, %s18
    %s30 = scalar_select %p27, %s29, %s18
    %p31 = scmp.ge.s32.totalorder %s30, 1
    %s32 = scalar_select %p31, 0, %s30
    %s33 = sadd.s32 1, %s17
    %s34 = scalar_select %p31, %s33, %s17
    %p35 = scmp.ge.s32.totalorder %s34, 2
    %s36 = scalar_select %p35, 0, %s34
    %s37 = ssub.s32 %s17, %s36
    %s38 = ssub.s32 %s18, %s32
    %s39 = sor.u32 %s37, %s38
    %p40 = scmp.eq.s32.totalorder %s39, 0
    %s42 = sadd.s32 %s41, 1
    %s43 = scalar_select %p40, %s41, %s42
    %p46 = pneg %p40
    %p47 = scmp.eq.s32.totalorder %s10, 1
    %p48 = por %p46, %p47
    %p49 = scmp.ne.s32.totalorder %s41, %s44
    %p50 = scmp.eq.s32.totalorder %s10, 0
    %p51 = por %p49, %p50
    %p52 = scmp.ne.s32.totalorder %s41, %s44
    %p53 = scmp.eq.s32.totalorder %s15, 1
    %p54 = por %p52, %p53
    %p55 = scmp.ne.s32.totalorder %s44, %s45
    %p56 = scmp.eq.s32.totalorder %s15, 0
    %p57 = por %p55, %p56
    %p58 = scmp.ne.s32.totalorder %s44, %s45
    %p59 = scmp.eq.s32.totalorder %s16, 1
    %p60 = por %p58, %p59
    %p62 = scmp.ne.s32.totalorder %s45, %s61
    %p63 = scmp.eq.s32.totalorder %s16, 0
    %p64 = por %p62, %p63
    %s65 = ssub.s32 %s17, %s36
    %s66 = ssub.s32 %s19, %s28
    %s67 = sor.u32 %s65, %s66
    %p68 = scmp.eq.s32.totalorder %s67, 0
    %s70 = sadd.s32 %s69, 1
    %s71 = scalar_select %p68, %s69, %s70
    %p74 = pneg %p68
    %p75 = scmp.eq.s32.totalorder %s10, 1
    %p76 = por %p74, %p75
    %p77 = scmp.ne.s32.totalorder %s69, %s72
    %p78 = scmp.eq.s32.totalorder %s10, 0
    %p79 = por %p77, %p78
    %p80 = scmp.ne.s32.totalorder %s69, %s72
    %p81 = scmp.eq.s32.totalorder %s15, 1
    %p82 = por %p80, %p81
    %p83 = scmp.ne.s32.totalorder %s72, %s73
    %p84 = scmp.eq.s32.totalorder %s15, 0
    %p85 = por %p83, %p84
    %p86 = scmp.ne.s32.totalorder %s72, %s73
    %p87 = scmp.eq.s32.totalorder %s16, 1
    %p88 = por %p86, %p87
    %p90 = scmp.ne.s32.totalorder %s73, %s89
    %p91 = scmp.eq.s32.totalorder %s16, 0
    %p92 = por %p90, %p91
    %s93 = ssub.s32 %s17, %s36
    %s94 = ssub.s32 %s19, %s28
    %s95 = sor.u32 %s93, %s94
    %p96 = scmp.eq.s32.totalorder %s95, 0
    %s98 = sadd.s32 %s97, 1
    %s99 = scalar_select %p96, %s97, %s98
    %p102 = pneg %p96
    %p103 = scmp.eq.s32.totalorder %s10, 1
    %p104 = por %p102, %p103
    %p105 = scmp.ne.s32.totalorder %s97, %s100
    %p106 = scmp.eq.s32.totalorder %s10, 0
    %p107 = por %p105, %p106
    %p108 = scmp.ne.s32.totalorder %s97, %s100
    %p109 = scmp.eq.s32.totalorder %s15, 1
    %p110 = por %p108, %p109
    %p111 = scmp.ne.s32.totalorder %s100, %s101
    %p112 = scmp.eq.s32.totalorder %s15, 0
    %p113 = por %p111, %p112
    %p114 = scmp.ne.s32.totalorder %s100, %s101
    %p115 = scmp.eq.s32.totalorder %s16, 1
    %p116 = por %p114, %p115
    %p118 = scmp.ne.s32.totalorder %s101, %s117
    %p119 = scmp.eq.s32.totalorder %s16, 0
    %p120 = por %p118, %p119
    %s121 = ssub.s32 %s17, %s36
    %s122 = ssub.s32 %s19, %s28
    %s123 = sor.u32 %s121, %s122
    %p124 = scmp.eq.s32.totalorder %s123, 0
    %s126 = sadd.s32 %s125, 1
    %s127 = scalar_select %p124, %s125, %s126
    %p130 = pneg %p124
    %p131 = scmp.eq.s32.totalorder %s10, 1
    %p132 = por %p130, %p131
    %p133 = scmp.ne.s32.totalorder %s125, %s128
    %p134 = scmp.eq.s32.totalorder %s10, 0
    %p135 = por %p133, %p134
    %p136 = scmp.ne.s32.totalorder %s125, %s128
    %p137 = scmp.eq.s32.totalorder %s15, 1
    %p138 = por %p136, %p137
    %p139 = scmp.ne.s32.totalorder %s128, %s129
    %p140 = scmp.eq.s32.totalorder %s15, 0
    %p141 = por %p139, %p140
    %p142 = scmp.ne.s32.totalorder %s128, %s129
    %p143 = scmp.eq.s32.totalorder %s16, 1
    %p144 = por %p142, %p143
    %p146 = scmp.ne.s32.totalorder %s129, %s145
    %p147 = scmp.eq.s32.totalorder %s16, 0
    %p148 = por %p146, %p147
    %s149 = ssub.s32 %s17, %s36
    %s150 = ssub.s32 %s18, %s32
    %s151 = sor.u32 %s149, %s150
    %p152 = scmp.eq.s32.totalorder %s151, 0
    %s154 = sadd.s32 %s153, 1
    %s155 = scalar_select %p152, %s153, %s154
    %p158 = pneg %p152
    %p159 = scmp.eq.s32.totalorder %s10, 1
    %p160 = por %p158, %p159
    %p161 = scmp.ne.s32.totalorder %s153, %s156
    %p162 = scmp.eq.s32.totalorder %s10, 0
    %p163 = por %p161, %p162
    %p164 = scmp.ne.s32.totalorder %s153, %s156
    %p165 = scmp.eq.s32.totalorder %s15, 1
    %p166 = por %p164, %p165
    %p167 = scmp.ne.s32.totalorder %s156, %s157
    %p168 = scmp.eq.s32.totalorder %s15, 0
    %p169 = por %p167, %p168
    %p170 = scmp.ne.s32.totalorder %s156, %s157
    %p171 = scmp.eq.s32.totalorder %s16, 1
    %p172 = por %p170, %p171
    %p174 = scmp.ne.s32.totalorder %s157, %s173
    %p175 = scmp.eq.s32.totalorder %s16, 0
    %p176 = por %p174, %p175
    %p177 = scmp.le.s32.totalorder 1, %s10
    %p178 = scmp.lt.s32.totalorder %s10, 3
    %p179 = pnand %p177, %p178
    %p180 = pneg %p179
    // Predicated region
    $region9: #{blip_decoder_v2_forward.57} parent=5 // pred_check
      _
    $region10: #{blip_decoder_v2_forward.57} parent=5 // pred_check_branch
      %182 = sbr.rel (%p179) target = $region12
    $region11: #{blip_decoder_v2_forward.57} parent=5 // pred_region
      %s183 = ssub.s32 %s10, 1
    $region12: #{blip_decoder_v2_forward.57} parent=5 // pred_fallthru
      _
    %p184 = scmp.lt.s32.totalorder %s10, 2
    // Predicated region
    $region13: #{blip_decoder_v2_forward.57} parent=5 // pred_check
      %p185 = pneg %p184
    $region14: #{blip_decoder_v2_forward.57} parent=5 // pred_check_branch
      %187 = sbr.rel (%p185) target = $region16
    $region15: #{blip_decoder_v2_forward.57} parent=5 // pred_region
      // Predicated region
      $region17: #{blip_decoder_v2_forward.57} parent=15 // pred_check
        %p188 = pneg %p51
      $region18: #{blip_decoder_v2_forward.57} parent=15 // pred_check_branch
        %190 = sbr.rel (%p188) target = $region20
      $region19: #{blip_decoder_v2_forward.57} parent=15 // pred_region
        %p191 = scmp.lt.s32.totalorder %s17, 1
        %s192 = scalar_select %p191, %s17, 1
        %p193 = scmp.lt.s32.totalorder %s18, 0
        %s194 = scalar_select %p193, %s18, 0
        %s195 = sadd.s32 %s194, %s192
        %s196 = smul.addr %s195, 8
        %s197 = scalar_lea.vmem %s0, %s196
      $region20: #{blip_decoder_v2_forward.57} parent=15 // pred_fallthru
        _
      // Predicated region
      $region21: #{blip_decoder_v2_forward.57} parent=15 // pred_check
        %p198 = pneg %p79
      $region22: #{blip_decoder_v2_forward.57} parent=15 // pred_check_branch
        %200 = sbr.rel (%p198) target = $region24
      $region23: #{blip_decoder_v2_forward.57} parent=15 // pred_region
        %p201 = scmp.lt.s32.totalorder %s17, 1
        %s202 = scalar_select %p201, %s17, 1
        %p203 = scmp.lt.s32.totalorder %s19, 0
        %s204 = scalar_select %p203, %s19, 0
        %s205 = sadd.s32 %s204, %s202
        %s206 = smul.addr %s205, 8
        %s207 = scalar_lea.vmem %s1, %s206
      $region24: #{blip_decoder_v2_forward.57} parent=15 // pred_fallthru
        _
      // Predicated region
      $region25: #{blip_decoder_v2_forward.57} parent=15 // pred_check
        %p208 = pneg %p107
      $region26: #{blip_decoder_v2_forward.57} parent=15 // pred_check_branch
        %210 = sbr.rel (%p208) target = $region28
      $region27: #{blip_decoder_v2_forward.57} parent=15 // pred_region
        %p211 = scmp.lt.s32.totalorder %s17, 1
        %s212 = scalar_select %p211, %s17, 1
        %p213 = scmp.lt.s32.totalorder %s19, 0
        %s214 = scalar_select %p213, %s19, 0
        %s215 = sadd.s32 %s214, %s212
        %s216 = smul.addr %s215, 8
        %s217 = scalar_lea.vmem %s2, %s216
      $region28: #{blip_decoder_v2_forward.57} parent=15 // pred_fallthru
        _
      // Predicated region
      $region29: #{blip_decoder_v2_forward.57} parent=15 // pred_check
        %p218 = pneg %p135
      $region30: #{blip_decoder_v2_forward.57} parent=15 // pred_check_branch
        %220 = sbr.rel (%p218) target = $region32
      $region31: #{blip_decoder_v2_forward.57} parent=15 // pred_region
        %p221 = scmp.lt.s32.totalorder %s17, 1
        %s222 = scalar_select %p221, %s17, 1
        %p223 = scmp.lt.s32.totalorder %s19, 0
        %s224 = scalar_select %p223, %s19, 0
        %s225 = sadd.s32 %s224, %s222
        %s226 = scalar_lea.vmem %s3, %s225
      $region32: #{blip_decoder_v2_forward.57} parent=15 // pred_fallthru
        _
    $region16: #{blip_decoder_v2_forward.57} parent=5 // pred_fallthru
      _
    %p227 = scmp.le.s32.totalorder 1, %s10
    %p228 = scmp.lt.s32.totalorder %s10, 3
    %p229 = pnand %p227, %p228
    %p230 = pneg %p229
    // Predicated region
    $region33: #{blip_decoder_v2_forward.57} parent=5 // pred_check
      _
    $region34: #{blip_decoder_v2_forward.57} parent=5 // pred_check_branch
      %232 = sbr.rel (%p229) target = $region36
    $region35: #{blip_decoder_v2_forward.57} parent=5 // pred_region
      %s233 = ssub.s32 %s10, 1
      %p234 = scmp.lt.s32.totalorder %s20, 1
      %s235 = scalar_select %p234, %s20, 1
      %p236 = scmp.lt.s32.totalorder %s21, 0
      %s237 = scalar_select %p236, %s21, 0
      %s238 = sadd.s32 %s237, %s235
      %s239 = smul.addr %s238, 8
      %s240 = scalar_lea.vmem %s0, %s239
      %p241 = pneg %p57
      %p242 = pneg %p54
      %p243 = scmp.lt.s32.totalorder %s20, 1
      %s244 = scalar_select %p243, %s20, 1
      %p245 = scmp.lt.s32.totalorder %s22, 0
      %s246 = scalar_select %p245, %s22, 0
      %s247 = sadd.s32 %s246, %s244
      %s248 = smul.addr %s247, 8
      %s249 = scalar_lea.vmem %s1, %s248
      %p250 = pneg %p85
      %p251 = pneg %p82
      %p252 = scmp.lt.s32.totalorder %s20, 1
      %s253 = scalar_select %p252, %s20, 1
      %p254 = scmp.lt.s32.totalorder %s22, 0
      %s255 = scalar_select %p254, %s22, 0
      %s256 = sadd.s32 %s255, %s253
      %s257 = smul.addr %s256, 8
      %s258 = scalar_lea.vmem %s2, %s257
      %p259 = pneg %p113
      %p260 = pneg %p110
      %p261 = scmp.lt.s32.totalorder %s20, 1
      %s262 = scalar_select %p261, %s20, 1
      %p263 = scmp.lt.s32.totalorder %s22, 0
      %s264 = scalar_select %p263, %s22, 0
      %s265 = sadd.s32 %s264, %s262
      %s266 = scalar_lea.vmem %s3, %s265
      %p267 = pneg %p141
      %p268 = pneg %p138
      %p269 = pneg %p169
      %p270 = pneg %p166
      %p271 = scmp.lt.s32.totalorder %s20, 1
      %s272 = scalar_select %p271, %s20, 1
      %p273 = scmp.lt.s32.totalorder %s21, 0
      %s274 = scalar_select %p273, %s21, 0
      %s275 = sadd.s32 %s274, %s272
      %s276 = smul.addr %s275, 8
      %s277 = scalar_lea.vmem %s4, %s276
      %p278 = scmp.lt.s32.totalorder %s20, 1
      %s279 = scalar_select %p278, %s20, 1
      %p280 = scmp.lt.s32.totalorder %s21, 0
      %s281 = scalar_select %p280, %s21, 0
      %s282 = sadd.s32 %s281, %s279
      %s283 = smul.addr %s282, 8
      %s284 = scalar_lea.vmem %s0, %s283
      %p285 = scmp.lt.s32.totalorder %s20, 1
      %s286 = scalar_select %p285, %s20, 1
      %p287 = scmp.lt.s32.totalorder %s22, 0
      %s288 = scalar_select %p287, %s22, 0
      %s289 = sadd.s32 %s288, %s286
      %s290 = smul.addr %s289, 8
      %s291 = scalar_lea.vmem %s1, %s290
      %p292 = scmp.lt.s32.totalorder %s20, 1
      %s293 = scalar_select %p292, %s20, 1
      %p294 = scmp.lt.s32.totalorder %s22, 0
      %s295 = scalar_select %p294, %s22, 0
      %s296 = sadd.s32 %s295, %s293
      %s297 = smul.addr %s296, 8
      %s298 = scalar_lea.vmem %s2, %s297
      %p299 = scmp.lt.s32.totalorder %s20, 1
      %s300 = scalar_select %p299, %s20, 1
      %p301 = scmp.lt.s32.totalorder %s22, 0
      %s302 = scalar_select %p301, %s22, 0
      %s303 = sadd.s32 %s302, %s300
      %s304 = scalar_lea.vmem %s3, %s303
      %p305 = scmp.lt.s32.totalorder %s20, 1
      %s306 = scalar_select %p305, %s20, 1
      %p307 = scmp.lt.s32.totalorder %s21, 0
      %s308 = scalar_select %p307, %s21, 0
      %s309 = sadd.s32 %s308, %s306
      %s310 = smul.addr %s309, 8
      %s311 = scalar_lea.vmem %s4, %s310
      %p313 = scmp.eq.s32.totalorder %s22, 0
      // Predicated region
      $region37: #{blip_decoder_v2_forward.57} parent=35 // pred_check
        %p314 = pneg %p313
      $region38: #{blip_decoder_v2_forward.57} parent=35 // pred_check_branch
        %316 = sbr.rel (%p314) target = $region40
      $region39: #{blip_decoder_v2_forward.57} parent=35 // pred_region
        %vm317 = vcmask 7168
        %318 = vst.msk [vmem:[#allocation2] sm:$0xff] %vm317, -1e+30
        %319 = vst.msk [vmem:[#allocation2 + $0x8] sm:$0xff] %vm317, -1e+30
        %320 = vst.msk [vmem:[#allocation2 + $0x10] sm:$0xff] %vm317, -1e+30
        %321 = vst.msk [vmem:[#allocation2 + $0x18] sm:$0xff] %vm317, -1e+30
        %322 = vst.msk [vmem:[#allocation3] sm:$0xff] %vm317, 0.0
        %323 = vst.msk [vmem:[#allocation3 + $0x8] sm:$0xff] %vm317, 0.0
        %324 = vst.msk [vmem:[#allocation3 + $0x10] sm:$0xff] %vm317, 0.0
        %325 = vst.msk [vmem:[#allocation3 + $0x18] sm:$0xff] %vm317, 0.0
        %vm326 = vcmask 261120
        %327 = vst.msk [vmem:[#allocation4] sm:$0xff] %vm326, 0.0
      $region40: #{blip_decoder_v2_forward.57} parent=35 // pred_fallthru
        _
      %v328 = vld [vmem:[%s284] sm:$0xff]
      %v329 = vmul.f32 %v328, 0.35355338
      %v330 = vpack.c.bf16 %v329, %v329
      %v331 = vld [vmem:[%s291] sm:$0xff]
      %v332 = vpack.c.bf16 %v331, %v331
      %v333 = vld [vmem:[%s298] sm:$0xff]
      %v334 = vpack.c.bf16 %v333, %v333
      %v335 = vld [vmem:[%s304] sm:$0x1]
      %v336 = vsub.f32 1.0, %v335
      %v337 = vmul.f32 %v336, -1e+09
      %v339 = vlaneseq
      %v340 = vshrl.u32 %v339, 7
      %v341 = vsub.s32 0, %v340
      %v342 = vrot.slane %v337, %v341
      %vm344 = vcmask 64512
      %v346 = vsel %vm344, %v330, 0
      %v349 = vsel %vm344, %v332, 0
      %351 = vmatprep.subr.bf16.mxu0 0
      %352 = vmatpush1.bf16.xpose.msra.mxu0 %v349
      %353 = vmatprep.subr.bf16.mxu0 0
      %354 = vmatpush1.bf16.xpose.msra.mxu0 0
      %355 = vmatprep.subr.bf16.mxu0 0
      %356 = vmatpush1.bf16.xpose.msra.mxu0 0
      %357 = vmatprep.subr.bf16.mxu0 0
      %358 = vmatpush1.bf16.xpose.msra.mxu0 0
      %359 = vmatprep.subr.bf16.mxu0 0
      %360 = vmatpush1.bf16.xpose.msra.mxu0 0
      %361 = vmatprep.subr.bf16.mxu0 0
      %362 = vmatpush1.bf16.xpose.msra.mxu0 0
      %363 = vmatprep.subr.bf16.mxu0 0
      %364 = vmatpush1.bf16.xpose.msra.mxu0 0
      %365 = vmatprep.subr.bf16.mxu0 0
      %366 = vmatpush1.bf16.xpose.msra.mxu0 0
      %367 = vmatprep.subr.bf16.mxu0 0
      %368 = vmatpush1.bf16.xpose.msra.mxu0 0
      %369 = vmatprep.subr.bf16.mxu0 0
      %370 = vmatpush1.bf16.xpose.msra.mxu0 0
      %371 = vmatprep.subr.bf16.mxu0 0
      %372 = vmatpush1.bf16.xpose.msra.mxu0 0
      %373 = vmatprep.subr.bf16.mxu0 0
      %374 = vmatpush1.bf16.xpose.msra.mxu0 0
      %375 = vmatprep.subr.bf16.mxu0 0
      %376 = vmatpush1.bf16.xpose.msra.mxu0 0
      %377 = vmatprep.subr.bf16.mxu0 0
      %378 = vmatpush1.bf16.xpose.msra.mxu0 0
      %379 = vmatprep.subr.bf16.mxu0 0
      %380 = vmatpush1.bf16.xpose.msra.mxu0 0
      %381 = vmatprep.subr.bf16.mxu0 0
      %382 = vmatpush1.bf16.xpose.msra.mxu0 0
      %383 = vmatprep.mubr.bf16.mxu0 0
      %384 = vmatmul.mubr.bf16.gmra.mrb[0].mxu0 %v346
      %v385 = vpop.f32.mrb[0].mxu0
      %v386 = vadd.f32 %v342, %v385
      %v387 = vpop.f32.mrb[0].mxu0
      %v388 = vpop.f32.mrb[0].mxu0
      %v389 = vpop.f32.mrb[0].mxu0
      %390 = vdwg.mxu0
      %v391 = vld [vmem:[#allocation2] sm:$0xff]
      %v392 = vsel %vm344, %v386, -inf
      %393 = vmax.xlane.f32.xlu0 %v392
      %v394 = vpop.xlane.xlu0 %393
      %v395 = vmax.f32 %v391, %v394
      %v396 = vsub.f32 %v391, %v395
      %v397 = vmul.f32 %v396, 1.442695
      %v398 = vpow.pop %v397
      %400 = vset.pattern.permute.xlu0 0
      %401 = vperm.xlu0 %400, %v395
      %v402 = vpop.permute.xlu0 %401
      %v404 = vsub.f32 %v386, %v402
      %v405 = vmul.f32 %v404, 1.442695
      %v406 = vpow.pop %v405
      %v407 = vld [vmem:[#allocation3] sm:$0xff]
      %v408 = vmul.f32 %v398, %v407
      %v409 = vsel %vm344, %v406, 0.0
      %410 = vadd.xlane.f32.xlu0 %v409
      %v411 = vpop.xlane.xlu0 %410
      %v412 = vadd.f32 %v408, %v411
      %vm413 = vcmask 7168
      %414 = vst.msk [vmem:[#allocation3] sm:$0xff] %vm413, %v412
      %v415 = vld [vmem:[#allocation4] sm:$0xff]
      %417 = vset.pattern.permute.xlu0 0
      %418 = vperm.xlu0 %417, %v398
      %v419 = vpop.permute.xlu0 %418
      %v421 = vmul.f32 %v419, %v415
      %v422 = vpack.c.bf16 %v406, %v406
      %v424 = vsel %vm344, %v422, 0
      %vm426 = vcmask 1043456
      %v428 = vsel %vm426, %v334, 0
      %430 = vmatprep.subr.bf16.mxu0 0
      %431 = vmatpush1.bf16.msra.mxu0 %v428
      %432 = vmatprep.subr.bf16.mxu0 0
      %433 = vmatpush1.bf16.msra.mxu0 0
      %434 = vmatprep.subr.bf16.mxu0 0
      %435 = vmatpush1.bf16.msra.mxu0 0
      %436 = vmatprep.subr.bf16.mxu0 0
      %437 = vmatpush1.bf16.msra.mxu0 0
      %438 = vmatprep.subr.bf16.mxu0 0
      %439 = vmatpush1.bf16.msra.mxu0 0
      %440 = vmatprep.subr.bf16.mxu0 0
      %441 = vmatpush1.bf16.msra.mxu0 0
      %442 = vmatprep.subr.bf16.mxu0 0
      %443 = vmatpush1.bf16.msra.mxu0 0
      %444 = vmatprep.subr.bf16.mxu0 0
      %445 = vmatpush1.bf16.msra.mxu0 0
      %446 = vmatprep.subr.bf16.mxu0 0
      %447 = vmatpush1.bf16.msra.mxu0 0
      %448 = vmatprep.subr.bf16.mxu0 0
      %449 = vmatpush1.bf16.msra.mxu0 0
      %450 = vmatprep.subr.bf16.mxu0 0
      %451 = vmatpush1.bf16.msra.mxu0 0
      %452 = vmatprep.subr.bf16.mxu0 0
      %453 = vmatpush1.bf16.msra.mxu0 0
      %454 = vmatprep.subr.bf16.mxu0 0
      %455 = vmatpush1.bf16.msra.mxu0 0
      %456 = vmatprep.subr.bf16.mxu0 0
      %457 = vmatpush1.bf16.msra.mxu0 0
      %458 = vmatprep.subr.bf16.mxu0 0
      %459 = vmatpush1.bf16.msra.mxu0 0
      %460 = vmatprep.subr.bf16.mxu0 0
      %461 = vmatpush1.bf16.msra.mxu0 0
      %462 = vmatprep.mubr.bf16.mxu0 0
      %463 = vmatmul.mubr.bf16.gmra.mrb[0].mxu0 %v424
      %v464 = vpop.f32.mrb[0].mxu0
      %v465 = vadd.f32 0.0, %v464
      %v466 = vpop.f32.mrb[0].mxu0
      %v467 = vpop.f32.mrb[0].mxu0
      %v468 = vpop.f32.mrb[0].mxu0
      %469 = vdwg.mxu0
      %v470 = vadd.f32 %v421, %v465
      %471 = vst.msk [vmem:[#allocation4] sm:$0xff] %vm344, %v470
      %472 = vst.msk [vmem:[#allocation2] sm:$0xff] %vm413, %v395
      %474 = vrot.lane.b32.xlu0 %v330, 120
      %v475 = vpop.permute.xlu0 %474
      %477 = vrot.lane.b32.xlu0 %v332, 120
      %v478 = vpop.permute.xlu0 %477
      %v480 = vsel %vm344, %v475, 0
      %v483 = vsel %vm344, %v478, 0
      %485 = vmatprep.subr.bf16.mxu0 0
      %486 = vmatpush1.bf16.xpose.msra.mxu0 %v483
      %487 = vmatprep.subr.bf16.mxu0 0
      %488 = vmatpush1.bf16.xpose.msra.mxu0 0
      %489 = vmatprep.subr.bf16.mxu0 0
      %490 = vmatpush1.bf16.xpose.msra.mxu0 0
      %491 = vmatprep.subr.bf16.mxu0 0
      %492 = vmatpush1.bf16.xpose.msra.mxu0 0
      %493 = vmatprep.subr.bf16.mxu0 0
      %494 = vmatpush1.bf16.xpose.msra.mxu0 0
      %495 = vmatprep.subr.bf16.mxu0 0
      %496 = vmatpush1.bf16.xpose.msra.mxu0 0
      %497 = vmatprep.subr.bf16.mxu0 0
      %498 = vmatpush1.bf16.xpose.msra.mxu0 0
      %499 = vmatprep.subr.bf16.mxu0 0
      %500 = vmatpush1.bf16.xpose.msra.mxu0 0
      %501 = vmatprep.subr.bf16.mxu0 0
      %502 = vmatpush1.bf16.xpose.msra.mxu0 0
      %503 = vmatprep.subr.bf16.mxu0 0
      %504 = vmatpush1.bf16.xpose.msra.mxu0 0
      %505 = vmatprep.subr.bf16.mxu0 0
      %506 = vmatpush1.bf16.xpose.msra.mxu0 0
      %507 = vmatprep.subr.bf16.mxu0 0
      %508 = vmatpush1.bf16.xpose.msra.mxu0 0
      %509 = vmatprep.subr.bf16.mxu0 0
      %510 = vmatpush1.bf16.xpose.msra.mxu0 0
      %511 = vmatprep.subr.bf16.mxu0 0
      %512 = vmatpush1.bf16.xpose.msra.mxu0 0
      %513 = vmatprep.subr.bf16.mxu0 0
      %514 = vmatpush1.bf16.xpose.msra.mxu0 0
      %515 = vmatprep.subr.bf16.mxu0 0
      %516 = vmatpush1.bf16.xpose.msra.mxu0 0
      %517 = vmatprep.mubr.bf16.mxu0 0
      %518 = vmatmul.mubr.bf16.gmra.mrb[0].mxu0 %v480
      %v519 = vpop.f32.mrb[0].mxu0
      %v520 = vadd.f32 %v342, %v519
      %v521 = vpop.f32.mrb[0].mxu0
      %v522 = vpop.f32.mrb[0].mxu0
      %v523 = vpop.f32.mrb[0].mxu0
      %524 = vdwg.mxu0
      %s525 = scalar_lea.vmem [#allocation2], 8
      %v526 = vld [vmem:[%s525] sm:$0xff]
      %v527 = vsel %vm344, %v520, -inf
      %528 = vmax.xlane.f32.xlu0 %v527
      %v529 = vpop.xlane.xlu0 %528
      %v530 = vmax.f32 %v526, %v529
      %v531 = vsub.f32 %v526, %v530
      %v532 = vmul.f32 %v531, 1.442695
      %v533 = vpow.pop %v532
      %535 = vset.pattern.permute.xlu0 0
      %536 = vperm.xlu0 %535, %v530
      %v537 = vpop.permute.xlu0 %536
      %v539 = vsub.f32 %v520, %v537
      %v540 = vmul.f32 %v539, 1.442695
      %v541 = vpow.pop %v540
      %s542 = scalar_lea.vmem [#allocation3], 8
      %v543 = vld [vmem:[%s542] sm:$0xff]
      %v544 = vmul.f32 %v533, %v543
      %v545 = vsel %vm344, %v541, 0.0
      %546 = vadd.xlane.f32.xlu0 %v545
      %v547 = vpop.xlane.xlu0 %546
      %v548 = vadd.f32 %v544, %v547
      %549 = vst.msk [vmem:[%s542] sm:$0xff] %vm413, %v548
      %v550 = vld [vmem:[#allocation4] sm:$0xff]
      %552 = vset.pattern.permute.xlu0 0
      %553 = vperm.xlu0 %552, %v533
      %v554 = vpop.permute.xlu0 %553
      %v556 = vmul.f32 %v554, %v550
      %v557 = vpack.c.bf16 %v541, %v541
      %559 = vrot.lane.b32.xlu0 %v334, 120
      %v560 = vpop.permute.xlu0 %559
      %v562 = vsel %vm344, %v557, 0
      %v565 = vsel %vm426, %v560, 0
      %567 = vmatprep.subr.bf16.mxu0 0
      %568 = vmatpush1.bf16.msra.mxu0 %v565
      %569 = vmatprep.subr.bf16.mxu0 0
      %570 = vmatpush1.bf16.msra.mxu0 0
      %571 = vmatprep.subr.bf16.mxu0 0
      %572 = vmatpush1.bf16.msra.mxu0 0
      %573 = vmatprep.subr.bf16.mxu0 0
      %574 = vmatpush1.bf16.msra.mxu0 0
      %575 = vmatprep.subr.bf16.mxu0 0
      %576 = vmatpush1.bf16.msra.mxu0 0
      %577 = vmatprep.subr.bf16.mxu0 0
      %578 = vmatpush1.bf16.msra.mxu0 0
      %579 = vmatprep.subr.bf16.mxu0 0
      %580 = vmatpush1.bf16.msra.mxu0 0
      %581 = vmatprep.subr.bf16.mxu0 0
      %582 = vmatpush1.bf16.msra.mxu0 0
      %583 = vmatprep.subr.bf16.mxu0 0
      %584 = vmatpush1.bf16.msra.mxu0 0
      %585 = vmatprep.subr.bf16.mxu0 0
      %586 = vmatpush1.bf16.msra.mxu0 0
      %587 = vmatprep.subr.bf16.mxu0 0
      %588 = vmatpush1.bf16.msra.mxu0 0
      %589 = vmatprep.subr.bf16.mxu0 0
      %590 = vmatpush1.bf16.msra.mxu0 0
      %591 = vmatprep.subr.bf16.mxu0 0
      %592 = vmatpush1.bf16.msra.mxu0 0
      %593 = vmatprep.subr.bf16.mxu0 0
      %594 = vmatpush1.bf16.msra.mxu0 0
      %595 = vmatprep.subr.bf16.mxu0 0
      %596 = vmatpush1.bf16.msra.mxu0 0
      %597 = vmatprep.subr.bf16.mxu0 0
      %598 = vmatpush1.bf16.msra.mxu0 0
      %599 = vmatprep.mubr.bf16.mxu0 0
      %600 = vmatmul.mubr.bf16.gmra.mrb[0].mxu0 %v562
      %v601 = vpop.f32.mrb[0].mxu0
      %v602 = vadd.f32 0.0, %v601
      %v603 = vpop.f32.mrb[0].mxu0
      %v604 = vpop.f32.mrb[0].mxu0
      %v605 = vpop.f32.mrb[0].mxu0
      %606 = vdwg.mxu0
      %608 = vrot.lane.b32.xlu0 %v602, 8
      %v609 = vpop.permute.xlu0 %608
      %v611 = vadd.f32 %v556, %v609
      %vm612 = vcmask 130112
      %613 = vst.msk [vmem:[#allocation4] sm:$0xff] %vm612, %v611
      %614 = vst.msk [vmem:[%s525] sm:$0xff] %vm413, %v530
      %615 = vrot.lane.b32.xlu0 %v330, 112
      %v616 = vpop.permute.xlu0 %615
      %617 = vrot.lane.b32.xlu0 %v332, 112
      %v618 = vpop.permute.xlu0 %617
      %v620 = vsel %vm344, %v616, 0
      %v623 = vsel %vm344, %v618, 0
      %625 = vmatprep.subr.bf16.mxu0 0
      %626 = vmatpush1.bf16.xpose.msra.mxu0 %v623
      %627 = vmatprep.subr.bf16.mxu0 0
      %628 = vmatpush1.bf16.xpose.msra.mxu0 0
      %629 = vmatprep.subr.bf16.mxu0 0
      %630 = vmatpush1.bf16.xpose.msra.mxu0 0
      %631 = vmatprep.subr.bf16.mxu0 0
      %632 = vmatpush1.bf16.xpose.msra.mxu0 0
      %633 = vmatprep.subr.bf16.mxu0 0
      %634 = vmatpush1.bf16.xpose.msra.mxu0 0
      %635 = vmatprep.subr.bf16.mxu0 0
      %636 = vmatpush1.bf16.xpose.msra.mxu0 0
      %637 = vmatprep.subr.bf16.mxu0 0
      %638 = vmatpush1.bf16.xpose.msra.mxu0 0
      %639 = vmatprep.subr.bf16.mxu0 0
      %640 = vmatpush1.bf16.xpose.msra.mxu0 0
      %641 = vmatprep.subr.bf16.mxu0 0
      %642 = vmatpush1.bf16.xpose.msra.mxu0 0
      %643 = vmatprep.subr.bf16.mxu0 0
      %644 = vmatpush1.bf16.xpose.msra.mxu0 0
      %645 = vmatprep.subr.bf16.mxu0 0
      %646 = vmatpush1.bf16.xpose.msra.mxu0 0
      %647 = vmatprep.subr.bf16.mxu0 0
      %648 = vmatpush1.bf16.xpose.msra.mxu0 0
      %649 = vmatprep.subr.bf16.mxu0 0
      %650 = vmatpush1.bf16.xpose.msra.mxu0 0
      %651 = vmatprep.subr.bf16.mxu0 0
      %652 = vmatpush1.bf16.xpose.msra.mxu0 0
      %653 = vmatprep.subr.bf16.mxu0 0
      %654 = vmatpush1.bf16.xpose.msra.mxu0 0
      %655 = vmatprep.subr.bf16.mxu0 0
      %656 = vmatpush1.bf16.xpose.msra.mxu0 0
      %657 = vmatprep.mubr.bf16.mxu0 0
      %658 = vmatmul.mubr.bf16.gmra.mrb[0].mxu0 %v620
      %v659 = vpop.f32.mrb[0].mxu0
      %v660 = vadd.f32 %v342, %v659
      %v661 = vpop.f32.mrb[0].mxu0
      %v662 = vpop.f32.mrb[0].mxu0
      %v663 = vpop.f32.mrb[0].mxu0
      %664 = vdwg.mxu0
      %s665 = scalar_lea.vmem [#allocation2], 16
      %v666 = vld [vmem:[%s665] sm:$0xff]
      %v667 = vsel %vm344, %v660, -inf
      %668 = vmax.xlane.f32.xlu0 %v667
      %v669 = vpop.xlane.xlu0 %668
      %v670 = vmax.f32 %v666, %v669
      %v671 = vsub.f32 %v666, %v670
      %v672 = vmul.f32 %v671, 1.442695
      %v673 = vpow.pop %v672
      %675 = vset.pattern.permute.xlu0 0
      %676 = vperm.xlu0 %675, %v670
      %v677 = vpop.permute.xlu0 %676
      %v679 = vsub.f32 %v660, %v677
      %v680 = vmul.f32 %v679, 1.442695
      %v681 = vpow.pop %v680
      %s682 = scalar_lea.vmem [#allocation3], 16
      %v683 = vld [vmem:[%s682] sm:$0xff]
      %v684 = vmul.f32 %v673, %v683
      %v685 = vsel %vm344, %v681, 0.0
      %686 = vadd.xlane.f32.xlu0 %v685
      %v687 = vpop.xlane.xlu0 %686
      %v688 = vadd.f32 %v684, %v687
      %689 = vst.msk [vmem:[%s682] sm:$0xff] %vm413, %v688
      %v690 = vld [vmem:[#allocation4] sm:$0xff]
      %692 = vset.pattern.permute.xlu0 0
      %693 = vperm.xlu0 %692, %v673
      %v694 = vpop.permute.xlu0 %693
      %v696 = vmul.f32 %v694, %v690
      %v697 = vpack.c.bf16 %v681, %v681
      %698 = vrot.lane.b32.xlu0 %v334, 112
      %v699 = vpop.permute.xlu0 %698
      %v701 = vsel %vm344, %v697, 0
      %v704 = vsel %vm426, %v699, 0
      %706 = vmatprep.subr.bf16.mxu0 0
      %707 = vmatpush1.bf16.msra.mxu0 %v704
      %708 = vmatprep.subr.bf16.mxu0 0
      %709 = vmatpush1.bf16.msra.mxu0 0
      %710 = vmatprep.subr.bf16.mxu0 0
      %711 = vmatpush1.bf16.msra.mxu0 0
      %712 = vmatprep.subr.bf16.mxu0 0
      %713 = vmatpush1.bf16.msra.mxu0 0
      %714 = vmatprep.subr.bf16.mxu0 0
      %715 = vmatpush1.bf16.msra.mxu0 0
      %716 = vmatprep.subr.bf16.mxu0 0
      %717 = vmatpush1.bf16.msra.mxu0 0
      %718 = vmatprep.subr.bf16.mxu0 0
      %719 = vmatpush1.bf16.msra.mxu0 0
      %720 = vmatprep.subr.bf16.mxu0 0
      %721 = vmatpush1.bf16.msra.mxu0 0
      %722 = vmatprep.subr.bf16.mxu0 0
      %723 = vmatpush1.bf16.msra.mxu0 0
      %724 = vmatprep.subr.bf16.mxu0 0
      %725 = vmatpush1.bf16.msra.mxu0 0
      %726 = vmatprep.subr.bf16.mxu0 0
      %727 = vmatpush1.bf16.msra.mxu0 0
      %728 = vmatprep.subr.bf16.mxu0 0
      %729 = vmatpush1.bf16.msra.mxu0 0
      %730 = vmatprep.subr.bf16.mxu0 0
      %731 = vmatpush1.bf16.msra.mxu0 0
      %732 = vmatprep.subr.bf16.mxu0 0
      %733 = vmatpush1.bf16.msra.mxu0 0
      %734 = vmatprep.subr.bf16.mxu0 0
      %735 = vmatpush1.bf16.msra.mxu0 0
      %736 = vmatprep.subr.bf16.mxu0 0
      %737 = vmatpush1.bf16.msra.mxu0 0
      %738 = vmatprep.mubr.bf16.mxu0 0
      %739 = vmatmul.mubr.bf16.gmra.mrb[0].mxu0 %v701
      %v740 = vpop.f32.mrb[0].mxu0
      %v741 = vadd.f32 0.0, %v740
      %v742 = vpop.f32.mrb[0].mxu0
      %v743 = vpop.f32.mrb[0].mxu0
      %v744 = vpop.f32.mrb[0].mxu0
      %745 = vdwg.mxu0
      %747 = vrot.lane.b32.xlu0 %v741, 16
      %v748 = vpop.permute.xlu0 %747
      %v750 = vadd.f32 %v696, %v748
      %vm751 = vcmask 195712
      %752 = vst.msk [vmem:[#allocation4] sm:$0xff] %vm751, %v750
      %753 = vst.msk [vmem:[%s665] sm:$0xff] %vm413, %v670
      %754 = vrot.lane.b32.xlu0 %v330, 104
      %v755 = vpop.permute.xlu0 %754
      %756 = vrot.lane.b32.xlu0 %v332, 104
      %v757 = vpop.permute.xlu0 %756
      %v759 = vsel %vm344, %v755, 0
      %v762 = vsel %vm344, %v757, 0
      %764 = vmatprep.subr.bf16.mxu0 0
      %765 = vmatpush1.bf16.xpose.msra.mxu0 %v762
      %766 = vmatprep.subr.bf16.mxu0 0
      %767 = vmatpush1.bf16.xpose.msra.mxu0 0
      %768 = vmatprep.subr.bf16.mxu0 0
      %769 = vmatpush1.bf16.xpose.msra.mxu0 0
      %770 = vmatprep.subr.bf16.mxu0 0
      %771 = vmatpush1.bf16.xpose.msra.mxu0 0
      %772 = vmatprep.subr.bf16.mxu0 0
      %773 = vmatpush1.bf16.xpose.msra.mxu0 0
      %774 = vmatprep.subr.bf16.mxu0 0
      %775 = vmatpush1.bf16.xpose.msra.mxu0 0
      %776 = vmatprep.subr.bf16.mxu0 0
      %777 = vmatpush1.bf16.xpose.msra.mxu0 0
      %778 = vmatprep.subr.bf16.mxu0 0
      %779 = vmatpush1.bf16.xpose.msra.mxu0 0
      %780 = vmatprep.subr.bf16.mxu0 0
      %781 = vmatpush1.bf16.xpose.msra.mxu0 0
      %782 = vmatprep.subr.bf16.mxu0 0
      %783 = vmatpush1.bf16.xpose.msra.mxu0 0
      %784 = vmatprep.subr.bf16.mxu0 0
      %785 = vmatpush1.bf16.xpose.msra.mxu0 0
      %786 = vmatprep.subr.bf16.mxu0 0
      %787 = vmatpush1.bf16.xpose.msra.mxu0 0
      %788 = vmatprep.subr.bf16.mxu0 0
      %789 = vmatpush1.bf16.xpose.msra.mxu0 0
      %790 = vmatprep.subr.bf16.mxu0 0
      %791 = vmatpush1.bf16.xpose.msra.mxu0 0
      %792 = vmatprep.subr.bf16.mxu0 0
      %793 = vmatpush1.bf16.xpose.msra.mxu0 0
      %794 = vmatprep.subr.bf16.mxu0 0
      %795 = vmatpush1.bf16.xpose.msra.mxu0 0
      %796 = vmatprep.mubr.bf16.mxu0 0
      %797 = vmatmul.mubr.bf16.gmra.mrb[0].mxu0 %v759
      %v798 = vpop.f32.mrb[0].mxu0
      %v799 = vadd.f32 %v342, %v798
      %v800 = vpop.f32.mrb[0].mxu0
      %v801 = vpop.f32.mrb[0].mxu0
      %v802 = vpop.f32.mrb[0].mxu0
      %803 = vdwg.mxu0
      %s804 = scalar_lea.vmem [#allocation2], 24
      %v805 = vld [vmem:[%s804] sm:$0xff]
      %v806 = vsel %vm344, %v799, -inf
      %807 = vmax.xlane.f32.xlu0 %v806
      %v808 = vpop.xlane.xlu0 %807
      %v809 = vmax.f32 %v805, %v808
      %v810 = vsub.f32 %v805, %v809
      %v811 = vmul.f32 %v810, 1.442695
      %v812 = vpow.pop %v811
      %814 = vset.pattern.permute.xlu0 0
      %815 = vperm.xlu0 %814, %v809
      %v816 = vpop.permute.xlu0 %815
      %v818 = vsub.f32 %v799, %v816
      %v819 = vmul.f32 %v818, 1.442695
      %v820 = vpow.pop %v819
      %s821 = scalar_lea.vmem [#allocation3], 24
      %v822 = vld [vmem:[%s821] sm:$0xff]
      %v823 = vmul.f32 %v812, %v822
      %v824 = vsel %vm344, %v820, 0.0
      %825 = vadd.xlane.f32.xlu0 %v824
      %v826 = vpop.xlane.xlu0 %825
      %v827 = vadd.f32 %v823, %v826
      %828 = vst.msk [vmem:[%s821] sm:$0xff] %vm413, %v827
      %v829 = vld [vmem:[#allocation4] sm:$0xff]
      %831 = vset.pattern.permute.xlu0 0
      %832 = vperm.xlu0 %831, %v812
      %v833 = vpop.permute.xlu0 %832
      %v835 = vmul.f32 %v833, %v829
      %v836 = vpack.c.bf16 %v820, %v820
      %837 = vrot.lane.b32.xlu0 %v334, 104
      %v838 = vpop.permute.xlu0 %837
      %v840 = vsel %vm344, %v836, 0
      %v843 = vsel %vm426, %v838, 0
      %845 = vmatprep.subr.bf16.mxu0 0
      %846 = vmatpush1.bf16.msra.mxu0 %v843
      %847 = vmatprep.subr.bf16.mxu0 0
      %848 = vmatpush1.bf16.msra.mxu0 0
      %849 = vmatprep.subr.bf16.mxu0 0
      %850 = vmatpush1.bf16.msra.mxu0 0
      %851 = vmatprep.subr.bf16.mxu0 0
      %852 = vmatpush1.bf16.msra.mxu0 0
      %853 = vmatprep.subr.bf16.mxu0 0
      %854 = vmatpush1.bf16.msra.mxu0 0
      %855 = vmatprep.subr.bf16.mxu0 0
      %856 = vmatpush1.bf16.msra.mxu0 0
      %857 = vmatprep.subr.bf16.mxu0 0
      %858 = vmatpush1.bf16.msra.mxu0 0
      %859 = vmatprep.subr.bf16.mxu0 0
      %860 = vmatpush1.bf16.msra.mxu0 0
      %861 = vmatprep.subr.bf16.mxu0 0
      %862 = vmatpush1.bf16.msra.mxu0 0
      %863 = vmatprep.subr.bf16.mxu0 0
      %864 = vmatpush1.bf16.msra.mxu0 0
      %865 = vmatprep.subr.bf16.mxu0 0
      %866 = vmatpush1.bf16.msra.mxu0 0
      %867 = vmatprep.subr.bf16.mxu0 0
      %868 = vmatpush1.bf16.msra.mxu0 0
      %869 = vmatprep.subr.bf16.mxu0 0
      %870 = vmatpush1.bf16.msra.mxu0 0
      %871 = vmatprep.subr.bf16.mxu0 0
      %872 = vmatpush1.bf16.msra.mxu0 0
      %873 = vmatprep.subr.bf16.mxu0 0
      %874 = vmatpush1.bf16.msra.mxu0 0
      %875 = vmatprep.subr.bf16.mxu0 0
      %876 = vmatpush1.bf16.msra.mxu0 0
      %877 = vmatprep.mubr.bf16.mxu0 0
      %878 = vmatmul.mubr.bf16.gmra.mrb[0].mxu0 %v840
      %v879 = vpop.f32.mrb[0].mxu0
      %v880 = vadd.f32 0.0, %v879
      %v881 = vpop.f32.mrb[0].mxu0
      %v882 = vpop.f32.mrb[0].mxu0
      %v883 = vpop.f32.mrb[0].mxu0
      %884 = vdwg.mxu0
      %886 = vrot.lane.b32.xlu0 %v880, 24
      %v887 = vpop.permute.xlu0 %886
      %v889 = vadd.f32 %v835, %v887
      %vm890 = vcmask 261312
      %891 = vst.msk [vmem:[#allocation4] sm:$0xff] %vm890, %v889
      %892 = vst.msk [vmem:[%s804] sm:$0xff] %vm413, %v809
      // Predicated region
      $region41: #{blip_decoder_v2_forward.57} parent=35 // pred_check
        %p893 = pneg %p313
      $region42: #{blip_decoder_v2_forward.57} parent=35 // pred_check_branch
        %895 = sbr.rel (%p893) target = $region44
      $region43: #{blip_decoder_v2_forward.57} parent=35 // pred_region
        %v896 = vld [vmem:[#allocation4] sm:$0xff]
        %v897 = vld [vmem:[#allocation3] sm:$0xff]
        %v898 = vrcp.pop %v897
        %900 = vset.pattern.permute.xlu0 0
        %901 = vperm.xlu0 %900, %v898
        %v902 = vpop.permute.xlu0 %901
        %v904 = vmul.f32 %v896, %v902
        %905 = vst.msk [vmem:[#allocation4] sm:$0xff] %vm344, %v904
        %v906 = vld [vmem:[#allocation4] sm:$0xff]
        %v907 = vld [vmem:[%s542] sm:$0xff]
        %v908 = vrcp.pop %v907
        %910 = vset.pattern.permute.xlu0 0
        %911 = vperm.xlu0 %910, %v908
        %v912 = vpop.permute.xlu0 %911
        %v914 = vmul.f32 %v906, %v912
        %915 = vst.msk [vmem:[#allocation4] sm:$0xff] %vm612, %v914
        %v916 = vld [vmem:[#allocation4] sm:$0xff]
        %v917 = vld [vmem:[%s682] sm:$0xff]
        %v918 = vrcp.pop %v917
        %920 = vset.pattern.permute.xlu0 0
        %921 = vperm.xlu0 %920, %v918
        %v922 = vpop.permute.xlu0 %921
        %v924 = vmul.f32 %v916, %v922
        %925 = vst.msk [vmem:[#allocation4] sm:$0xff] %vm751, %v924
        %v926 = vld [vmem:[#allocation4] sm:$0xff]
        %v927 = vld [vmem:[%s821] sm:$0xff]
        %v928 = vrcp.pop %v927
        %930 = vset.pattern.permute.xlu0 0
        %931 = vperm.xlu0 %930, %v928
        %v932 = vpop.permute.xlu0 %931
        %v934 = vmul.f32 %v926, %v932
        %935 = vst.msk [vmem:[#allocation4] sm:$0xff] %vm890, %v934
        %v936 = vld [vmem:[#allocation4] sm:$0xff]
        %vm937 = vcmask 261120
        %938 = vst.msk [vmem:[%s311] sm:$0xff] %vm937, %v936
      $region44: #{blip_decoder_v2_forward.57} parent=35 // pred_fallthru
        _
      %p939 = scmp.lt.s32.totalorder %s20, 1
      %s940 = scalar_select %p939, %s20, 1
      %p941 = scmp.lt.s32.totalorder %s21, 0
      %s942 = scalar_select %p941, %s21, 0
      %s943 = sadd.s32 %s942, %s940
      %s944 = smul.addr %s943, 8
      %s945 = scalar_lea.vmem %s4, %s944
      // Predicated region
      $region45: #{blip_decoder_v2_forward.57} parent=35 // pred_check
        %p946 = pneg %p166
      $region46: #{blip_decoder_v2_forward.57} parent=35 // pred_check_branch
        %948 = sbr.rel (%p946) target = $region48
      $region47: #{blip_decoder_v2_forward.57} parent=35 // pred_region
        _
      $region48: #{blip_decoder_v2_forward.57} parent=35 // pred_fallthru
        _
    $region36: #{blip_decoder_v2_forward.57} parent=5 // pred_fallthru
      _
    %p949 = scmp.le.s32.totalorder 2, %s10
    // Predicated region
    $region49: #{blip_decoder_v2_forward.57} parent=5 // pred_check
      %p950 = pneg %p949
    $region50: #{blip_decoder_v2_forward.57} parent=5 // pred_check_branch
      %952 = sbr.rel (%p950) target = $region52
    $region51: #{blip_decoder_v2_forward.57} parent=5 // pred_region
      %s953 = ssub.s32 %s10, 2
      // Predicated region
      $region53: #{blip_decoder_v2_forward.57} parent=51 // pred_check
        %p954 = pneg %p172
      $region54: #{blip_decoder_v2_forward.57} parent=51 // pred_check_branch
        %956 = sbr.rel (%p954) target = $region56
      $region55: #{blip_decoder_v2_forward.57} parent=51 // pred_region
        %p957 = scmp.lt.s32.totalorder %s23, 1
        %s958 = scalar_select %p957, %s23, 1
        %p959 = scmp.lt.s32.totalorder %s24, 0
        %s960 = scalar_select %p959, %s24, 0
        %s961 = sadd.s32 %s960, %s958
        %s962 = smul.addr %s961, 8
        %s963 = scalar_lea.vmem %s4, %s962
      $region56: #{blip_decoder_v2_forward.57} parent=51 // pred_fallthru
        _
    $region52: #{blip_decoder_v2_forward.57} parent=5 // pred_fallthru
      _
  $region6: #{blip_decoder_v2_forward.57} parent=0 // loop_footer
    %s14 = sadd.s32 1, %s10
  $region7: #{blip_decoder_v2_forward.57} parent=0 // loop_footer_branch
    %9 = sbr.rel target = $region3
  $region8: #{blip_decoder_v2_forward.57} parent=0 // loop_exit
    _

// kernel: blip_decoder_v2_forward.42
$region0: #{blip_decoder_v2_forward.42}
  #allocation0 [shape = 'u32[]', space=smem, size = 0x4, offset = 0x4, fixed_abs, tag = 'smem constant byte address 0x4 - core index']
  #allocation1 [shape = 'u32[144,128]{1,0:T(1,128)}', space=vmem, size = 0x12000, scoped, tag = 'internal scratch']
  %s0 = inlined_call_operand.vmem [shape: f32[16,32], index: 0, kind: input, shape index: {}]
  %s1 = inlined_call_operand.vmem [shape: f32[16,32], index: 1, kind: input, shape index: {}]
  %s2 = inlined_call_operand.vmem [shape: f32[1,32], index: 2, kind: input, shape index: {}]
  %s3 = inlined_call_operand.vmem [shape: f32[1,32], index: 3, kind: input, shape index: {}]
  %s4 = inlined_call_operand.vmem [shape: f32[16,32], index: 4, kind: output, shape index: {}]
  %s5 = sld [smem:[#allocation0]]
  $region26: #{blip_decoder_v2_forward.42} parent=0
    _
  %s7 = ssub.s32 1, %s5
  %s8 = scalar_select 0, %s7, %s5
  // Predicated region
  $region2: #{blip_decoder_v2_forward.42} parent=0 // pred_check
    _
  $region3: #{blip_decoder_v2_forward.42} parent=0 // pred_check_branch
    %10 = sbr.rel (0) target = $region5
  $region4: #{blip_decoder_v2_forward.42} parent=0 // pred_region
    _
  $region5: #{blip_decoder_v2_forward.42} parent=0 // pred_fallthru
    _
  // Predicated region
  $region6: #{blip_decoder_v2_forward.42} parent=0 // pred_check
    _
  $region7: #{blip_decoder_v2_forward.42} parent=0 // pred_check_branch
    %12 = sbr.rel (0) target = $region9
  $region8: #{blip_decoder_v2_forward.42} parent=0 // pred_region
    _
  $region9: #{blip_decoder_v2_forward.42} parent=0 // pred_fallthru
    _
  // Predicated region
  $region10: #{blip_decoder_v2_forward.42} parent=0 // pred_check
    _
  $region11: #{blip_decoder_v2_forward.42} parent=0 // pred_check_branch
    %14 = sbr.rel (0) target = $region13
  $region12: #{blip_decoder_v2_forward.42} parent=0 // pred_region
    _
  $region13: #{blip_decoder_v2_forward.42} parent=0 // pred_fallthru
    _
  // Predicated region
  $region14: #{blip_decoder_v2_forward.42} parent=0 // pred_check
    _
  $region15: #{blip_decoder_v2_forward.42} parent=0 // pred_check_branch
    %16 = sbr.rel (0) target = $region17
  $region16: #{blip_decoder_v2_forward.42} parent=0 // pred_region
    _
  $region17: #{blip_decoder_v2_forward.42} parent=0 // pred_fallthru
    _
  %v17 = vld [vmem:[%s0] sm:$0xff]
  %v18 = vld [vmem:[%s0 + $0x8] sm:$0xff]
  %v19 = vld [vmem:[%s1] sm:$0xff]
  %v20 = vld [vmem:[%s1 + $0x8] sm:$0xff]
  %v21 = vadd.f32 %v17, %v19
  %v22 = vadd.f32 %v18, %v20
  %vm23 = vcmask 261120
  %v24 = vsel %vm23, %v21, 0.0
  %25 = vadd.xlane.f32.xlu0 %v24
  %v26 = vpop.xlane.xlu0 %25
  %v27 = vsel %vm23, %v22, 0.0
  %28 = vadd.xlane.f32.xlu0 %v27
  %v29 = vpop.xlane.xlu0 %28
  %v30 = vrcp.pop 32.0
  %v31 = vmul.f32 %v26, %v30
  %v32 = vmul.f32 %v29, %v30
  %v33 = vsub.f32 %v21, %v31
  %v34 = vsub.f32 %v22, %v32
  %v35 = vmul.f32 %v33, %v33
  %v36 = vmul.f32 %v34, %v34
  %v37 = vsel %vm23, %v35, 0.0
  %38 = vadd.xlane.f32.xlu0 %v37
  %v39 = vpop.xlane.xlu0 %38
  %v40 = vsel %vm23, %v36, 0.0
  %41 = vadd.xlane.f32.xlu0 %v40
  %v42 = vpop.xlane.xlu0 %41
  %v43 = vmul.f32 %v39, %v30
  %v44 = vmul.f32 %v42, %v30
  %v45 = vadd.f32 %v43, 1e-12
  %v46 = vadd.f32 %v44, 1e-12
  %v47 = vrsqrt.pop %v45
  %v48 = vrsqrt.pop %v46
  %v49 = vmul.f32 %v33, %v47
  %v50 = vmul.f32 %v34, %v48
  %v51 = vld [vmem:[%s2] sm:$0x1]
  %v53 = vlaneseq
  %v54 = vshrl.u32 %v53, 7
  %v55 = vsub.s32 0, %v54
  %v56 = vrot.slane %v51, %v55
  %v58 = vmul.f32 %v49, %v56
  %v59 = vmul.f32 %v50, %v56
  %v60 = vld [vmem:[%s3] sm:$0x1]
  %v62 = vlaneseq
  %v63 = vshrl.u32 %v62, 7
  %v64 = vsub.s32 0, %v63
  %v65 = vrot.slane %v60, %v64
  %v67 = vadd.f32 %v58, %v65
  %v68 = vadd.f32 %v59, %v65
  %69 = vst.msk [vmem:[%s4] sm:$0xff] %vm23, %v67
  %70 = vst.msk [vmem:[%s4 + $0x8] sm:$0xff] %vm23, %v68
  // Predicated region
  $region18: #{blip_decoder_v2_forward.42} parent=0 // pred_check
    _
  $region19: #{blip_decoder_v2_forward.42} parent=0 // pred_check_branch
    %72 = sbr.rel (0) target = $region21
  $region20: #{blip_decoder_v2_forward.42} parent=0 // pred_region
    _
  $region21: #{blip_decoder_v2_forward.42} parent=0 // pred_fallthru
    _
  // Predicated region
  $region22: #{blip_decoder_v2_forward.42} parent=0 // pred_check
    _
  $region23: #{blip_decoder_v2_forward.42} parent=0 // pred_check_branch
    %74 = sbr.rel (0) target = $region25
  $region24: #{blip_decoder_v2_forward.42} parent=0 // pred_region
    _
  $region25: #{blip_decoder_v2_forward.42} parent=0 // pred_fallthru
    _

// kernel: blip_decoder_v2_forward.38
$region0: #{blip_decoder_v2_forward.38}
  #allocation0 [shape = 'u32[]', space=smem, size = 0x4, offset = 0x4, fixed_abs, tag = 'smem constant byte address 0x4 - core index']
  #allocation1 [shape = 'u32[144,128]{1,0:T(1,128)}', space=vmem, size = 0x12000, scoped, tag = 'internal scratch']
  %s0 = inlined_call_operand.vmem [shape: f32[16,32], index: 0, kind: input, shape index: {}]
  %s1 = inlined_call_operand.vmem [shape: f32[1,32], index: 1, kind: input, shape index: {}]
  %s2 = inlined_call_operand.vmem [shape: f32[1,32], index: 2, kind: input, shape index: {}]
  %s3 = inlined_call_operand.vmem [shape: f32[16,32], index: 3, kind: output, shape index: {}]
  %s4 = sld [smem:[#allocation0]]
  $region22: #{blip_decoder_v2_forward.38} parent=0
    _
  %s6 = ssub.s32 1, %s4
  %s7 = scalar_select 0, %s6, %s4
  // Predicated region
  $region2: #{blip_decoder_v2_forward.38} parent=0 // pred_check
    _
  $region3: #{blip_decoder_v2_forward.38} parent=0 // pred_check_branch
    %9 = sbr.rel (0) target = $region5
  $region4: #{blip_decoder_v2_forward.38} parent=0 // pred_region
    _
  $region5: #{blip_decoder_v2_forward.38} parent=0 // pred_fallthru
    _
  // Predicated region
  $region6: #{blip_decoder_v2_forward.38} parent=0 // pred_check
    _
  $region7: #{blip_decoder_v2_forward.38} parent=0 // pred_check_branch
    %11 = sbr.rel (0) target = $region9
  $region8: #{blip_decoder_v2_forward.38} parent=0 // pred_region
    _
  $region9: #{blip_decoder_v2_forward.38} parent=0 // pred_fallthru
    _
  // Predicated region
  $region10: #{blip_decoder_v2_forward.38} parent=0 // pred_check
    _
  $region11: #{blip_decoder_v2_forward.38} parent=0 // pred_check_branch
    %13 = sbr.rel (0) target = $region13
  $region12: #{blip_decoder_v2_forward.38} parent=0 // pred_region
    _
  $region13: #{blip_decoder_v2_forward.38} parent=0 // pred_fallthru
    _
  %v14 = vld [vmem:[%s0] sm:$0xff]
  %v15 = vld [vmem:[%s0 + $0x8] sm:$0xff]
  %vm16 = vcmask 261120
  %v17 = vsel %vm16, %v14, 0.0
  %18 = vadd.xlane.f32.xlu0 %v17
  %v19 = vpop.xlane.xlu0 %18
  %v20 = vsel %vm16, %v15, 0.0
  %21 = vadd.xlane.f32.xlu0 %v20
  %v22 = vpop.xlane.xlu0 %21
  %v23 = vrcp.pop 32.0
  %v24 = vmul.f32 %v19, %v23
  %v25 = vmul.f32 %v22, %v23
  %v26 = vsub.f32 %v14, %v24
  %v27 = vsub.f32 %v15, %v25
  %v28 = vmul.f32 %v26, %v26
  %v29 = vmul.f32 %v27, %v27
  %v30 = vsel %vm16, %v28, 0.0
  %31 = vadd.xlane.f32.xlu0 %v30
  %v32 = vpop.xlane.xlu0 %31
  %v33 = vsel %vm16, %v29, 0.0
  %34 = vadd.xlane.f32.xlu0 %v33
  %v35 = vpop.xlane.xlu0 %34
  %v36 = vmul.f32 %v32, %v23
  %v37 = vmul.f32 %v35, %v23
  %v38 = vadd.f32 %v36, 1e-12
  %v39 = vadd.f32 %v37, 1e-12
  %v40 = vrsqrt.pop %v38
  %v41 = vrsqrt.pop %v39
  %v42 = vmul.f32 %v26, %v40
  %v43 = vmul.f32 %v27, %v41
  %v44 = vld [vmem:[%s1] sm:$0x1]
  %v46 = vlaneseq
  %v47 = vshrl.u32 %v46, 7
  %v48 = vsub.s32 0, %v47
  %v49 = vrot.slane %v44, %v48
  %v51 = vmul.f32 %v42, %v49
  %v52 = vmul.f32 %v43, %v49
  %v53 = vld [vmem:[%s2] sm:$0x1]
  %v55 = vlaneseq
  %v56 = vshrl.u32 %v55, 7
  %v57 = vsub.s32 0, %v56
  %v58 = vrot.slane %v53, %v57
  %v60 = vadd.f32 %v51, %v58
  %v61 = vadd.f32 %v52, %v58
  %62 = vst.msk [vmem:[%s3] sm:$0xff] %vm16, %v60
  %63 = vst.msk [vmem:[%s3 + $0x8] sm:$0xff] %vm16, %v61
  // Predicated region
  $region14: #{blip_decoder_v2_forward.38} parent=0 // pred_check
    _
  $region15: #{blip_decoder_v2_forward.38} parent=0 // pred_check_branch
    %65 = sbr.rel (0) target = $region17
  $region16: #{blip_decoder_v2_forward.38} parent=0 // pred_region
    _
  $region17: #{blip_decoder_v2_forward.38} parent=0 // pred_fallthru
    _
  // Predicated region
  $region18: #{blip_decoder_v2_forward.38} parent=0 // pred_check
    _
  $region19: #{blip_decoder_v2_forward.38} parent=0 // pred_check_branch
    %67 = sbr.rel (0) target = $region21
  $region20: #{blip_decoder_v2_forward.38} parent=0 // pred_region
    _
  $region21: #{blip_decoder_v2_forward.38} parent=0 // pred_fallthru
    _

// kernel: blip_decoder_v2_forward.75
$region0: #{blip_decoder_v2_forward.75}
  #allocation0 [shape = 'u32[]', space=smem, size = 0x4, offset = 0x4, fixed_abs, tag = 'smem constant byte address 0x4 - core index']
  #allocation1 [shape = 'u32[144,128]{1,0:T(1,128)}', space=vmem, size = 0x12000, scoped, tag = 'internal scratch']
  %s0 = inlined_call_operand.vmem [shape: f32[2,5,32], index: 0, kind: input, shape index: {}]
  %s1 = inlined_call_operand.vmem [shape: bf16[32,256], index: 1, kind: input, shape index: {}]
  %s2 = inlined_call_operand.vmem [shape: f32[1,256], index: 2, kind: input, shape index: {}]
  %s3 = inlined_call_operand.vmem [shape: f32[2,256], index: 3, kind: output, shape index: {}]
  %s4 = sld [smem:[#allocation0]]
  $region22: #{blip_decoder_v2_forward.75} parent=0
    _
  %s6 = ssub.s32 1, %s4
  %s7 = scalar_select 0, %s6, %s4
  // Predicated region
  $region2: #{blip_decoder_v2_forward.75} parent=0 // pred_check
    _
  $region3: #{blip_decoder_v2_forward.75} parent=0 // pred_check_branch
    %9 = sbr.rel (0) target = $region5
  $region4: #{blip_decoder_v2_forward.75} parent=0 // pred_region
    _
  $region5: #{blip_decoder_v2_forward.75} parent=0 // pred_fallthru
    _
  // Predicated region
  $region6: #{blip_decoder_v2_forward.75} parent=0 // pred_check
    _
  $region7: #{blip_decoder_v2_forward.75} parent=0 // pred_check_branch
    %11 = sbr.rel (0) target = $region9
  $region8: #{blip_decoder_v2_forward.75} parent=0 // pred_region
    _
  $region9: #{blip_decoder_v2_forward.75} parent=0 // pred_fallthru
    _
  // Predicated region
  $region10: #{blip_decoder_v2_forward.75} parent=0 // pred_check
    _
  $region11: #{blip_decoder_v2_forward.75} parent=0 // pred_check_branch
    %13 = sbr.rel (0) target = $region13
  $region12: #{blip_decoder_v2_forward.75} parent=0 // pred_region
    _
  $region13: #{blip_decoder_v2_forward.75} parent=0 // pred_fallthru
    _
  %v15 = vld [vmem:[%s0] sm:$0x1f]
  %v16 = vld [vmem:[%s0 + $0x8] sm:$0x1f]
  %v19 = vrot.slane %v15, 1
  %v20 = vrot.slane %v16, 1
  %vm23 = vcmask 257024
  %v24 = vsel %vm23, %v19, 0.0
  %v25 = vrot.slane %v24, 4
  %v26 = vadd.f32 %v24, %v25
  %v27 = vrot.slane %v26, 2
  %v28 = vadd.f32 %v26, %v27
  %v29 = vrot.slane %v28, 1
  %v30 = vadd.f32 %v28, %v29
  %v31 = vsel %vm23, %v20, 0.0
  %v32 = vrot.slane %v31, 4
  %v33 = vadd.f32 %v31, %v32
  %v34 = vrot.slane %v33, 2
  %v35 = vadd.f32 %v33, %v34
  %v36 = vrot.slane %v35, 1
  %v37 = vadd.f32 %v35, %v36
  %v38 = vrcp.pop 4.0
  %v39 = vmul.f32 %v30, %v38
  %v40 = vmul.f32 %v37, %v38
  %v41 = vpack.c.bf16 %v39, %v39
  %v42 = vpack.c.bf16 %v40, %v40
  %v43 = vld [vmem:[%s1] sm:$0xff]
  %v44 = vld [vmem:[%s1 + $0x8] sm:$0xff]
  %v45 = vld [vmem:[%s1 + $0x10] sm:$0xff]
  %v46 = vld [vmem:[%s1 + $0x18] sm:$0xff]
  %v47 = vld [vmem:[%s2] sm:$0x3]
  %v49 = vlaneseq
  %v50 = vshrl.u32 %v49, 7
  %v51 = vsub.s32 0, %v50
  %v52 = vrot.slane %v47, %v51
  %v53 = vlaneseq
  %v54 = vshrl.u32 %v53, 7
  %v55 = vsub.s32 1, %v54
  %v56 = vrot.slane %v47, %v55
  %v61 = vunpack.c.l.b16 %v41
  %v62 = vunpack.c.l.b16 %v42
  %vm63 = vcmask 1041409
  %v64 = vsel %vm63, %v62, %v61
  %v65 = vpack.c.b16 %v64, %v64
  %v70 = vunpack.c.l.b16 %v43
  %v71 = vunpack.c.h.b16 %v43
  %v72 = vunpack.c.l.b16 %v44
  %v73 = vunpack.c.h.b16 %v44
  %v74 = vunpack.c.l.b16 %v45
  %v75 = vunpack.c.h.b16 %v45
  %v76 = vunpack.c.l.b16 %v46
  %v77 = vunpack.c.h.b16 %v46
  %v78 = vpack.c.b16 %v72, %v70
  %v79 = vpack.c.b16 %v73, %v71
  %v80 = vpack.c.b16 %v76, %v74
  %v81 = vpack.c.b16 %v77, %v75
  %vm86 = vcmask 261120
  %v88 = vsel %vm86, %v65, 0
  %90 = vmatprep.subr.bf16.mxu0 %v79
  %91 = vmatpush1.bf16.msra.mxu0 %v78
  %92 = vmatprep.subr.bf16.mxu0 %v81
  %93 = vmatpush1.bf16.msra.mxu0 %v80
  %94 = vmatprep.subr.bf16.mxu0 0
  %95 = vmatpush1.bf16.msra.mxu0 0
  %96 = vmatprep.subr.bf16.mxu0 0
  %97 = vmatpush1.bf16.msra.mxu0 0
  %98 = vmatprep.subr.bf16.mxu0 0
  %99 = vmatpush1.bf16.msra.mxu0 0
  %100 = vmatprep.subr.bf16.mxu0 0
  %101 = vmatpush1.bf16.msra.mxu0 0
  %102 = vmatprep.subr.bf16.mxu0 0
  %103 = vmatpush1.bf16.msra.mxu0 0
  %104 = vmatprep.subr.bf16.mxu0 0
  %105 = vmatpush1.bf16.msra.mxu0 0
  %106 = vmatprep.subr.bf16.mxu0 0
  %107 = vmatpush1.bf16.msra.mxu0 0
  %108 = vmatprep.subr.bf16.mxu0 0
  %109 = vmatpush1.bf16.msra.mxu0 0
  %110 = vmatprep.subr.bf16.mxu0 0
  %111 = vmatpush1.bf16.msra.mxu0 0
  %112 = vmatprep.subr.bf16.mxu0 0
  %113 = vmatpush1.bf16.msra.mxu0 0
  %114 = vmatprep.subr.bf16.mxu0 0
  %115 = vmatpush1.bf16.msra.mxu0 0
  %116 = vmatprep.subr.bf16.mxu0 0
  %117 = vmatpush1.bf16.msra.mxu0 0
  %118 = vmatprep.subr.bf16.mxu0 0
  %119 = vmatpush1.bf16.msra.mxu0 0
  %120 = vmatprep.subr.bf16.mxu0 0
  %121 = vmatpush1.bf16.msra.mxu0 0
  %122 = vmatprep.mubr.bf16.mxu0 0
  %123 = vmatmul.mubr.bf16.gmra.mrb[0].mxu0 %v88
  %v124 = vpop.f32.mrb[0].mxu0
  %v125 = vadd.f32 %v52, %v124
  %v126 = vpop.f32.mrb[0].mxu0
  %v127 = vadd.f32 %v56, %v126
  %v128 = vpop.f32.mrb[0].mxu0
  %v129 = vpop.f32.mrb[0].mxu0
  %130 = vdwg.mxu0
  %v133 = vcombine.low %v125, %v127
  %v135 = vunpack.c.l.s4 1983009808
  %v136 = vunpack.c.0.s8 %v135
  %v137 = vlaneseq
  %v138 = vshrl.u32 %v137, 7
  %v139 = vsub.s32 %v136, %v138
  %v140 = vrot.slane %v133, %v139
  %142 = vst [vmem:[%s3] sm:$0xf] %v140
  // Predicated region
  $region14: #{blip_decoder_v2_forward.75} parent=0 // pred_check
    _
  $region15: #{blip_decoder_v2_forward.75} parent=0 // pred_check_branch
    %144 = sbr.rel (0) target = $region17
  $region16: #{blip_decoder_v2_forward.75} parent=0 // pred_region
    _
  $region17: #{blip_decoder_v2_forward.75} parent=0 // pred_fallthru
    _
  // Predicated region
  $region18: #{blip_decoder_v2_forward.75} parent=0 // pred_check
    _
  $region19: #{blip_decoder_v2_forward.75} parent=0 // pred_check_branch
    %146 = sbr.rel (0) target = $region21
  $region20: #{blip_decoder_v2_forward.75} parent=0 // pred_region
    _
  $region21: #{blip_decoder_v2_forward.75} parent=0 // pred_fallthru
    _

// kernel: blip_decoder_v2_forward.40
$region0: #{blip_decoder_v2_forward.40}
  #allocation0 [shape = 'u32[]', space=smem, size = 0x4, offset = 0x4, fixed_abs, tag = 'smem constant byte address 0x4 - core index']
  #allocation1 [shape = 'u32[144,128]{1,0:T(1,128)}', space=vmem, size = 0x12000, scoped, tag = 'internal scratch']
  #allocation2 [shape = 'f32[4,8,1]{2,1,0:T(8,128)}', space=vmem, size = 0x4000, scoped, tag = 'scratch operand']
  #allocation3 [shape = 'f32[4,8,1]{2,1,0:T(8,128)}', space=vmem, size = 0x4000, scoped, tag = 'scratch operand']
  #allocation4 [shape = 'f32[8,32]{1,0:T(8,128)}', space=vmem, size = 0x1000, scoped, tag = 'scratch operand']
  %s0 = inlined_call_operand.vmem [shape: f32[2,8,32], index: 0, kind: input, shape index: {}]
  %s1 = inlined_call_operand.vmem [shape: f32[2,8,32], index: 1, kind: input, shape index: {}]
  %s2 = inlined_call_operand.vmem [shape: f32[2,8,32], index: 2, kind: input, shape index: {}]
  %s3 = inlined_call_operand.vmem [shape: f32[2,1,8], index: 3, kind: input, shape index: {}]
  %s4 = inlined_call_operand.vmem [shape: f32[2,8,32], index: 4, kind: output, shape index: {}]
  %s5 = sld [smem:[#allocation0]]
  $region57: #{blip_decoder_v2_forward.40} parent=0
    _
  %s7 = ssub.s32 1, %s5
  %s8 = scalar_select 0, %s7, %s5
  loop: start=0, step=1, limit=4
  $region2: #{blip_decoder_v2_forward.40} parent=0 // loop_pre_header
    _
  $region3: #{blip_decoder_v2_forward.40} parent=0 // loop_header
    %s10 = sphi 0, %s14
    %p11 = scmp.ge.s32.totalorder %s10, 4
    %s17 = sphi 0, %s36
    %s18 = sphi 0, %s32
    %s19 = sphi 0, %s28
    %s20 = sphi 0, %s17
    %s21 = sphi 0, %s18
    %s22 = sphi 0, %s19
    %s23 = sphi 0, %s20
    %s24 = sphi 0, %s21
    %s25 = sphi 0, %s22
    %s41 = sphi 0, %s43
    %s44 = sphi 0, %s41
    %s45 = sphi 0, %s44
    %s61 = sphi 0, %s45
    %s69 = sphi 0, %s71
    %s72 = sphi 0, %s69
    %s73 = sphi 0, %s72
    %s89 = sphi 0, %s73
    %s97 = sphi 0, %s99
    %s100 = sphi 0, %s97
    %s101 = sphi 0, %s100
    %s117 = sphi 0, %s101
    %s125 = sphi 0, %s127
    %s128 = sphi 0, %s125
    %s129 = sphi 0, %s128
    %s145 = sphi 0, %s129
    %s153 = sphi 0, %s155
    %s156 = sphi 0, %s153
    %s157 = sphi 0, %s156
    %s173 = sphi 0, %s157
  $region4: #{blip_decoder_v2_forward.40} parent=0 // loop_header_branch
    %13 = sbr.rel (%p11) target = $region8
  $region5: #{blip_decoder_v2_forward.40} parent=0 // loop_body
    %s15 = ssub.s32 %s10, 1
    %s16 = ssub.s32 %s10, 2
    %s26 = sadd.s32 1, %s19
    %p27 = scmp.ge.s32.totalorder %s26, 1
    %s28 = scalar_select %p27, 0, %s26
    %s29 = sadd.s32 1, %s18
    %s30 = scalar_select %p27, %s29, %s18
    %p31 = scmp.ge.s32.totalorder %s30, 1
    %s32 = scalar_select %p31, 0, %s30
    %s33 = sadd.s32 1, %s17
    %s34 = scalar_select %p31, %s33, %s17
    %p35 = scmp.ge.s32.totalorder %s34, 2
    %s36 = scalar_select %p35, 0, %s34
    %s37 = ssub.s32 %s17, %s36
    %s38 = ssub.s32 %s18, %s32
    %s39 = sor.u32 %s37, %s38
    %p40 = scmp.eq.s32.totalorder %s39, 0
    %s42 = sadd.s32 %s41, 1
    %s43 = scalar_select %p40, %s41, %s42
    %p46 = pneg %p40
    %p47 = scmp.eq.s32.totalorder %s10, 1
    %p48 = por %p46, %p47
    %p49 = scmp.ne.s32.totalorder %s41, %s44
    %p50 = scmp.eq.s32.totalorder %s10, 0
    %p51 = por %p49, %p50
    %p52 = scmp.ne.s32.totalorder %s41, %s44
    %p53 = scmp.eq.s32.totalorder %s15, 1
    %p54 = por %p52, %p53
    %p55 = scmp.ne.s32.totalorder %s44, %s45
    %p56 = scmp.eq.s32.totalorder %s15, 0
    %p57 = por %p55, %p56
    %p58 = scmp.ne.s32.totalorder %s44, %s45
    %p59 = scmp.eq.s32.totalorder %s16, 1
    %p60 = por %p58, %p59
    %p62 = scmp.ne.s32.totalorder %s45, %s61
    %p63 = scmp.eq.s32.totalorder %s16, 0
    %p64 = por %p62, %p63
    %s65 = ssub.s32 %s17, %s36
    %s66 = ssub.s32 %s19, %s28
    %s67 = sor.u32 %s65, %s66
    %p68 = scmp.eq.s32.totalorder %s67, 0
    %s70 = sadd.s32 %s69, 1
    %s71 = scalar_select %p68, %s69, %s70
    %p74 = pneg %p68
    %p75 = scmp.eq.s32.totalorder %s10, 1
    %p76 = por %p74, %p75
    %p77 = scmp.ne.s32.totalorder %s69, %s72
    %p78 = scmp.eq.s32.totalorder %s10, 0
    %p79 = por %p77, %p78
    %p80 = scmp.ne.s32.totalorder %s69, %s72
    %p81 = scmp.eq.s32.totalorder %s15, 1
    %p82 = por %p80, %p81
    %p83 = scmp.ne.s32.totalorder %s72, %s73
    %p84 = scmp.eq.s32.totalorder %s15, 0
    %p85 = por %p83, %p84
    %p86 = scmp.ne.s32.totalorder %s72, %s73
    %p87 = scmp.eq.s32.totalorder %s16, 1
    %p88 = por %p86, %p87
    %p90 = scmp.ne.s32.totalorder %s73, %s89
    %p91 = scmp.eq.s32.totalorder %s16, 0
    %p92 = por %p90, %p91
    %s93 = ssub.s32 %s17, %s36
    %s94 = ssub.s32 %s19, %s28
    %s95 = sor.u32 %s93, %s94
    %p96 = scmp.eq.s32.totalorder %s95, 0
    %s98 = sadd.s32 %s97, 1
    %s99 = scalar_select %p96, %s97, %s98
    %p102 = pneg %p96
    %p103 = scmp.eq.s32.totalorder %s10, 1
    %p104 = por %p102, %p103
    %p105 = scmp.ne.s32.totalorder %s97, %s100
    %p106 = scmp.eq.s32.totalorder %s10, 0
    %p107 = por %p105, %p106
    %p108 = scmp.ne.s32.totalorder %s97, %s100
    %p109 = scmp.eq.s32.totalorder %s15, 1
    %p110 = por %p108, %p109
    %p111 = scmp.ne.s32.totalorder %s100, %s101
    %p112 = scmp.eq.s32.totalorder %s15, 0
    %p113 = por %p111, %p112
    %p114 = scmp.ne.s32.totalorder %s100, %s101
    %p115 = scmp.eq.s32.totalorder %s16, 1
    %p116 = por %p114, %p115
    %p118 = scmp.ne.s32.totalorder %s101, %s117
    %p119 = scmp.eq.s32.totalorder %s16, 0
    %p120 = por %p118, %p119
    %s121 = ssub.s32 %s17, %s36
    %s122 = ssub.s32 %s19, %s28
    %s123 = sor.u32 %s121, %s122
    %p124 = scmp.eq.s32.totalorder %s123, 0
    %s126 = sadd.s32 %s125, 1
    %s127 = scalar_select %p124, %s125, %s126
    %p130 = pneg %p124
    %p131 = scmp.eq.s32.totalorder %s10, 1
    %p132 = por %p130, %p131
    %p133 = scmp.ne.s32.totalorder %s125, %s128
    %p134 = scmp.eq.s32.totalorder %s10, 0
    %p135 = por %p133, %p134
    %p136 = scmp.ne.s32.totalorder %s125, %s128
    %p137 = scmp.eq.s32.totalorder %s15, 1
    %p138 = por %p136, %p137
    %p139 = scmp.ne.s32.totalorder %s128, %s129
    %p140 = scmp.eq.s32.totalorder %s15, 0
    %p141 = por %p139, %p140
    %p142 = scmp.ne.s32.totalorder %s128, %s129
    %p143 = scmp.eq.s32.totalorder %s16, 1
    %p144 = por %p142, %p143
    %p146 = scmp.ne.s32.totalorder %s129, %s145
    %p147 = scmp.eq.s32.totalorder %s16, 0
    %p148 = por %p146, %p147
    %s149 = ssub.s32 %s17, %s36
    %s150 = ssub.s32 %s18, %s32
    %s151 = sor.u32 %s149, %s150
    %p152 = scmp.eq.s32.totalorder %s151, 0
    %s154 = sadd.s32 %s153, 1
    %s155 = scalar_select %p152, %s153, %s154
    %p158 = pneg %p152
    %p159 = scmp.eq.s32.totalorder %s10, 1
    %p160 = por %p158, %p159
    %p161 = scmp.ne.s32.totalorder %s153, %s156
    %p162 = scmp.eq.s32.totalorder %s10, 0
    %p163 = por %p161, %p162
    %p164 = scmp.ne.s32.totalorder %s153, %s156
    %p165 = scmp.eq.s32.totalorder %s15, 1
    %p166 = por %p164, %p165
    %p167 = scmp.ne.s32.totalorder %s156, %s157
    %p168 = scmp.eq.s32.totalorder %s15, 0
    %p169 = por %p167, %p168
    %p170 = scmp.ne.s32.totalorder %s156, %s157
    %p171 = scmp.eq.s32.totalorder %s16, 1
    %p172 = por %p170, %p171
    %p174 = scmp.ne.s32.totalorder %s157, %s173
    %p175 = scmp.eq.s32.totalorder %s16, 0
    %p176 = por %p174, %p175
    %p177 = scmp.le.s32.totalorder 1, %s10
    %p178 = scmp.lt.s32.totalorder %s10, 3
    %p179 = pnand %p177, %p178
    %p180 = pneg %p179
    // Predicated region
    $region9: #{blip_decoder_v2_forward.40} parent=5 // pred_check
      _
    $region10: #{blip_decoder_v2_forward.40} parent=5 // pred_check_branch
      %182 = sbr.rel (%p179) target = $region12
    $region11: #{blip_decoder_v2_forward.40} parent=5 // pred_region
      %s183 = ssub.s32 %s10, 1
    $region12: #{blip_decoder_v2_forward.40} parent=5 // pred_fallthru
      _
    %p184 = scmp.lt.s32.totalorder %s10, 2
    // Predicated region
    $region13: #{blip_decoder_v2_forward.40} parent=5 // pred_check
      %p185 = pneg %p184
    $region14: #{blip_decoder_v2_forward.40} parent=5 // pred_check_branch
      %187 = sbr.rel (%p185) target = $region16
    $region15: #{blip_decoder_v2_forward.40} parent=5 // pred_region
      // Predicated region
      $region17: #{blip_decoder_v2_forward.40} parent=15 // pred_check
        %p188 = pneg %p51
      $region18: #{blip_decoder_v2_forward.40} parent=15 // pred_check_branch
        %190 = sbr.rel (%p188) target = $region20
      $region19: #{blip_decoder_v2_forward.40} parent=15 // pred_region
        %p191 = scmp.lt.s32.totalorder %s17, 1
        %s192 = scalar_select %p191, %s17, 1
        %p193 = scmp.lt.s32.totalorder %s18, 0
        %s194 = scalar_select %p193, %s18, 0
        %s195 = sadd.s32 %s194, %s192
        %s196 = smul.addr %s195, 8
        %s197 = scalar_lea.vmem %s0, %s196
      $region20: #{blip_decoder_v2_forward.40} parent=15 // pred_fallthru
        _
      // Predicated region
      $region21: #{blip_decoder_v2_forward.40} parent=15 // pred_check
        %p198 = pneg %p79
      $region22: #{blip_decoder_v2_forward.40} parent=15 // pred_check_branch
        %200 = sbr.rel (%p198) target = $region24
      $region23: #{blip_decoder_v2_forward.40} parent=15 // pred_region
        %p201 = scmp.lt.s32.totalorder %s17, 1
        %s202 = scalar_select %p201, %s17, 1
        %p203 = scmp.lt.s32.totalorder %s19, 0
        %s204 = scalar_select %p203, %s19, 0
        %s205 = sadd.s32 %s204, %s202
        %s206 = smul.addr %s205, 8
        %s207 = scalar_lea.vmem %s1, %s206
      $region24: #{blip_decoder_v2_forward.40} parent=15 // pred_fallthru
        _
      // Predicated region
      $region25: #{blip_decoder_v2_forward.40} parent=15 // pred_check
        %p208 = pneg %p107
      $region26: #{blip_decoder_v2_forward.40} parent=15 // pred_check_branch
        %210 = sbr.rel (%p208) target = $region28
      $region27: #{blip_decoder_v2_forward.40} parent=15 // pred_region
        %p211 = scmp.lt.s32.totalorder %s17, 1
        %s212 = scalar_select %p211, %s17, 1
        %p213 = scmp.lt.s32.totalorder %s19, 0
        %s214 = scalar_select %p213, %s19, 0
        %s215 = sadd.s32 %s214, %s212
        %s216 = smul.addr %s215, 8
        %s217 = scalar_lea.vmem %s2, %s216
      $region28: #{blip_decoder_v2_forward.40} parent=15 // pred_fallthru
        _
      // Predicated region
      $region29: #{blip_decoder_v2_forward.40} parent=15 // pred_check
        %p218 = pneg %p135
      $region30: #{blip_decoder_v2_forward.40} parent=15 // pred_check_branch
        %220 = sbr.rel (%p218) target = $region32
      $region31: #{blip_decoder_v2_forward.40} parent=15 // pred_region
        %p221 = scmp.lt.s32.totalorder %s17, 1
        %s222 = scalar_select %p221, %s17, 1
        %p223 = scmp.lt.s32.totalorder %s19, 0
        %s224 = scalar_select %p223, %s19, 0
        %s225 = sadd.s32 %s224, %s222
        %s226 = scalar_lea.vmem %s3, %s225
      $region32: #{blip_decoder_v2_forward.40} parent=15 // pred_fallthru
        _
    $region16: #{blip_decoder_v2_forward.40} parent=5 // pred_fallthru
      _
    %p227 = scmp.le.s32.totalorder 1, %s10
    %p228 = scmp.lt.s32.totalorder %s10, 3
    %p229 = pnand %p227, %p228
    %p230 = pneg %p229
    // Predicated region
    $region33: #{blip_decoder_v2_forward.40} parent=5 // pred_check
      _
    $region34: #{blip_decoder_v2_forward.40} parent=5 // pred_check_branch
      %232 = sbr.rel (%p229) target = $region36
    $region35: #{blip_decoder_v2_forward.40} parent=5 // pred_region
      %s233 = ssub.s32 %s10, 1
      %p234 = scmp.lt.s32.totalorder %s20, 1
      %s235 = scalar_select %p234, %s20, 1
      %p236 = scmp.lt.s32.totalorder %s21, 0
      %s237 = scalar_select %p236, %s21, 0
      %s238 = sadd.s32 %s237, %s235
      %s239 = smul.addr %s238, 8
      %s240 = scalar_lea.vmem %s0, %s239
      %p241 = pneg %p57
      %p242 = pneg %p54
      %p243 = scmp.lt.s32.totalorder %s20, 1
      %s244 = scalar_select %p243, %s20, 1
      %p245 = scmp.lt.s32.totalorder %s22, 0
      %s246 = scalar_select %p245, %s22, 0
      %s247 = sadd.s32 %s246, %s244
      %s248 = smul.addr %s247, 8
      %s249 = scalar_lea.vmem %s1, %s248
      %p250 = pneg %p85
      %p251 = pneg %p82
      %p252 = scmp.lt.s32.totalorder %s20, 1
      %s253 = scalar_select %p252, %s20, 1
      %p254 = scmp.lt.s32.totalorder %s22, 0
      %s255 = scalar_select %p254, %s22, 0
      %s256 = sadd.s32 %s255, %s253
      %s257 = smul.addr %s256, 8
      %s258 = scalar_lea.vmem %s2, %s257
      %p259 = pneg %p113
      %p260 = pneg %p110
      %p261 = scmp.lt.s32.totalorder %s20, 1
      %s262 = scalar_select %p261, %s20, 1
      %p263 = scmp.lt.s32.totalorder %s22, 0
      %s264 = scalar_select %p263, %s22, 0
      %s265 = sadd.s32 %s264, %s262
      %s266 = scalar_lea.vmem %s3, %s265
      %p267 = pneg %p141
      %p268 = pneg %p138
      %p269 = pneg %p169
      %p270 = pneg %p166
      %p271 = scmp.lt.s32.totalorder %s20, 1
      %s272 = scalar_select %p271, %s20, 1
      %p273 = scmp.lt.s32.totalorder %s21, 0
      %s274 = scalar_select %p273, %s21, 0
      %s275 = sadd.s32 %s274, %s272
      %s276 = smul.addr %s275, 8
      %s277 = scalar_lea.vmem %s4, %s276
      %p278 = scmp.lt.s32.totalorder %s20, 1
      %s279 = scalar_select %p278, %s20, 1
      %p280 = scmp.lt.s32.totalorder %s21, 0
      %s281 = scalar_select %p280, %s21, 0
      %s282 = sadd.s32 %s281, %s279
      %s283 = smul.addr %s282, 8
      %s284 = scalar_lea.vmem %s0, %s283
      %p285 = scmp.lt.s32.totalorder %s20, 1
      %s286 = scalar_select %p285, %s20, 1
      %p287 = scmp.lt.s32.totalorder %s22, 0
      %s288 = scalar_select %p287, %s22, 0
      %s289 = sadd.s32 %s288, %s286
      %s290 = smul.addr %s289, 8
      %s291 = scalar_lea.vmem %s1, %s290
      %p292 = scmp.lt.s32.totalorder %s20, 1
      %s293 = scalar_select %p292, %s20, 1
      %p294 = scmp.lt.s32.totalorder %s22, 0
      %s295 = scalar_select %p294, %s22, 0
      %s296 = sadd.s32 %s295, %s293
      %s297 = smul.addr %s296, 8
      %s298 = scalar_lea.vmem %s2, %s297
      %p299 = scmp.lt.s32.totalorder %s20, 1
      %s300 = scalar_select %p299, %s20, 1
      %p301 = scmp.lt.s32.totalorder %s22, 0
      %s302 = scalar_select %p301, %s22, 0
      %s303 = sadd.s32 %s302, %s300
      %s304 = scalar_lea.vmem %s3, %s303
      %p305 = scmp.lt.s32.totalorder %s20, 1
      %s306 = scalar_select %p305, %s20, 1
      %p307 = scmp.lt.s32.totalorder %s21, 0
      %s308 = scalar_select %p307, %s21, 0
      %s309 = sadd.s32 %s308, %s306
      %s310 = smul.addr %s309, 8
      %s311 = scalar_lea.vmem %s4, %s310
      %p313 = scmp.eq.s32.totalorder %s22, 0
      // Predicated region
      $region37: #{blip_decoder_v2_forward.40} parent=35 // pred_check
        %p314 = pneg %p313
      $region38: #{blip_decoder_v2_forward.40} parent=35 // pred_check_branch
        %316 = sbr.rel (%p314) target = $region40
      $region39: #{blip_decoder_v2_forward.40} parent=35 // pred_region
        %vm317 = vcmask 7168
        %318 = vst.msk [vmem:[#allocation2] sm:$0xff] %vm317, -1e+30
        %319 = vst.msk [vmem:[#allocation2 + $0x8] sm:$0xff] %vm317, -1e+30
        %320 = vst.msk [vmem:[#allocation2 + $0x10] sm:$0xff] %vm317, -1e+30
        %321 = vst.msk [vmem:[#allocation2 + $0x18] sm:$0xff] %vm317, -1e+30
        %322 = vst.msk [vmem:[#allocation3] sm:$0xff] %vm317, 0.0
        %323 = vst.msk [vmem:[#allocation3 + $0x8] sm:$0xff] %vm317, 0.0
        %324 = vst.msk [vmem:[#allocation3 + $0x10] sm:$0xff] %vm317, 0.0
        %325 = vst.msk [vmem:[#allocation3 + $0x18] sm:$0xff] %vm317, 0.0
        %vm326 = vcmask 261120
        %327 = vst.msk [vmem:[#allocation4] sm:$0xff] %vm326, 0.0
      $region40: #{blip_decoder_v2_forward.40} parent=35 // pred_fallthru
        _
      %v328 = vld [vmem:[%s284] sm:$0xff]
      %v329 = vmul.f32 %v328, 0.35355338
      %v330 = vpack.c.bf16 %v329, %v329
      %v331 = vld [vmem:[%s291] sm:$0xff]
      %v332 = vpack.c.bf16 %v331, %v331
      %v333 = vld [vmem:[%s298] sm:$0xff]
      %v334 = vpack.c.bf16 %v333, %v333
      %v335 = vld [vmem:[%s304] sm:$0x1]
      %v336 = vsub.f32 1.0, %v335
      %v337 = vmul.f32 %v336, -1e+09
      %s338 = smul.u32 %s21, 8
      %v339 = vlaneseq
      %v340 = vshrl.u32 %v339, 7
      %v341 = vstv %s338
      %v342 = vadd.s32 %v341, %v340
      %s343 = smul.u32 %s22, 8
      %v344 = vlaneseq
      %v345 = vand.u32 %v344, 127
      %v346 = vstv %s343
      %v347 = vadd.s32 %v346, %v345
      %vm348 = vcmp.gt.s32.totalorder %v347, %v342
      %v349 = vsel %vm348, -1e+09, 0.0
      %v351 = vlaneseq
      %v352 = vshrl.u32 %v351, 7
      %v353 = vsub.s32 0, %v352
      %v354 = vrot.slane %v337, %v353
      %v356 = vadd.f32 %v354, %v349
      %vm357 = vcmask 64512
      %v359 = vsel %vm357, %v330, 0
      %v362 = vsel %vm357, %v332, 0
      %364 = vmatprep.subr.bf16.mxu0 0
      %365 = vmatpush1.bf16.xpose.msra.mxu0 %v362
      %366 = vmatprep.subr.bf16.mxu0 0
      %367 = vmatpush1.bf16.xpose.msra.mxu0 0
      %368 = vmatprep.subr.bf16.mxu0 0
      %369 = vmatpush1.bf16.xpose.msra.mxu0 0
      %370 = vmatprep.subr.bf16.mxu0 0
      %371 = vmatpush1.bf16.xpose.msra.mxu0 0
      %372 = vmatprep.subr.bf16.mxu0 0
      %373 = vmatpush1.bf16.xpose.msra.mxu0 0
      %374 = vmatprep.subr.bf16.mxu0 0
      %375 = vmatpush1.bf16.xpose.msra.mxu0 0
      %376 = vmatprep.subr.bf16.mxu0 0
      %377 = vmatpush1.bf16.xpose.msra.mxu0 0
      %378 = vmatprep.subr.bf16.mxu0 0
      %379 = vmatpush1.bf16.xpose.msra.mxu0 0
      %380 = vmatprep.subr.bf16.mxu0 0
      %381 = vmatpush1.bf16.xpose.msra.mxu0 0
      %382 = vmatprep.subr.bf16.mxu0 0
      %383 = vmatpush1.bf16.xpose.msra.mxu0 0
      %384 = vmatprep.subr.bf16.mxu0 0
      %385 = vmatpush1.bf16.xpose.msra.mxu0 0
      %386 = vmatprep.subr.bf16.mxu0 0
      %387 = vmatpush1.bf16.xpose.msra.mxu0 0
      %388 = vmatprep.subr.bf16.mxu0 0
      %389 = vmatpush1.bf16.xpose.msra.mxu0 0
      %390 = vmatprep.subr.bf16.mxu0 0
      %391 = vmatpush1.bf16.xpose.msra.mxu0 0
      %392 = vmatprep.subr.bf16.mxu0 0
      %393 = vmatpush1.bf16.xpose.msra.mxu0 0
      %394 = vmatprep.subr.bf16.mxu0 0
      %395 = vmatpush1.bf16.xpose.msra.mxu0 0
      %396 = vmatprep.mubr.bf16.mxu0 0
      %397 = vmatmul.mubr.bf16.gmra.mrb[0].mxu0 %v359
      %v398 = vpop.f32.mrb[0].mxu0
      %v399 = vadd.f32 %v356, %v398
      %v400 = vpop.f32.mrb[0].mxu0
      %v401 = vpop.f32.mrb[0].mxu0
      %v402 = vpop.f32.mrb[0].mxu0
      %403 = vdwg.mxu0
      %v404 = vld [vmem:[#allocation2] sm:$0xff]
      %v405 = vsel %vm357, %v399, -inf
      %406 = vmax.xlane.f32.xlu0 %v405
      %v407 = vpop.xlane.xlu0 %406
      %v408 = vmax.f32 %v404, %v407
      %v409 = vsub.f32 %v404, %v408
      %v410 = vmul.f32 %v409, 1.442695
      %v411 = vpow.pop %v410
      %413 = vset.pattern.permute.xlu0 0
      %414 = vperm.xlu0 %413, %v408
      %v415 = vpop.permute.xlu0 %414
      %v417 = vsub.f32 %v399, %v415
      %v418 = vmul.f32 %v417, 1.442695
      %v419 = vpow.pop %v418
      %v420 = vld [vmem:[#allocation3] sm:$0xff]
      %v421 = vmul.f32 %v411, %v420
      %v422 = vsel %vm357, %v419, 0.0
      %423 = vadd.xlane.f32.xlu0 %v422
      %v424 = vpop.xlane.xlu0 %423
      %v425 = vadd.f32 %v421, %v424
      %vm426 = vcmask 7168
      %427 = vst.msk [vmem:[#allocation3] sm:$0xff] %vm426, %v425
      %v428 = vld [vmem:[#allocation4] sm:$0xff]
      %430 = vset.pattern.permute.xlu0 0
      %431 = vperm.xlu0 %430, %v411
      %v432 = vpop.permute.xlu0 %431
      %v434 = vmul.f32 %v432, %v428
      %v435 = vpack.c.bf16 %v419, %v419
      %v437 = vsel %vm357, %v435, 0
      %vm439 = vcmask 1043456
      %v441 = vsel %vm439, %v334, 0
      %443 = vmatprep.subr.bf16.mxu0 0
      %444 = vmatpush1.bf16.msra.mxu0 %v441
      %445 = vmatprep.subr.bf16.mxu0 0
      %446 = vmatpush1.bf16.msra.mxu0 0
      %447 = vmatprep.subr.bf16.mxu0 0
      %448 = vmatpush1.bf16.msra.mxu0 0
      %449 = vmatprep.subr.bf16.mxu0 0
      %450 = vmatpush1.bf16.msra.mxu0 0
      %451 = vmatprep.subr.bf16.mxu0 0
      %452 = vmatpush1.bf16.msra.mxu0 0
      %453 = vmatprep.subr.bf16.mxu0 0
      %454 = vmatpush1.bf16.msra.mxu0 0
      %455 = vmatprep.subr.bf16.mxu0 0
      %456 = vmatpush1.bf16.msra.mxu0 0
      %457 = vmatprep.subr.bf16.mxu0 0
      %458 = vmatpush1.bf16.msra.mxu0 0
      %459 = vmatprep.subr.bf16.mxu0 0
      %460 = vmatpush1.bf16.msra.mxu0 0
      %461 = vmatprep.subr.bf16.mxu0 0
      %462 = vmatpush1.bf16.msra.mxu0 0
      %463 = vmatprep.subr.bf16.mxu0 0
      %464 = vmatpush1.bf16.msra.mxu0 0
      %465 = vmatprep.subr.bf16.mxu0 0
      %466 = vmatpush1.bf16.msra.mxu0 0
      %467 = vmatprep.subr.bf16.mxu0 0
      %468 = vmatpush1.bf16.msra.mxu0 0
      %469 = vmatprep.subr.bf16.mxu0 0
      %470 = vmatpush1.bf16.msra.mxu0 0
      %471 = vmatprep.subr.bf16.mxu0 0
      %472 = vmatpush1.bf16.msra.mxu0 0
      %473 = vmatprep.subr.bf16.mxu0 0
      %474 = vmatpush1.bf16.msra.mxu0 0
      %475 = vmatprep.mubr.bf16.mxu0 0
      %476 = vmatmul.mubr.bf16.gmra.mrb[0].mxu0 %v437
      %v477 = vpop.f32.mrb[0].mxu0
      %v478 = vadd.f32 0.0, %v477
      %v479 = vpop.f32.mrb[0].mxu0
      %v480 = vpop.f32.mrb[0].mxu0
      %v481 = vpop.f32.mrb[0].mxu0
      %482 = vdwg.mxu0
      %v483 = vadd.f32 %v434, %v478
      %484 = vst.msk [vmem:[#allocation4] sm:$0xff] %vm357, %v483
      %485 = vst.msk [vmem:[#allocation2] sm:$0xff] %vm426, %v408
      %487 = vrot.lane.b32.xlu0 %v330, 120
      %v488 = vpop.permute.xlu0 %487
      %490 = vrot.lane.b32.xlu0 %v332, 120
      %v491 = vpop.permute.xlu0 %490
      %v493 = vsel %vm357, %v488, 0
      %v496 = vsel %vm357, %v491, 0
      %498 = vmatprep.subr.bf16.mxu0 0
      %499 = vmatpush1.bf16.xpose.msra.mxu0 %v496
      %500 = vmatprep.subr.bf16.mxu0 0
      %501 = vmatpush1.bf16.xpose.msra.mxu0 0
      %502 = vmatprep.subr.bf16.mxu0 0
      %503 = vmatpush1.bf16.xpose.msra.mxu0 0
      %504 = vmatprep.subr.bf16.mxu0 0
      %505 = vmatpush1.bf16.xpose.msra.mxu0 0
      %506 = vmatprep.subr.bf16.mxu0 0
      %507 = vmatpush1.bf16.xpose.msra.mxu0 0
      %508 = vmatprep.subr.bf16.mxu0 0
      %509 = vmatpush1.bf16.xpose.msra.mxu0 0
      %510 = vmatprep.subr.bf16.mxu0 0
      %511 = vmatpush1.bf16.xpose.msra.mxu0 0
      %512 = vmatprep.subr.bf16.mxu0 0
      %513 = vmatpush1.bf16.xpose.msra.mxu0 0
      %514 = vmatprep.subr.bf16.mxu0 0
      %515 = vmatpush1.bf16.xpose.msra.mxu0 0
      %516 = vmatprep.subr.bf16.mxu0 0
      %517 = vmatpush1.bf16.xpose.msra.mxu0 0
      %518 = vmatprep.subr.bf16.mxu0 0
      %519 = vmatpush1.bf16.xpose.msra.mxu0 0
      %520 = vmatprep.subr.bf16.mxu0 0
      %521 = vmatpush1.bf16.xpose.msra.mxu0 0
      %522 = vmatprep.subr.bf16.mxu0 0
      %523 = vmatpush1.bf16.xpose.msra.mxu0 0
      %524 = vmatprep.subr.bf16.mxu0 0
      %525 = vmatpush1.bf16.xpose.msra.mxu0 0
      %526 = vmatprep.subr.bf16.mxu0 0
      %527 = vmatpush1.bf16.xpose.msra.mxu0 0
      %528 = vmatprep.subr.bf16.mxu0 0
      %529 = vmatpush1.bf16.xpose.msra.mxu0 0
      %530 = vmatprep.mubr.bf16.mxu0 0
      %531 = vmatmul.mubr.bf16.gmra.mrb[0].mxu0 %v493
      %v532 = vpop.f32.mrb[0].mxu0
      %v533 = vadd.f32 %v356, %v532
      %v534 = vpop.f32.mrb[0].mxu0
      %v535 = vpop.f32.mrb[0].mxu0
      %v536 = vpop.f32.mrb[0].mxu0
      %537 = vdwg.mxu0
      %s538 = scalar_lea.vmem [#allocation2], 8
      %v539 = vld [vmem:[%s538] sm:$0xff]
      %v540 = vsel %vm357, %v533, -inf
      %541 = vmax.xlane.f32.xlu0 %v540
      %v542 = vpop.xlane.xlu0 %541
      %v543 = vmax.f32 %v539, %v542
      %v544 = vsub.f32 %v539, %v543
      %v545 = vmul.f32 %v544, 1.442695
      %v546 = vpow.pop %v545
      %548 = vset.pattern.permute.xlu0 0
      %549 = vperm.xlu0 %548, %v543
      %v550 = vpop.permute.xlu0 %549
      %v552 = vsub.f32 %v533, %v550
      %v553 = vmul.f32 %v552, 1.442695
      %v554 = vpow.pop %v553
      %s555 = scalar_lea.vmem [#allocation3], 8
      %v556 = vld [vmem:[%s555] sm:$0xff]
      %v557 = vmul.f32 %v546, %v556
      %v558 = vsel %vm357, %v554, 0.0
      %559 = vadd.xlane.f32.xlu0 %v558
      %v560 = vpop.xlane.xlu0 %559
      %v561 = vadd.f32 %v557, %v560
      %562 = vst.msk [vmem:[%s555] sm:$0xff] %vm426, %v561
      %v563 = vld [vmem:[#allocation4] sm:$0xff]
      %565 = vset.pattern.permute.xlu0 0
      %566 = vperm.xlu0 %565, %v546
      %v567 = vpop.permute.xlu0 %566
      %v569 = vmul.f32 %v567, %v563
      %v570 = vpack.c.bf16 %v554, %v554
      %572 = vrot.lane.b32.xlu0 %v334, 120
      %v573 = vpop.permute.xlu0 %572
      %v575 = vsel %vm357, %v570, 0
      %v578 = vsel %vm439, %v573, 0
      %580 = vmatprep.subr.bf16.mxu0 0
      %581 = vmatpush1.bf16.msra.mxu0 %v578
      %582 = vmatprep.subr.bf16.mxu0 0
      %583 = vmatpush1.bf16.msra.mxu0 0
      %584 = vmatprep.subr.bf16.mxu0 0
      %585 = vmatpush1.bf16.msra.mxu0 0
      %586 = vmatprep.subr.bf16.mxu0 0
      %587 = vmatpush1.bf16.msra.mxu0 0
      %588 = vmatprep.subr.bf16.mxu0 0
      %589 = vmatpush1.bf16.msra.mxu0 0
      %590 = vmatprep.subr.bf16.mxu0 0
      %591 = vmatpush1.bf16.msra.mxu0 0
      %592 = vmatprep.subr.bf16.mxu0 0
      %593 = vmatpush1.bf16.msra.mxu0 0
      %594 = vmatprep.subr.bf16.mxu0 0
      %595 = vmatpush1.bf16.msra.mxu0 0
      %596 = vmatprep.subr.bf16.mxu0 0
      %597 = vmatpush1.bf16.msra.mxu0 0
      %598 = vmatprep.subr.bf16.mxu0 0
      %599 = vmatpush1.bf16.msra.mxu0 0
      %600 = vmatprep.subr.bf16.mxu0 0
      %601 = vmatpush1.bf16.msra.mxu0 0
      %602 = vmatprep.subr.bf16.mxu0 0
      %603 = vmatpush1.bf16.msra.mxu0 0
      %604 = vmatprep.subr.bf16.mxu0 0
      %605 = vmatpush1.bf16.msra.mxu0 0
      %606 = vmatprep.subr.bf16.mxu0 0
      %607 = vmatpush1.bf16.msra.mxu0 0
      %608 = vmatprep.subr.bf16.mxu0 0
      %609 = vmatpush1.bf16.msra.mxu0 0
      %610 = vmatprep.subr.bf16.mxu0 0
      %611 = vmatpush1.bf16.msra.mxu0 0
      %612 = vmatprep.mubr.bf16.mxu0 0
      %613 = vmatmul.mubr.bf16.gmra.mrb[0].mxu0 %v575
      %v614 = vpop.f32.mrb[0].mxu0
      %v615 = vadd.f32 0.0, %v614
      %v616 = vpop.f32.mrb[0].mxu0
      %v617 = vpop.f32.mrb[0].mxu0
      %v618 = vpop.f32.mrb[0].mxu0
      %619 = vdwg.mxu0
      %621 = vrot.lane.b32.xlu0 %v615, 8
      %v622 = vpop.permute.xlu0 %621
      %v624 = vadd.f32 %v569, %v622
      %vm625 = vcmask 130112
      %626 = vst.msk [vmem:[#allocation4] sm:$0xff] %vm625, %v624
      %627 = vst.msk [vmem:[%s538] sm:$0xff] %vm426, %v543
      %628 = vrot.lane.b32.xlu0 %v330, 112
      %v629 = vpop.permute.xlu0 %628
      %630 = vrot.lane.b32.xlu0 %v332, 112
      %v631 = vpop.permute.xlu0 %630
      %v633 = vsel %vm357, %v629, 0
      %v636 = vsel %vm357, %v631, 0
      %638 = vmatprep.subr.bf16.mxu0 0
      %639 = vmatpush1.bf16.xpose.msra.mxu0 %v636
      %640 = vmatprep.subr.bf16.mxu0 0
      %641 = vmatpush1.bf16.xpose.msra.mxu0 0
      %642 = vmatprep.subr.bf16.mxu0 0
      %643 = vmatpush1.bf16.xpose.msra.mxu0 0
      %644 = vmatprep.subr.bf16.mxu0 0
      %645 = vmatpush1.bf16.xpose.msra.mxu0 0
      %646 = vmatprep.subr.bf16.mxu0 0
      %647 = vmatpush1.bf16.xpose.msra.mxu0 0
      %648 = vmatprep.subr.bf16.mxu0 0
      %649 = vmatpush1.bf16.xpose.msra.mxu0 0
      %650 = vmatprep.subr.bf16.mxu0 0
      %651 = vmatpush1.bf16.xpose.msra.mxu0 0
      %652 = vmatprep.subr.bf16.mxu0 0
      %653 = vmatpush1.bf16.xpose.msra.mxu0 0
      %654 = vmatprep.subr.bf16.mxu0 0
      %655 = vmatpush1.bf16.xpose.msra.mxu0 0
      %656 = vmatprep.subr.bf16.mxu0 0
      %657 = vmatpush1.bf16.xpose.msra.mxu0 0
      %658 = vmatprep.subr.bf16.mxu0 0
      %659 = vmatpush1.bf16.xpose.msra.mxu0 0
      %660 = vmatprep.subr.bf16.mxu0 0
      %661 = vmatpush1.bf16.xpose.msra.mxu0 0
      %662 = vmatprep.subr.bf16.mxu0 0
      %663 = vmatpush1.bf16.xpose.msra.mxu0 0
      %664 = vmatprep.subr.bf16.mxu0 0
      %665 = vmatpush1.bf16.xpose.msra.mxu0 0
      %666 = vmatprep.subr.bf16.mxu0 0
      %667 = vmatpush1.bf16.xpose.msra.mxu0 0
      %668 = vmatprep.subr.bf16.mxu0 0
      %669 = vmatpush1.bf16.xpose.msra.mxu0 0
      %670 = vmatprep.mubr.bf16.mxu0 0
      %671 = vmatmul.mubr.bf16.gmra.mrb[0].mxu0 %v633
      %v672 = vpop.f32.mrb[0].mxu0
      %v673 = vadd.f32 %v356, %v672
      %v674 = vpop.f32.mrb[0].mxu0
      %v675 = vpop.f32.mrb[0].mxu0
      %v676 = vpop.f32.mrb[0].mxu0
      %677 = vdwg.mxu0
      %s678 = scalar_lea.vmem [#allocation2], 16
      %v679 = vld [vmem:[%s678] sm:$0xff]
      %v680 = vsel %vm357, %v673, -inf
      %681 = vmax.xlane.f32.xlu0 %v680
      %v682 = vpop.xlane.xlu0 %681
      %v683 = vmax.f32 %v679, %v682
      %v684 = vsub.f32 %v679, %v683
      %v685 = vmul.f32 %v684, 1.442695
      %v686 = vpow.pop %v685
      %688 = vset.pattern.permute.xlu0 0
      %689 = vperm.xlu0 %688, %v683
      %v690 = vpop.permute.xlu0 %689
      %v692 = vsub.f32 %v673, %v690
      %v693 = vmul.f32 %v692, 1.442695
      %v694 = vpow.pop %v693
      %s695 = scalar_lea.vmem [#allocation3], 16
      %v696 = vld [vmem:[%s695] sm:$0xff]
      %v697 = vmul.f32 %v686, %v696
      %v698 = vsel %vm357, %v694, 0.0
      %699 = vadd.xlane.f32.xlu0 %v698
      %v700 = vpop.xlane.xlu0 %699
      %v701 = vadd.f32 %v697, %v700
      %702 = vst.msk [vmem:[%s695] sm:$0xff] %vm426, %v701
      %v703 = vld [vmem:[#allocation4] sm:$0xff]
      %705 = vset.pattern.permute.xlu0 0
      %706 = vperm.xlu0 %705, %v686
      %v707 = vpop.permute.xlu0 %706
      %v709 = vmul.f32 %v707, %v703
      %v710 = vpack.c.bf16 %v694, %v694
      %711 = vrot.lane.b32.xlu0 %v334, 112
      %v712 = vpop.permute.xlu0 %711
      %v714 = vsel %vm357, %v710, 0
      %v717 = vsel %vm439, %v712, 0
      %719 = vmatprep.subr.bf16.mxu0 0
      %720 = vmatpush1.bf16.msra.mxu0 %v717
      %721 = vmatprep.subr.bf16.mxu0 0
      %722 = vmatpush1.bf16.msra.mxu0 0
      %723 = vmatprep.subr.bf16.mxu0 0
      %724 = vmatpush1.bf16.msra.mxu0 0
      %725 = vmatprep.subr.bf16.mxu0 0
      %726 = vmatpush1.bf16.msra.mxu0 0
      %727 = vmatprep.subr.bf16.mxu0 0
      %728 = vmatpush1.bf16.msra.mxu0 0
      %729 = vmatprep.subr.bf16.mxu0 0
      %730 = vmatpush1.bf16.msra.mxu0 0
      %731 = vmatprep.subr.bf16.mxu0 0
      %732 = vmatpush1.bf16.msra.mxu0 0
      %733 = vmatprep.subr.bf16.mxu0 0
      %734 = vmatpush1.bf16.msra.mxu0 0
      %735 = vmatprep.subr.bf16.mxu0 0
      %736 = vmatpush1.bf16.msra.mxu0 0
      %737 = vmatprep.subr.bf16.mxu0 0
      %738 = vmatpush1.bf16.msra.mxu0 0
      %739 = vmatprep.subr.bf16.mxu0 0
      %740 = vmatpush1.bf16.msra.mxu0 0
      %741 = vmatprep.subr.bf16.mxu0 0
      %742 = vmatpush1.bf16.msra.mxu0 0
      %743 = vmatprep.subr.bf16.mxu0 0
      %744 = vmatpush1.bf16.msra.mxu0 0
      %745 = vmatprep.subr.bf16.mxu0 0
      %746 = vmatpush1.bf16.msra.mxu0 0
      %747 = vmatprep.subr.bf16.mxu0 0
      %748 = vmatpush1.bf16.msra.mxu0 0
      %749 = vmatprep.subr.bf16.mxu0 0
      %750 = vmatpush1.bf16.msra.mxu0 0
      %751 = vmatprep.mubr.bf16.mxu0 0
      %752 = vmatmul.mubr.bf16.gmra.mrb[0].mxu0 %v714
      %v753 = vpop.f32.mrb[0].mxu0
      %v754 = vadd.f32 0.0, %v753
      %v755 = vpop.f32.mrb[0].mxu0
      %v756 = vpop.f32.mrb[0].mxu0
      %v757 = vpop.f32.mrb[0].mxu0
      %758 = vdwg.mxu0
      %760 = vrot.lane.b32.xlu0 %v754, 16
      %v761 = vpop.permute.xlu0 %760
      %v763 = vadd.f32 %v709, %v761
      %vm764 = vcmask 195712
      %765 = vst.msk [vmem:[#allocation4] sm:$0xff] %vm764, %v763
      %766 = vst.msk [vmem:[%s678] sm:$0xff] %vm426, %v683
      %767 = vrot.lane.b32.xlu0 %v330, 104
      %v768 = vpop.permute.xlu0 %767
      %769 = vrot.lane.b32.xlu0 %v332, 104
      %v770 = vpop.permute.xlu0 %769
      %v772 = vsel %vm357, %v768, 0
      %v775 = vsel %vm357, %v770, 0
      %777 = vmatprep.subr.bf16.mxu0 0
      %778 = vmatpush1.bf16.xpose.msra.mxu0 %v775
      %779 = vmatprep.subr.bf16.mxu0 0
      %780 = vmatpush1.bf16.xpose.msra.mxu0 0
      %781 = vmatprep.subr.bf16.mxu0 0
      %782 = vmatpush1.bf16.xpose.msra.mxu0 0
      %783 = vmatprep.subr.bf16.mxu0 0
      %784 = vmatpush1.bf16.xpose.msra.mxu0 0
      %785 = vmatprep.subr.bf16.mxu0 0
      %786 = vmatpush1.bf16.xpose.msra.mxu0 0
      %787 = vmatprep.subr.bf16.mxu0 0
      %788 = vmatpush1.bf16.xpose.msra.mxu0 0
      %789 = vmatprep.subr.bf16.mxu0 0
      %790 = vmatpush1.bf16.xpose.msra.mxu0 0
      %791 = vmatprep.subr.bf16.mxu0 0
      %792 = vmatpush1.bf16.xpose.msra.mxu0 0
      %793 = vmatprep.subr.bf16.mxu0 0
      %794 = vmatpush1.bf16.xpose.msra.mxu0 0
      %795 = vmatprep.subr.bf16.mxu0 0
      %796 = vmatpush1.bf16.xpose.msra.mxu0 0
      %797 = vmatprep.subr.bf16.mxu0 0
      %798 = vmatpush1.bf16.xpose.msra.mxu0 0
      %799 = vmatprep.subr.bf16.mxu0 0
      %800 = vmatpush1.bf16.xpose.msra.mxu0 0
      %801 = vmatprep.subr.bf16.mxu0 0
      %802 = vmatpush1.bf16.xpose.msra.mxu0 0
      %803 = vmatprep.subr.bf16.mxu0 0
      %804 = vmatpush1.bf16.xpose.msra.mxu0 0
      %805 = vmatprep.subr.bf16.mxu0 0
      %806 = vmatpush1.bf16.xpose.msra.mxu0 0
      %807 = vmatprep.subr.bf16.mxu0 0
      %808 = vmatpush1.bf16.xpose.msra.mxu0 0
      %809 = vmatprep.mubr.bf16.mxu0 0
      %810 = vmatmul.mubr.bf16.gmra.mrb[0].mxu0 %v772
      %v811 = vpop.f32.mrb[0].mxu0
      %v812 = vadd.f32 %v356, %v811
      %v813 = vpop.f32.mrb[0].mxu0
      %v814 = vpop.f32.mrb[0].mxu0
      %v815 = vpop.f32.mrb[0].mxu0
      %816 = vdwg.mxu0
      %s817 = scalar_lea.vmem [#allocation2], 24
      %v818 = vld [vmem:[%s817] sm:$0xff]
      %v819 = vsel %vm357, %v812, -inf
      %820 = vmax.xlane.f32.xlu0 %v819
      %v821 = vpop.xlane.xlu0 %820
      %v822 = vmax.f32 %v818, %v821
      %v823 = vsub.f32 %v818, %v822
      %v824 = vmul.f32 %v823, 1.442695
      %v825 = vpow.pop %v824
      %827 = vset.pattern.permute.xlu0 0
      %828 = vperm.xlu0 %827, %v822
      %v829 = vpop.permute.xlu0 %828
      %v831 = vsub.f32 %v812, %v829
      %v832 = vmul.f32 %v831, 1.442695
      %v833 = vpow.pop %v832
      %s834 = scalar_lea.vmem [#allocation3], 24
      %v835 = vld [vmem:[%s834] sm:$0xff]
      %v836 = vmul.f32 %v825, %v835
      %v837 = vsel %vm357, %v833, 0.0
      %838 = vadd.xlane.f32.xlu0 %v837
      %v839 = vpop.xlane.xlu0 %838
      %v840 = vadd.f32 %v836, %v839
      %841 = vst.msk [vmem:[%s834] sm:$0xff] %vm426, %v840
      %v842 = vld [vmem:[#allocation4] sm:$0xff]
      %844 = vset.pattern.permute.xlu0 0
      %845 = vperm.xlu0 %844, %v825
      %v846 = vpop.permute.xlu0 %845
      %v848 = vmul.f32 %v846, %v842
      %v849 = vpack.c.bf16 %v833, %v833
      %850 = vrot.lane.b32.xlu0 %v334, 104
      %v851 = vpop.permute.xlu0 %850
      %v853 = vsel %vm357, %v849, 0
      %v856 = vsel %vm439, %v851, 0
      %858 = vmatprep.subr.bf16.mxu0 0
      %859 = vmatpush1.bf16.msra.mxu0 %v856
      %860 = vmatprep.subr.bf16.mxu0 0
      %861 = vmatpush1.bf16.msra.mxu0 0
      %862 = vmatprep.subr.bf16.mxu0 0
      %863 = vmatpush1.bf16.msra.mxu0 0
      %864 = vmatprep.subr.bf16.mxu0 0
      %865 = vmatpush1.bf16.msra.mxu0 0
      %866 = vmatprep.subr.bf16.mxu0 0
      %867 = vmatpush1.bf16.msra.mxu0 0
      %868 = vmatprep.subr.bf16.mxu0 0
      %869 = vmatpush1.bf16.msra.mxu0 0
      %870 = vmatprep.subr.bf16.mxu0 0
      %871 = vmatpush1.bf16.msra.mxu0 0
      %872 = vmatprep.subr.bf16.mxu0 0
      %873 = vmatpush1.bf16.msra.mxu0 0
      %874 = vmatprep.subr.bf16.mxu0 0
      %875 = vmatpush1.bf16.msra.mxu0 0
      %876 = vmatprep.subr.bf16.mxu0 0
      %877 = vmatpush1.bf16.msra.mxu0 0
      %878 = vmatprep.subr.bf16.mxu0 0
      %879 = vmatpush1.bf16.msra.mxu0 0
      %880 = vmatprep.subr.bf16.mxu0 0
      %881 = vmatpush1.bf16.msra.mxu0 0
      %882 = vmatprep.subr.bf16.mxu0 0
      %883 = vmatpush1.bf16.msra.mxu0 0
      %884 = vmatprep.subr.bf16.mxu0 0
      %885 = vmatpush1.bf16.msra.mxu0 0
      %886 = vmatprep.subr.bf16.mxu0 0
      %887 = vmatpush1.bf16.msra.mxu0 0
      %888 = vmatprep.subr.bf16.mxu0 0
      %889 = vmatpush1.bf16.msra.mxu0 0
      %890 = vmatprep.mubr.bf16.mxu0 0
      %891 = vmatmul.mubr.bf16.gmra.mrb[0].mxu0 %v853
      %v892 = vpop.f32.mrb[0].mxu0
      %v893 = vadd.f32 0.0, %v892
      %v894 = vpop.f32.mrb[0].mxu0
      %v895 = vpop.f32.mrb[0].mxu0
      %v896 = vpop.f32.mrb[0].mxu0
      %897 = vdwg.mxu0
      %899 = vrot.lane.b32.xlu0 %v893, 24
      %v900 = vpop.permute.xlu0 %899
      %v902 = vadd.f32 %v848, %v900
      %vm903 = vcmask 261312
      %904 = vst.msk [vmem:[#allocation4] sm:$0xff] %vm903, %v902
      %905 = vst.msk [vmem:[%s817] sm:$0xff] %vm426, %v822
      // Predicated region
      $region41: #{blip_decoder_v2_forward.40} parent=35 // pred_check
        %p906 = pneg %p313
      $region42: #{blip_decoder_v2_forward.40} parent=35 // pred_check_branch
        %908 = sbr.rel (%p906) target = $region44
      $region43: #{blip_decoder_v2_forward.40} parent=35 // pred_region
        %v909 = vld [vmem:[#allocation4] sm:$0xff]
        %v910 = vld [vmem:[#allocation3] sm:$0xff]
        %v911 = vrcp.pop %v910
        %913 = vset.pattern.permute.xlu0 0
        %914 = vperm.xlu0 %913, %v911
        %v915 = vpop.permute.xlu0 %914
        %v917 = vmul.f32 %v909, %v915
        %918 = vst.msk [vmem:[#allocation4] sm:$0xff] %vm357, %v917
        %v919 = vld [vmem:[#allocation4] sm:$0xff]
        %v920 = vld [vmem:[%s555] sm:$0xff]
        %v921 = vrcp.pop %v920
        %923 = vset.pattern.permute.xlu0 0
        %924 = vperm.xlu0 %923, %v921
        %v925 = vpop.permute.xlu0 %924
        %v927 = vmul.f32 %v919, %v925
        %928 = vst.msk [vmem:[#allocation4] sm:$0xff] %vm625, %v927
        %v929 = vld [vmem:[#allocation4] sm:$0xff]
        %v930 = vld [vmem:[%s695] sm:$0xff]
        %v931 = vrcp.pop %v930
        %933 = vset.pattern.permute.xlu0 0
        %934 = vperm.xlu0 %933, %v931
        %v935 = vpop.permute.xlu0 %934
        %v937 = vmul.f32 %v929, %v935
        %938 = vst.msk [vmem:[#allocation4] sm:$0xff] %vm764, %v937
        %v939 = vld [vmem:[#allocation4] sm:$0xff]
        %v940 = vld [vmem:[%s834] sm:$0xff]
        %v941 = vrcp.pop %v940
        %943 = vset.pattern.permute.xlu0 0
        %944 = vperm.xlu0 %943, %v941
        %v945 = vpop.permute.xlu0 %944
        %v947 = vmul.f32 %v939, %v945
        %948 = vst.msk [vmem:[#allocation4] sm:$0xff] %vm903, %v947
        %v949 = vld [vmem:[#allocation4] sm:$0xff]
        %vm950 = vcmask 261120
        %951 = vst.msk [vmem:[%s311] sm:$0xff] %vm950, %v949
      $region44: #{blip_decoder_v2_forward.40} parent=35 // pred_fallthru
        _
      %p952 = scmp.lt.s32.totalorder %s20, 1
      %s953 = scalar_select %p952, %s20, 1
      %p954 = scmp.lt.s32.totalorder %s21, 0
      %s955 = scalar_select %p954, %s21, 0
      %s956 = sadd.s32 %s955, %s953
      %s957 = smul.addr %s956, 8
      %s958 = scalar_lea.vmem %s4, %s957
      // Predicated region
      $region45: #{blip_decoder_v2_forward.40} parent=35 // pred_check
        %p959 = pneg %p166
      $region46: #{blip_decoder_v2_forward.40} parent=35 // pred_check_branch
        %961 = sbr.rel (%p959) target = $region48
      $region47: #{blip_decoder_v2_forward.40} parent=35 // pred_region
        _
      $region48: #{blip_decoder_v2_forward.40} parent=35 // pred_fallthru
        _
    $region36: #{blip_decoder_v2_forward.40} parent=5 // pred_fallthru
      _
    %p962 = scmp.le.s32.totalorder 2, %s10
    // Predicated region
    $region49: #{blip_decoder_v2_forward.40} parent=5 // pred_check
      %p963 = pneg %p962
    $region50: #{blip_decoder_v2_forward.40} parent=5 // pred_check_branch
      %965 = sbr.rel (%p963) target = $region52
    $region51: #{blip_decoder_v2_forward.40} parent=5 // pred_region
      %s966 = ssub.s32 %s10, 2
      // Predicated region
      $region53: #{blip_decoder_v2_forward.40} parent=51 // pred_check
        %p967 = pneg %p172
      $region54: #{blip_decoder_v2_forward.40} parent=51 // pred_check_branch
        %969 = sbr.rel (%p967) target = $region56
      $region55: #{blip_decoder_v2_forward.40} parent=51 // pred_region
        %p970 = scmp.lt.s32.totalorder %s23, 1
        %s971 = scalar_select %p970, %s23, 1
        %p972 = scmp.lt.s32.totalorder %s24, 0
        %s973 = scalar_select %p972, %s24, 0
        %s974 = sadd.s32 %s973, %s971
        %s975 = smul.addr %s974, 8
        %s976 = scalar_lea.vmem %s4, %s975
      $region56: #{blip_decoder_v2_forward.40} parent=51 // pred_fallthru
        _
    $region52: #{blip_decoder_v2_forward.40} parent=5 // pred_fallthru
      _
  $region6: #{blip_decoder_v2_forward.40} parent=0 // loop_footer
    %s14 = sadd.s32 1, %s10
  $region7: #{blip_decoder_v2_forward.40} parent=0 // loop_footer_branch
    %9 = sbr.rel target = $region3
  $region8: #{blip_decoder_v2_forward.40} parent=0 // loop_exit
    _

</llo_original>
